<compile_context>
chip_gen: v6e
topology: v6e:2x2x1
jax: 0.10.0
libtpu: 0.0.40
codegen_flags: <defaults>
</compile_context>

<pallas_src>
import jax
import jax.numpy as jnp
import numpy as np
from jax.experimental import pallas as pl
from jax.experimental.pallas import tpu as pltpu

LEAKY_SLOPE = 0.01   # nn.LeakyReLU() default negative_slope
BN_EPS = 1e-5        # nn.BatchNorm2d default eps


# --------------------------------------------------------------------------- #
# Host-side constants (computed at trace time; passed as kernel inputs)
# --------------------------------------------------------------------------- #
def _pool_select(h, w):
    """(h*w, (h//2)*(w//2)) one-hot matrix selecting the top-left anchor of each 2x2 window."""
    ho, wo = h // 2, w // 2
    l, lo = h * w, ho * wo
    m = np.arange(lo)
    anchors = 2 * (m // wo) * w + 2 * (m % wo)
    sel = np.zeros((l, lo), np.float32)
    sel[anchors, m] = 1.0
    return jnp.asarray(sel)


# --------------------------------------------------------------------------- #
# Fused forward pass (single pallas_call)
# --------------------------------------------------------------------------- #
@jax.jit
def three_layers_cnn_forward(x_nchw, params):
    B, _, H1, W1 = x_nchw.shape
    C1 = params["b1"].shape[0]
    C2 = params["b2"].shape[0]
    C3 = params["b3"].shape[0]
    H2, W2 = H1 // 2, W1 // 2
    H3, W3 = H2 // 2, W2 // 2
    H4, W4 = H3 // 2, W3 // 2                     # pooled spatial seen by fc1 (3x3 for 28x28)
    L1, L2, L3 = H1 * W1, H2 * W2, H3 * W3
    OFF1, OFF2, OFF3 = W1 + 1, W2 + 1, W3 + 1
    hidden = params["fc1_b"].shape[0]
    n_out = params["fc2_b"].shape[0]
    Cmax = max(C1, C2, C3)

    # ---- batch block size (BB images per grid step) ----
    if B <= 8:
        BB = B
    elif B % 8 == 0:
        BB = 8
    else:
        BB = 8
        while B % BB:
            BB -= 1
    G = B // BB

    # ---- trace-time parameter re-layouts ----
    def big_conv_w(w9):
        # (9, Cout, Cin) -> (BB*Cout, 9*BB*Cin): per-tap block-diagonal over the batch block,
        # so one MXU matmul computes the conv for all BB images at once.
        eye = jnp.eye(BB, dtype=w9.dtype)
        return jnp.concatenate([jnp.kron(eye, w9[t]) for t in range(9)], axis=1)

    w1b = big_conv_w(params["w1"])
    w2b = big_conv_w(params["w2"])
    w3b = big_conv_w(params["w3"])

    # Packed per-channel bias / folded-BN scale / shift, tiled over the batch block:
    # columns = [b1, s1, t1, b2, s2, t2, b3, s3, t3].
    bst = jnp.zeros((BB * Cmax, 9), jnp.float32)
    for j, v in enumerate((params["b1"], params["s1"], params["t1"],
                           params["b2"], params["s2"], params["t2"],
                           params["b3"], params["s3"], params["t3"])):
        bst = bst.at[0:BB * v.shape[0], j].set(jnp.tile(v, BB))

    sel1 = _pool_select(H1, W1).astype(jnp.bfloat16)   # 0/1 exact in bf16
    sel2 = _pool_select(H2, W2).astype(jnp.bfloat16)
    sel3 = _pool_select(H3, W3)                        # f32, folded into fc1 below
    # Fold pool3 anchor-select + fc1 into one matrix: afc1[c*L3+l, j] = sum_m sel3[l,m]*fc1_w[c*9+m, j]
    afc1 = jnp.einsum("lm,cmj->clj", sel3,
                      params["fc1_w"].reshape(C3, H4 * W4, hidden)).reshape(C3 * L3, hidden)
    fb1 = params["fc1_b"].reshape(1, hidden)
    fw2 = params["fc2_w"]
    fb2 = params["fc2_b"].reshape(1, n_out)

    def fused_kernel(x_ref, w1_ref, w2_ref, w3_ref, bst_ref, sel1_ref, sel2_ref,
                     afc1_ref, fb1_ref, fw2_ref, fb2_ref,
                     fc2_ref, conv1_ref, relu1_ref, conv2_ref, relu2_ref,
                     conv3_ref, relu3_ref,
                     p1_ref, p2_ref, p3_ref, col_ref, flat_ref):
        # Zero only the halo (padding) regions of the padded conv-input buffers; interiors
        # are fully overwritten every step.  (Done every step so the kernel is correct even
        # when the grid axis is split across TensorCores.)
        for pref, off, ln in ((p1_ref, OFF1, L1), (p2_ref, OFF2, L2), (p3_ref, OFF3, L3)):
            rows = pref.shape[0]
            pref[:, 0:off] = jnp.zeros((rows, off), jnp.float32)
            pref[:, off + ln:off + ln + off] = jnp.zeros((rows, off), jnp.float32)

        p1_ref[:, OFF1:OFF1 + L1] = x_ref[...]

        def conv_bn_relu(p_ref, w_ref, bst_col0, h, w, cin, cout, conv_ref, relu_ref):
            """conv3x3(pad=1) + bias + folded BN + LeakyReLU on flat (BB*ch, h*w) tiles;
            returns the 2x2 window max (valid at pool-anchor positions)."""
            L = h * w
            off = w + 1
            rows = BB * cin
            # Left/right edge masks generated in-kernel (float trick: no int div/mod needed).
            lane = jax.lax.broadcasted_iota(jnp.int32, (1, L), 1).astype(jnp.float32)
            rowi = jnp.floor((lane + 0.5) * (1.0 / w))
            colf = lane - rowi * w
            left_ok = colf >= 0.5
            right_ok = colf <= (w - 1.5)
            # im2col: 9 flat taps of the zero-padded buffer -> one (9*rows, L) stack, 1 matmul.
            for t in range(9):
                oy, ox = t // 3 - 1, t % 3 - 1
                s = off + oy * w + ox
                tap = p_ref[:, s:s + L]
                if ox == -1:
                    tap = jnp.where(left_ok, tap, 0.0)     # kill wrapped left column
                elif ox == 1:
                    tap = jnp.where(right_ok, tap, 0.0)    # kill wrapped right column
                col_ref[t * rows:(t + 1) * rows, 0:L] = tap
            stack = col_ref[0:9 * rows, 0:L]
            bvec = bst_ref[0:BB * cout, bst_col0 + 0:bst_col0 + 1]
            svec = bst_ref[0:BB * cout, bst_col0 + 1:bst_col0 + 2]
            tvec = bst_ref[0:BB * cout, bst_col0 + 2:bst_col0 + 3]
            conv = jnp.dot(w_ref[...], stack, preferred_element_type=jnp.float32) + bvec
            conv_ref[...] = conv                            # pre-BN conv output (lane-dense)
            y = conv * svec + tvec                          # folded eval-mode BatchNorm
            relu = jnp.where(y > 0.0, y, LEAKY_SLOPE * y)   # LeakyReLU
            relu_ref[...] = relu
            # MaxPool2d(2,2): max of self + 3 lane-rolled copies (XLU).  Wrapped elements
            # only appear at non-anchor positions which the anchor-select discards.
            pm = jnp.maximum(
                jnp.maximum(relu, pltpu.roll(relu, L - 1, 1)),
                jnp.maximum(pltpu.roll(relu, L - w, 1), pltpu.roll(relu, L - w - 1, 1)))
            return pm

        pm1 = conv_bn_relu(p1_ref, w1_ref, 0, H1, W1, 1, C1, conv1_ref, relu1_ref)
        p2_ref[:, OFF2:OFF2 + L2] = jnp.dot(pm1.astype(jnp.bfloat16), sel1_ref[...],
                                            preferred_element_type=jnp.float32)
        pm2 = conv_bn_relu(p2_ref, w2_ref, 3, H2, W2, C1, C2, conv2_ref, relu2_ref)
        p3_ref[:, OFF3:OFF3 + L3] = jnp.dot(pm2.astype(jnp.bfloat16), sel2_ref[...],
                                            preferred_element_type=jnp.float32)
        pm3 = conv_bn_relu(p3_ref, w3_ref, 6, H3, W3, C2, C3, conv3_ref, relu3_ref)

        # Flatten pm3 (rows ordered [image, channel]) to (BB, C3*L3); pool3 anchor-select and
        # fc1 are folded host-side into afc1, so one K=C3*L3 matmul replaces the old loop.
        for b in range(BB):
            for c in range(C3):
                flat_ref[b:b + 1, c * L3:(c + 1) * L3] = pm3[b * C3 + c:b * C3 + c + 1, :]
        hvec = jnp.dot(flat_ref[...], afc1_ref[...],
                       preferred_element_type=jnp.float32) + fb1_ref[...]
        hvec = jnp.where(hvec > 0.0, hvec, LEAKY_SLOPE * hvec)
        # TODO(synk): nn.Dropout(0.5) train-mode masking not implemented (eval-mode identity).
        fc2_ref[...] = jnp.dot(hvec, fw2_ref[...],
                               preferred_element_type=jnp.float32) + fb2_ref[...]

    x2d = x_nchw.reshape(B, L1)                     # free view (NCHW, Cin=1)
    weight_args = (w1b, w2b, w3b, bst, sel1, sel2, afc1, fb1, fw2, fb2)

    def _const_spec(a):
        nd = a.ndim
        return pl.BlockSpec(a.shape, lambda g, _n=nd: (0,) * _n)

    in_specs = ([pl.BlockSpec((BB, L1), lambda g: (g, 0))]
                + [_const_spec(a) for a in weight_args])

    out_shape = (
        jax.ShapeDtypeStruct((B, n_out), jnp.float32),
        jax.ShapeDtypeStruct((G, BB * C1, L1), jnp.float32),
        jax.ShapeDtypeStruct((G, BB * C1, L1), jnp.float32),
        jax.ShapeDtypeStruct((G, BB * C2, L2), jnp.float32),
        jax.ShapeDtypeStruct((G, BB * C2, L2), jnp.float32),
        jax.ShapeDtypeStruct((G, BB * C3, L3), jnp.float32),
        jax.ShapeDtypeStruct((G, BB * C3, L3), jnp.float32),
    )
    out_specs = (
        pl.BlockSpec((BB, n_out), lambda g: (g, 0)),
        pl.BlockSpec((None, BB * C1, L1), lambda g: (g, 0, 0)),
        pl.BlockSpec((None, BB * C1, L1), lambda g: (g, 0, 0)),
        pl.BlockSpec((None, BB * C2, L2), lambda g: (g, 0, 0)),
        pl.BlockSpec((None, BB * C2, L2), lambda g: (g, 0, 0)),
        pl.BlockSpec((None, BB * C3, L3), lambda g: (g, 0, 0)),
        pl.BlockSpec((None, BB * C3, L3), lambda g: (g, 0, 0)),
    )
    scratch_shapes = [
        pltpu.VMEM((BB * 1, L1 + 2 * OFF1), jnp.float32),              # padded layer-1 input
        pltpu.VMEM((BB * C1, L2 + 2 * OFF2), jnp.float32),             # padded layer-2 input
        pltpu.VMEM((BB * C2, L3 + 2 * OFF3), jnp.float32),             # padded layer-3 input
        pltpu.VMEM((9 * BB * max(1, C1, C2), L1), jnp.float32),        # shared im2col stack
        pltpu.VMEM((BB, C3 * L3), jnp.float32),                        # flattened fc1 input
    ]

    flops = 2 * B * (9 * 1 * C1 * L1 + 9 * C1 * C2 * L2 + 9 * C2 * C3 * L3
                     + C1 * L1 * L2 + C2 * L2 * L3
                     + C3 * L3 * hidden + hidden * n_out)
    in_bytes = int(np.prod(x2d.shape)) * 4 + sum(
        int(np.prod(a.shape)) * a.dtype.itemsize for a in weight_args)
    out_bytes = sum(int(np.prod(s.shape)) * 4 for s in out_shape)

    outs = pl.pallas_call(
        fused_kernel,
        out_shape=out_shape,
        grid_spec=pltpu.PrefetchScalarGridSpec(
            num_scalar_prefetch=0,
            grid=(G,),
            in_specs=in_specs,
            out_specs=out_specs,
            scratch_shapes=scratch_shapes),
        compiler_params=pltpu.CompilerParams(
            dimension_semantics=("parallel",),
            vmem_limit_bytes=32 * 1024 * 1024),
        cost_estimate=pl.CostEstimate(flops=flops, transcendentals=0,
                                      bytes_accessed=in_bytes + out_bytes),
    )(x2d, *weight_args)

    fc2, c1, r1, c2o, r2, c3o, r3 = outs
    # Free views back to NCHW (rows are [image, channel] within each batch block).
    return (fc2,
            c1.reshape(B, C1, H1, W1), r1.reshape(B, C1, H1, W1),
            c2o.reshape(B, C2, H2, W2), r2.reshape(B, C2, H2, W2),
            c3o.reshape(B, C3, H3, W3), r3.reshape(B, C3, H3, W3))


# --------------------------------------------------------------------------- #
# Deterministic parameter construction (canonical layouts)
# --------------------------------------------------------------------------- #
def init_params(key, nf1, nf2, nf3, hidden=128, n_classes=10, pooled_hw=3):
    ks = jax.random.split(key, 10)

    def conv_w(k, cin, cout):
        # Layout (9, Cout, Cin); tap t = ky*3 + kx corresponds to torch conv.weight[co, ci, ky, kx].
        return jax.random.normal(k, (9, cout, cin), jnp.float32) * 0.1

    def bn_eval_fold(c):
        gamma = jnp.ones((c,), jnp.float32)
        beta = jnp.zeros((c,), jnp.float32)
        mean = jnp.zeros((c,), jnp.float32)
        var = jnp.ones((c,), jnp.float32)
        scale = gamma * jax.lax.rsqrt(var + BN_EPS)
        return scale, beta - mean * scale

    s1, t1 = bn_eval_fold(nf1)
    s2, t2 = bn_eval_fold(nf2)
    s3, t3 = bn_eval_fold(nf3)
    return {
        "w1": conv_w(ks[0], 1, nf1),
        "b1": jax.random.normal(ks[1], (nf1,), jnp.float32) * 0.05, "s1": s1, "t1": t1,
        "w2": conv_w(ks[2], nf1, nf2),
        "b2": jax.random.normal(ks[3], (nf2,), jnp.float32) * 0.05, "s2": s2, "t2": t2,
        "w3": conv_w(ks[4], nf2, nf3),
        "b3": jax.random.normal(ks[5], (nf3,), jnp.float32) * 0.05, "s3": s3, "t3": t3,
        # fc1 stored transposed: fc1_w[c*9+m, :] == torch_fc1.weight[:, c*9+m] (NCHW flatten).
        "fc1_w": jax.random.normal(ks[6], (nf3 * pooled_hw * pooled_hw, hidden),
                                   jnp.float32) * 0.05,
        "fc1_b": jax.random.normal(ks[7], (hidden,), jnp.float32) * 0.05,
        "fc2_w": jax.random.normal(ks[8], (hidden, n_classes), jnp.float32) * 0.05,
        "fc2_b": jax.random.normal(ks[9], (n_classes,), jnp.float32) * 0.05,
    }


# --------------------------------------------------------------------------- #
# Pure-JAX (XLA) eval-mode reference used to validate the fused kernel
# --------------------------------------------------------------------------- #
def reference_forward(x, params):
    hp = jax.lax.Precision.HIGHEST

    def conv(x, w9, b):
        cout, cin = w9.shape[1], w9.shape[2]
        w = jnp.transpose(w9.reshape(3, 3, cout, cin), (2, 3, 0, 1))    # (Cout, Cin, 3, 3)
        y = jax.lax.conv_general_dilated(
            x, w, window_strides=(1, 1), padding=((1, 1), (1, 1)),
            dimension_numbers=("NCHW", "OIHW", "NCHW"), precision=hp)
        return y + b.reshape(1, -1, 1, 1)

    def bn_lrelu(y, s, t):
        y = y * s.reshape(1, -1, 1, 1) + t.reshape(1, -1, 1, 1)
        return jnp.where(y > 0, y, LEAKY_SLOPE * y)

    def pool(y):
        return jax.lax.reduce_window(y, -jnp.inf, jax.lax.max,
                                     (1, 1, 2, 2), (1, 1, 2, 2), "VALID")

    c1 = conv(x, params["w1"], params["b1"])
    r1 = bn_lrelu(c1, params["s1"], params["t1"])
    c2 = conv(pool(r1), params["w2"], params["b2"])
    r2 = bn_lrelu(c2, params["s2"], params["t2"])
    c3 = conv(pool(r2), params["w3"], params["b3"])
    r3 = bn_lrelu(c3, params["s3"], params["t3"])
    flat = pool(r3).reshape(x.shape[0], -1)
    h = jnp.dot(flat, params["fc1_w"], precision=hp) + params["fc1_b"]
    h = jnp.where(h > 0, h, LEAKY_SLOPE * h)
    out = jnp.dot(h, params["fc2_w"], precision=hp) + params["fc2_b"]
    return (out, c1, r1, c2, r2, c3, r3)


if __name__ == "__main__":
    nf1, nf2, nf3 = 4, 6, 8
    B, H, W = 2, 28, 28       # 28 -> 14 -> 7 -> 3, so fc1 sees nf3*3*3 as the module implies

    key = jax.random.PRNGKey(0)
    kx, kp = jax.random.split(key)
    x = jax.random.normal(kx, (B, 1, H, W), jnp.float32)
    params = init_params(kp, nf1, nf2, nf3)

    outs = jax.block_until_ready(three_layers_cnn_forward(x, params))

    expected_shapes = [(B, 10), (B, nf1, 28, 28), (B, nf1, 28, 28),
                       (B, nf2, 14, 14), (B, nf2, 14, 14),
                       (B, nf3, 7, 7), (B, nf3, 7, 7)]
    got_shapes = [tuple(o.shape) for o in outs]
    assert got_shapes == expected_shapes, got_shapes

    refs = jax.block_until_ready(jax.jit(reference_forward)(x, params))
    # Tolerance covers the bf16 pool-select path (0/1 select is exact; operand is bf16-rounded).
    for name, o, r in zip(("fc2", "conv1", "relu1", "conv2", "relu2", "conv3", "relu3"),
                          outs, refs):
        err = float(jnp.max(jnp.abs(o - r)))
        assert err < 3e-2, (name, err)

    print("KERNEL_OK")
</pallas_src>

<mosaic_0001>
module attributes {stable_mosaic.version = 11 : i64} {
  func.func @fused_kernel(%arg0: i32, %arg1: memref<2x784xf32, #tpu.memory_space<vmem>>, %arg2: memref<8x18xf32, #tpu.memory_space<vmem>>, %arg3: memref<12x72xf32, #tpu.memory_space<vmem>>, %arg4: memref<16x108xf32, #tpu.memory_space<vmem>>, %arg5: memref<16x9xf32, #tpu.memory_space<vmem>>, %arg6: memref<784x196xbf16, #tpu.memory_space<vmem>>, %arg7: memref<196x49xbf16, #tpu.memory_space<vmem>>, %arg8: memref<392x128xf32, #tpu.memory_space<vmem>>, %arg9: memref<1x128xf32, #tpu.memory_space<vmem>>, %arg10: memref<128x10xf32, #tpu.memory_space<vmem>>, %arg11: memref<1x10xf32, #tpu.memory_space<vmem>>, %arg12: memref<2x10xf32, #tpu.memory_space<vmem>>, %arg13: memref<1x8x784xf32, #tpu.memory_space<vmem>>, %arg14: memref<1x8x784xf32, #tpu.memory_space<vmem>>, %arg15: memref<1x12x196xf32, #tpu.memory_space<vmem>>, %arg16: memref<1x12x196xf32, #tpu.memory_space<vmem>>, %arg17: memref<1x16x49xf32, #tpu.memory_space<vmem>>, %arg18: memref<1x16x49xf32, #tpu.memory_space<vmem>>, %arg19: memref<2x842xf32, #tpu.memory_space<vmem>>, %arg20: memref<8x226xf32, #tpu.memory_space<vmem>>, %arg21: memref<12x65xf32, #tpu.memory_space<vmem>>, %arg22: memref<108x784xf32, #tpu.memory_space<vmem>>, %arg23: memref<2x392xf32, #tpu.memory_space<vmem>>) attributes {dimension_semantics = [#tpu.dimension_semantics<parallel>], iteration_bounds = array<i64: 1>, scalar_prefetch = 0 : i64, scratch_operands = 5 : i64, tpu.core_type = #tpu.core_type<tc>, window_params = [{transform_indices = @transform_0, window_bounds = array<i64: 2, 784>}, {pipeline_mode = #tpu.pipeline_mode<synchronous>, transform_indices = @transform_1, window_bounds = array<i64: 8, 18>}, {pipeline_mode = #tpu.pipeline_mode<synchronous>, transform_indices = @transform_2, window_bounds = array<i64: 12, 72>}, {pipeline_mode = #tpu.pipeline_mode<synchronous>, transform_indices = @transform_3, window_bounds = array<i64: 16, 108>}, {pipeline_mode = #tpu.pipeline_mode<synchronous>, transform_indices = @transform_4, window_bounds = array<i64: 16, 9>}, {pipeline_mode = #tpu.pipeline_mode<synchronous>, transform_indices = @transform_5, window_bounds = array<i64: 784, 196>}, {pipeline_mode = #tpu.pipeline_mode<synchronous>, transform_indices = @transform_6, window_bounds = array<i64: 196, 49>}, {pipeline_mode = #tpu.pipeline_mode<synchronous>, transform_indices = @transform_7, window_bounds = array<i64: 392, 128>}, {pipeline_mode = #tpu.pipeline_mode<synchronous>, transform_indices = @transform_8, window_bounds = array<i64: 1, 128>}, {pipeline_mode = #tpu.pipeline_mode<synchronous>, transform_indices = @transform_9, window_bounds = array<i64: 128, 10>}, {pipeline_mode = #tpu.pipeline_mode<synchronous>, transform_indices = @transform_10, window_bounds = array<i64: 1, 10>}, {transform_indices = @transform_11, window_bounds = array<i64: 2, 10>}, {transform_indices = @transform_12, window_bounds = array<i64: 1, 8, 784>}, {transform_indices = @transform_13, window_bounds = array<i64: 1, 8, 784>}, {transform_indices = @transform_14, window_bounds = array<i64: 1, 12, 196>}, {transform_indices = @transform_15, window_bounds = array<i64: 1, 12, 196>}, {transform_indices = @transform_16, window_bounds = array<i64: 1, 16, 49>}, {transform_indices = @transform_17, window_bounds = array<i64: 1, 16, 49>}]} {
    %cst = arith.constant 0.000000e+00 : f32
    %0 = vector.broadcast %cst : f32 to vector<2x29xf32>
    %c0 = arith.constant 0 : index
    %c0_0 = arith.constant 0 : index
    %1 = vector.load %arg19[%c0, %c0_0] : memref<2x842xf32, #tpu.memory_space<vmem>>, vector<2x29xf32>
    tpu.vector_store %arg19[%c0, %c0_0], %0 {strides = array<i32>} : memref<2x842xf32, #tpu.memory_space<vmem>>, vector<2x29xf32>,
    %cst_1 = arith.constant 0.000000e+00 : f32
    %2 = vector.broadcast %cst_1 : f32 to vector<2x29xf32>
    %c0_2 = arith.constant 0 : index
    %c813 = arith.constant 813 : index
    %3 = vector.load %arg19[%c0_2, %c813] : memref<2x842xf32, #tpu.memory_space<vmem>>, vector<2x29xf32>
    tpu.vector_store %arg19[%c0_2, %c813], %2 {strides = array<i32>} : memref<2x842xf32, #tpu.memory_space<vmem>>, vector<2x29xf32>,
    %cst_3 = arith.constant 0.000000e+00 : f32
    %4 = vector.broadcast %cst_3 : f32 to vector<8x15xf32>
    %c0_4 = arith.constant 0 : index
    %c0_5 = arith.constant 0 : index
    %5 = vector.load %arg20[%c0_4, %c0_5] : memref<8x226xf32, #tpu.memory_space<vmem>>, vector<8x15xf32>
    tpu.vector_store %arg20[%c0_4, %c0_5], %4 {strides = array<i32>} : memref<8x226xf32, #tpu.memory_space<vmem>>, vector<8x15xf32>,
    %cst_6 = arith.constant 0.000000e+00 : f32
    %6 = vector.broadcast %cst_6 : f32 to vector<8x15xf32>
    %c0_7 = arith.constant 0 : index
    %c211 = arith.constant 211 : index
    %7 = vector.load %arg20[%c0_7, %c211] : memref<8x226xf32, #tpu.memory_space<vmem>>, vector<8x15xf32>
    tpu.vector_store %arg20[%c0_7, %c211], %6 {strides = array<i32>} : memref<8x226xf32, #tpu.memory_space<vmem>>, vector<8x15xf32>,
    %cst_8 = arith.constant 0.000000e+00 : f32
    %8 = vector.broadcast %cst_8 : f32 to vector<12x8xf32>
    %c0_9 = arith.constant 0 : index
    %c0_10 = arith.constant 0 : index
    %9 = vector.load %arg21[%c0_9, %c0_10] : memref<12x65xf32, #tpu.memory_space<vmem>>, vector<12x8xf32>
    tpu.vector_store %arg21[%c0_9, %c0_10], %8 {strides = array<i32>} : memref<12x65xf32, #tpu.memory_space<vmem>>, vector<12x8xf32>,
    %cst_11 = arith.constant 0.000000e+00 : f32
    %10 = vector.broadcast %cst_11 : f32 to vector<12x8xf32>
    %c0_12 = arith.constant 0 : index
    %c57 = arith.constant 57 : index
    %11 = vector.load %arg21[%c0_12, %c57] : memref<12x65xf32, #tpu.memory_space<vmem>>, vector<12x8xf32>
    tpu.vector_store %arg21[%c0_12, %c57], %10 {strides = array<i32>} : memref<12x65xf32, #tpu.memory_space<vmem>>, vector<12x8xf32>,
    %c0_13 = arith.constant 0 : index
    %c0_14 = arith.constant 0 : index
    %12 = vector.load %arg1[%c0_13, %c0_14] : memref<2x784xf32, #tpu.memory_space<vmem>>, vector<2x784xf32>
    %c0_15 = arith.constant 0 : index
    %c29 = arith.constant 29 : index
    %13 = vector.load %arg19[%c0_15, %c29] : memref<2x842xf32, #tpu.memory_space<vmem>>, vector<2x784xf32>
    tpu.vector_store %arg19[%c0_15, %c29], %12 {strides = array<i32>} : memref<2x842xf32, #tpu.memory_space<vmem>>, vector<2x784xf32>,
    %14 = tpu.iota {dimensions = array<i32: 1>} : vector<1x784xi32>
    %15 = arith.sitofp %14 : vector<1x784xi32> to vector<1x784xf32>
    %cst_16 = arith.constant 5.000000e-01 : f32
    %16 = vector.broadcast %cst_16 : f32 to vector<1x784xf32>
    %17 = arith.addf %15, %16 : vector<1x784xf32>
    %cst_17 = arith.constant 0.0357142873 : f32
    %18 = vector.broadcast %cst_17 : f32 to vector<1x784xf32>
    %19 = arith.mulf %17, %18 : vector<1x784xf32>
    %20 = math.floor %19 : vector<1x784xf32>
    %cst_18 = arith.constant 2.800000e+01 : f32
    %21 = vector.broadcast %cst_18 : f32 to vector<1x784xf32>
    %22 = arith.mulf %20, %21 : vector<1x784xf32>
    %23 = arith.subf %15, %22 : vector<1x784xf32>
    %cst_19 = arith.constant 5.000000e-01 : f32
    %24 = vector.broadcast %cst_19 : f32 to vector<1x784xf32>
    %25 = arith.cmpf oge, %23, %24 : vector<1x784xf32>
    %cst_20 = arith.constant 2.650000e+01 : f32
    %26 = vector.broadcast %cst_20 : f32 to vector<1x784xf32>
    %27 = arith.cmpf ole, %23, %26 : vector<1x784xf32>
    %c0_21 = arith.constant 0 : index
    %c0_22 = arith.constant 0 : index
    %28 = vector.load %arg19[%c0_21, %c0_22] : memref<2x842xf32, #tpu.memory_space<vmem>>, vector<2x784xf32>
    %cst_23 = arith.constant 0.000000e+00 : f32
    %29 = vector.shape_cast %25 : vector<1x784xi1> to vector<1x784xi1>
    %30 = vector.broadcast %29 : vector<1x784xi1> to vector<2x784xi1>
    %31 = vector.broadcast %cst_23 : f32 to vector<2x784xf32>
    %32 = arith.select %30, %28, %31 : vector<2x784xi1>, vector<2x784xf32>
    %c0_24 = arith.constant 0 : index
    %c0_25 = arith.constant 0 : index
    %33 = vector.load %arg22[%c0_24, %c0_25] : memref<108x784xf32, #tpu.memory_space<vmem>>, vector<2x784xf32>
    tpu.vector_store %arg22[%c0_24, %c0_25], %32 {strides = array<i32>} : memref<108x784xf32, #tpu.memory_space<vmem>>, vector<2x784xf32>,
    %c0_26 = arith.constant 0 : index
    %c1 = arith.constant 1 : index
    %34 = vector.load %arg19[%c0_26, %c1] : memref<2x842xf32, #tpu.memory_space<vmem>>, vector<2x784xf32>
    %c2 = arith.constant 2 : index
    %c0_27 = arith.constant 0 : index
    %35 = vector.load %arg22[%c2, %c0_27] : memref<108x784xf32, #tpu.memory_space<vmem>>, vector<2x784xf32>
    tpu.vector_store %arg22[%c2, %c0_27], %34 {strides = array<i32>} : memref<108x784xf32, #tpu.memory_space<vmem>>, vector<2x784xf32>,
    %c0_28 = arith.constant 0 : index
    %c2_29 = arith.constant 2 : index
    %36 = vector.load %arg19[%c0_28, %c2_29] : memref<2x842xf32, #tpu.memory_space<vmem>>, vector<2x784xf32>
    %cst_30 = arith.constant 0.000000e+00 : f32
    %37 = vector.shape_cast %27 : vector<1x784xi1> to vector<1x784xi1>
    %38 = vector.broadcast %37 : vector<1x784xi1> to vector<2x784xi1>
    %39 = vector.broadcast %cst_30 : f32 to vector<2x784xf32>
    %40 = arith.select %38, %36, %39 : vector<2x784xi1>, vector<2x784xf32>
    %c4 = arith.constant 4 : index
    %c0_31 = arith.constant 0 : index
    %41 = vector.load %arg22[%c4, %c0_31] : memref<108x784xf32, #tpu.memory_space<vmem>>, vector<2x784xf32>
    tpu.vector_store %arg22[%c4, %c0_31], %40 {strides = array<i32>} : memref<108x784xf32, #tpu.memory_space<vmem>>, vector<2x784xf32>,
    %c0_32 = arith.constant 0 : index
    %c28 = arith.constant 28 : index
    %42 = vector.load %arg19[%c0_32, %c28] : memref<2x842xf32, #tpu.memory_space<vmem>>, vector<2x784xf32>
    %cst_33 = arith.constant 0.000000e+00 : f32
    %43 = vector.shape_cast %25 : vector<1x784xi1> to vector<1x784xi1>
    %44 = vector.broadcast %43 : vector<1x784xi1> to vector<2x784xi1>
    %45 = vector.broadcast %cst_33 : f32 to vector<2x784xf32>
    %46 = arith.select %44, %42, %45 : vector<2x784xi1>, vector<2x784xf32>
    %c6 = arith.constant 6 : index
    %c0_34 = arith.constant 0 : index
    %47 = vector.load %arg22[%c6, %c0_34] : memref<108x784xf32, #tpu.memory_space<vmem>>, vector<2x784xf32>
    tpu.vector_store %arg22[%c6, %c0_34], %46 {strides = array<i32>} : memref<108x784xf32, #tpu.memory_space<vmem>>, vector<2x784xf32>,
    %c0_35 = arith.constant 0 : index
    %c29_36 = arith.constant 29 : index
    %48 = vector.load %arg19[%c0_35, %c29_36] : memref<2x842xf32, #tpu.memory_space<vmem>>, vector<2x784xf32>
    %c8 = arith.constant 8 : index
    %c0_37 = arith.constant 0 : index
    %49 = vector.load %arg22[%c8, %c0_37] : memref<108x784xf32, #tpu.memory_space<vmem>>, vector<2x784xf32>
    tpu.vector_store %arg22[%c8, %c0_37], %48 {strides = array<i32>} : memref<108x784xf32, #tpu.memory_space<vmem>>, vector<2x784xf32>,
    %c0_38 = arith.constant 0 : index
    %c30 = arith.constant 30 : index
    %50 = vector.load %arg19[%c0_38, %c30] : memref<2x842xf32, #tpu.memory_space<vmem>>, vector<2x784xf32>
    %cst_39 = arith.constant 0.000000e+00 : f32
    %51 = vector.shape_cast %27 : vector<1x784xi1> to vector<1x784xi1>
    %52 = vector.broadcast %51 : vector<1x784xi1> to vector<2x784xi1>
    %53 = vector.broadcast %cst_39 : f32 to vector<2x784xf32>
    %54 = arith.select %52, %50, %53 : vector<2x784xi1>, vector<2x784xf32>
    %c10 = arith.constant 10 : index
    %c0_40 = arith.constant 0 : index
    %55 = vector.load %arg22[%c10, %c0_40] : memref<108x784xf32, #tpu.memory_space<vmem>>, vector<2x784xf32>
    tpu.vector_store %arg22[%c10, %c0_40], %54 {strides = array<i32>} : memref<108x784xf32, #tpu.memory_space<vmem>>, vector<2x784xf32>,
    %c0_41 = arith.constant 0 : index
    %c56 = arith.constant 56 : index
    %56 = vector.load %arg19[%c0_41, %c56] : memref<2x842xf32, #tpu.memory_space<vmem>>, vector<2x784xf32>
    %cst_42 = arith.constant 0.000000e+00 : f32
    %57 = vector.shape_cast %25 : vector<1x784xi1> to vector<1x784xi1>
    %58 = vector.broadcast %57 : vector<1x784xi1> to vector<2x784xi1>
    %59 = vector.broadcast %cst_42 : f32 to vector<2x784xf32>
    %60 = arith.select %58, %56, %59 : vector<2x784xi1>, vector<2x784xf32>
    %c12 = arith.constant 12 : index
    %c0_43 = arith.constant 0 : index
    %61 = vector.load %arg22[%c12, %c0_43] : memref<108x784xf32, #tpu.memory_space<vmem>>, vector<2x784xf32>
    tpu.vector_store %arg22[%c12, %c0_43], %60 {strides = array<i32>} : memref<108x784xf32, #tpu.memory_space<vmem>>, vector<2x784xf32>,
    %c0_44 = arith.constant 0 : index
    %c57_45 = arith.constant 57 : index
    %62 = vector.load %arg19[%c0_44, %c57_45] : memref<2x842xf32, #tpu.memory_space<vmem>>, vector<2x784xf32>
    %c14 = arith.constant 14 : index
    %c0_46 = arith.constant 0 : index
    %63 = vector.load %arg22[%c14, %c0_46] : memref<108x784xf32, #tpu.memory_space<vmem>>, vector<2x784xf32>
    tpu.vector_store %arg22[%c14, %c0_46], %62 {strides = array<i32>} : memref<108x784xf32, #tpu.memory_space<vmem>>, vector<2x784xf32>,
    %c0_47 = arith.constant 0 : index
    %c58 = arith.constant 58 : index
    %64 = vector.load %arg19[%c0_47, %c58] : memref<2x842xf32, #tpu.memory_space<vmem>>, vector<2x784xf32>
    %cst_48 = arith.constant 0.000000e+00 : f32
    %65 = vector.shape_cast %27 : vector<1x784xi1> to vector<1x784xi1>
    %66 = vector.broadcast %65 : vector<1x784xi1> to vector<2x784xi1>
    %67 = vector.broadcast %cst_48 : f32 to vector<2x784xf32>
    %68 = arith.select %66, %64, %67 : vector<2x784xi1>, vector<2x784xf32>
    %c16 = arith.constant 16 : index
    %c0_49 = arith.constant 0 : index
    %69 = vector.load %arg22[%c16, %c0_49] : memref<108x784xf32, #tpu.memory_space<vmem>>, vector<2x784xf32>
    tpu.vector_store %arg22[%c16, %c0_49], %68 {strides = array<i32>} : memref<108x784xf32, #tpu.memory_space<vmem>>, vector<2x784xf32>,
    %c0_50 = arith.constant 0 : index
    %c0_51 = arith.constant 0 : index
    %70 = vector.load %arg22[%c0_50, %c0_51] : memref<108x784xf32, #tpu.memory_space<vmem>>, vector<18x784xf32>
    %c0_52 = arith.constant 0 : index
    %c0_53 = arith.constant 0 : index
    %71 = vector.load %arg5[%c0_52, %c0_53] : memref<16x9xf32, #tpu.memory_space<vmem>>, vector<8x1xf32>
    %c0_54 = arith.constant 0 : index
    %c1_55 = arith.constant 1 : index
    %72 = vector.load %arg5[%c0_54, %c1_55] : memref<16x9xf32, #tpu.memory_space<vmem>>, vector<8x1xf32>
    %c0_56 = arith.constant 0 : index
    %c2_57 = arith.constant 2 : index
    %73 = vector.load %arg5[%c0_56, %c2_57] : memref<16x9xf32, #tpu.memory_space<vmem>>, vector<8x1xf32>
    %c0_58 = arith.constant 0 : index
    %c0_59 = arith.constant 0 : index
    %74 = vector.load %arg2[%c0_58, %c0_59] : memref<8x18xf32, #tpu.memory_space<vmem>>, vector<8x18xf32>
    %cst_60 = arith.constant dense<0.000000e+00> : vector<8x784xf32>
    %75 = tpu.matmul %74, %70, %cst_60 {dimension_numbers = #tpu.dot_dimension_numbers<[1], [0], [0], [1], [0, 0, 1, 1], [], []>} : vector<8x18xf32>, vector<18x784xf32>, vector<8x784xf32> -> vector<8x784xf32>
    %76 = vector.broadcast %71 : vector<8x1xf32> to vector<8x784xf32>
    %77 = arith.addf %75, %76 : vector<8x784xf32>
    %c0_61 = arith.constant 0 : index
    %c0_62 = arith.constant 0 : index
    %c0_63 = arith.constant 0 : index
    %78 = vector.load %arg13[%c0_61, %c0_62, %c0_63] : memref<1x8x784xf32, #tpu.memory_space<vmem>>, vector<1x8x784xf32>
    %79 = vector.shape_cast %78 : vector<1x8x784xf32> to vector<8x784xf32>
    %80 = vector.shape_cast %77 : vector<8x784xf32> to vector<1x8x784xf32>
    tpu.vector_store %arg13[%c0_61, %c0_62, %c0_63], %80 {strides = array<i32>} : memref<1x8x784xf32, #tpu.memory_space<vmem>>, vector<1x8x784xf32>,
    %81 = vector.broadcast %72 : vector<8x1xf32> to vector<8x784xf32>
    %82 = arith.mulf %77, %81 : vector<8x784xf32>
    %83 = vector.broadcast %73 : vector<8x1xf32> to vector<8x784xf32>
    %84 = arith.addf %82, %83 : vector<8x784xf32>
    %cst_64 = arith.constant 0.000000e+00 : f32
    %85 = vector.broadcast %cst_64 : f32 to vector<8x784xf32>
    %86 = arith.cmpf ogt, %84, %85 : vector<8x784xf32>
    %cst_65 = arith.constant 0.00999999977 : f32
    %87 = vector.broadcast %cst_65 : f32 to vector<8x784xf32>
    %88 = arith.mulf %87, %84 : vector<8x784xf32>
    %89 = arith.select %86, %84, %88 : vector<8x784xi1>, vector<8x784xf32>
    %c0_66 = arith.constant 0 : index
    %c0_67 = arith.constant 0 : index
    %c0_68 = arith.constant 0 : index
    %90 = vector.load %arg14[%c0_66, %c0_67, %c0_68] : memref<1x8x784xf32, #tpu.memory_space<vmem>>, vector<1x8x784xf32>
    %91 = vector.shape_cast %90 : vector<1x8x784xf32> to vector<8x784xf32>
    %92 = vector.shape_cast %89 : vector<8x784xf32> to vector<1x8x784xf32>
    tpu.vector_store %arg14[%c0_66, %c0_67, %c0_68], %92 {strides = array<i32>} : memref<1x8x784xf32, #tpu.memory_space<vmem>>, vector<1x8x784xf32>,
    %c783_i32 = arith.constant 783 : i32
    %93 = tpu.dynamic_rotate %89 by %c783_i32 dim 1 : vector<8x784xf32>, i32 -> vector<8x784xf32>
    %94 = arith.maximumf %89, %93 : vector<8x784xf32>
    %c756_i32 = arith.constant 756 : i32
    %95 = tpu.dynamic_rotate %89 by %c756_i32 dim 1 : vector<8x784xf32>, i32 -> vector<8x784xf32>
    %c755_i32 = arith.constant 755 : i32
    %96 = tpu.dynamic_rotate %89 by %c755_i32 dim 1 : vector<8x784xf32>, i32 -> vector<8x784xf32>
    %97 = arith.maximumf %95, %96 : vector<8x784xf32>
    %98 = arith.maximumf %94, %97 : vector<8x784xf32>
    %99 = arith.truncf %98 : vector<8x784xf32> to vector<8x784xbf16>
    %c0_69 = arith.constant 0 : index
    %c0_70 = arith.constant 0 : index
    %100 = vector.load %arg6[%c0_69, %c0_70] : memref<784x196xbf16, #tpu.memory_space<vmem>>, vector<784x196xbf16>
    %cst_71 = arith.constant dense<0.000000e+00> : vector<8x196xf32>
    %101 = tpu.matmul %99, %100, %cst_71 {dimension_numbers = #tpu.dot_dimension_numbers<[1], [0], [0], [1], [0, 0, 1, 1], [], []>} : vector<8x784xbf16>, vector<784x196xbf16>, vector<8x196xf32> -> vector<8x196xf32>
    %c0_72 = arith.constant 0 : index
    %c15 = arith.constant 15 : index
    %102 = vector.load %arg20[%c0_72, %c15] : memref<8x226xf32, #tpu.memory_space<vmem>>, vector<8x196xf32>
    tpu.vector_store %arg20[%c0_72, %c15], %101 {strides = array<i32>} : memref<8x226xf32, #tpu.memory_space<vmem>>, vector<8x196xf32>,
    %103 = tpu.iota {dimensions = array<i32: 1>} : vector<1x196xi32>
    %104 = arith.sitofp %103 : vector<1x196xi32> to vector<1x196xf32>
    %cst_73 = arith.constant 5.000000e-01 : f32
    %105 = vector.broadcast %cst_73 : f32 to vector<1x196xf32>
    %106 = arith.addf %104, %105 : vector<1x196xf32>
    %cst_74 = arith.constant 0.0714285746 : f32
    %107 = vector.broadcast %cst_74 : f32 to vector<1x196xf32>
    %108 = arith.mulf %106, %107 : vector<1x196xf32>
    %109 = math.floor %108 : vector<1x196xf32>
    %cst_75 = arith.constant 1.400000e+01 : f32
    %110 = vector.broadcast %cst_75 : f32 to vector<1x196xf32>
    %111 = arith.mulf %109, %110 : vector<1x196xf32>
    %112 = arith.subf %104, %111 : vector<1x196xf32>
    %cst_76 = arith.constant 5.000000e-01 : f32
    %113 = vector.broadcast %cst_76 : f32 to vector<1x196xf32>
    %114 = arith.cmpf oge, %112, %113 : vector<1x196xf32>
    %cst_77 = arith.constant 1.250000e+01 : f32
    %115 = vector.broadcast %cst_77 : f32 to vector<1x196xf32>
    %116 = arith.cmpf ole, %112, %115 : vector<1x196xf32>
    %c0_78 = arith.constant 0 : index
    %c0_79 = arith.constant 0 : index
    %117 = vector.load %arg20[%c0_78, %c0_79] : memref<8x226xf32, #tpu.memory_space<vmem>>, vector<8x196xf32>
    %cst_80 = arith.constant 0.000000e+00 : f32
    %118 = vector.shape_cast %114 : vector<1x196xi1> to vector<1x196xi1>
    %119 = vector.broadcast %118 : vector<1x196xi1> to vector<8x196xi1>
    %120 = vector.broadcast %cst_80 : f32 to vector<8x196xf32>
    %121 = arith.select %119, %117, %120 : vector<8x196xi1>, vector<8x196xf32>
    %c0_81 = arith.constant 0 : index
    %c0_82 = arith.constant 0 : index
    %122 = vector.load %arg22[%c0_81, %c0_82] : memref<108x784xf32, #tpu.memory_space<vmem>>, vector<8x196xf32>
    tpu.vector_store %arg22[%c0_81, %c0_82], %121 {strides = array<i32>} : memref<108x784xf32, #tpu.memory_space<vmem>>, vector<8x196xf32>,
    %c0_83 = arith.constant 0 : index
    %c1_84 = arith.constant 1 : index
    %123 = vector.load %arg20[%c0_83, %c1_84] : memref<8x226xf32, #tpu.memory_space<vmem>>, vector<8x196xf32>
    %c8_85 = arith.constant 8 : index
    %c0_86 = arith.constant 0 : index
    %124 = vector.load %arg22[%c8_85, %c0_86] : memref<108x784xf32, #tpu.memory_space<vmem>>, vector<8x196xf32>
    tpu.vector_store %arg22[%c8_85, %c0_86], %123 {strides = array<i32>} : memref<108x784xf32, #tpu.memory_space<vmem>>, vector<8x196xf32>,
    %c0_87 = arith.constant 0 : index
    %c2_88 = arith.constant 2 : index
    %125 = vector.load %arg20[%c0_87, %c2_88] : memref<8x226xf32, #tpu.memory_space<vmem>>, vector<8x196xf32>
    %cst_89 = arith.constant 0.000000e+00 : f32
    %126 = vector.shape_cast %116 : vector<1x196xi1> to vector<1x196xi1>
    %127 = vector.broadcast %126 : vector<1x196xi1> to vector<8x196xi1>
    %128 = vector.broadcast %cst_89 : f32 to vector<8x196xf32>
    %129 = arith.select %127, %125, %128 : vector<8x196xi1>, vector<8x196xf32>
    %c16_90 = arith.constant 16 : index
    %c0_91 = arith.constant 0 : index
    %130 = vector.load %arg22[%c16_90, %c0_91] : memref<108x784xf32, #tpu.memory_space<vmem>>, vector<8x196xf32>
    tpu.vector_store %arg22[%c16_90, %c0_91], %129 {strides = array<i32>} : memref<108x784xf32, #tpu.memory_space<vmem>>, vector<8x196xf32>,
    %c0_92 = arith.constant 0 : index
    %c14_93 = arith.constant 14 : index
    %131 = vector.load %arg20[%c0_92, %c14_93] : memref<8x226xf32, #tpu.memory_space<vmem>>, vector<8x196xf32>
    %cst_94 = arith.constant 0.000000e+00 : f32
    %132 = vector.shape_cast %114 : vector<1x196xi1> to vector<1x196xi1>
    %133 = vector.broadcast %132 : vector<1x196xi1> to vector<8x196xi1>
    %134 = vector.broadcast %cst_94 : f32 to vector<8x196xf32>
    %135 = arith.select %133, %131, %134 : vector<8x196xi1>, vector<8x196xf32>
    %c24 = arith.constant 24 : index
    %c0_95 = arith.constant 0 : index
    %136 = vector.load %arg22[%c24, %c0_95] : memref<108x784xf32, #tpu.memory_space<vmem>>, vector<8x196xf32>
    tpu.vector_store %arg22[%c24, %c0_95], %135 {strides = array<i32>} : memref<108x784xf32, #tpu.memory_space<vmem>>, vector<8x196xf32>,
    %c0_96 = arith.constant 0 : index
    %c15_97 = arith.constant 15 : index
    %137 = vector.load %arg20[%c0_96, %c15_97] : memref<8x226xf32, #tpu.memory_space<vmem>>, vector<8x196xf32>
    %c32 = arith.constant 32 : index
    %c0_98 = arith.constant 0 : index
    %138 = vector.load %arg22[%c32, %c0_98] : memref<108x784xf32, #tpu.memory_space<vmem>>, vector<8x196xf32>
    tpu.vector_store %arg22[%c32, %c0_98], %137 {strides = array<i32>} : memref<108x784xf32, #tpu.memory_space<vmem>>, vector<8x196xf32>,
    %c0_99 = arith.constant 0 : index
    %c16_100 = arith.constant 16 : index
    %139 = vector.load %arg20[%c0_99, %c16_100] : memref<8x226xf32, #tpu.memory_space<vmem>>, vector<8x196xf32>
    %cst_101 = arith.constant 0.000000e+00 : f32
    %140 = vector.shape_cast %116 : vector<1x196xi1> to vector<1x196xi1>
    %141 = vector.broadcast %140 : vector<1x196xi1> to vector<8x196xi1>
    %142 = vector.broadcast %cst_101 : f32 to vector<8x196xf32>
    %143 = arith.select %141, %139, %142 : vector<8x196xi1>, vector<8x196xf32>
    %c40 = arith.constant 40 : index
    %c0_102 = arith.constant 0 : index
    %144 = vector.load %arg22[%c40, %c0_102] : memref<108x784xf32, #tpu.memory_space<vmem>>, vector<8x196xf32>
    tpu.vector_store %arg22[%c40, %c0_102], %143 {strides = array<i32>} : memref<108x784xf32, #tpu.memory_space<vmem>>, vector<8x196xf32>,
    %c0_103 = arith.constant 0 : index
    %c28_104 = arith.constant 28 : index
    %145 = vector.load %arg20[%c0_103, %c28_104] : memref<8x226xf32, #tpu.memory_space<vmem>>, vector<8x196xf32>
    %cst_105 = arith.constant 0.000000e+00 : f32
    %146 = vector.shape_cast %114 : vector<1x196xi1> to vector<1x196xi1>
    %147 = vector.broadcast %146 : vector<1x196xi1> to vector<8x196xi1>
    %148 = vector.broadcast %cst_105 : f32 to vector<8x196xf32>
    %149 = arith.select %147, %145, %148 : vector<8x196xi1>, vector<8x196xf32>
    %c48 = arith.constant 48 : index
    %c0_106 = arith.constant 0 : index
    %150 = vector.load %arg22[%c48, %c0_106] : memref<108x784xf32, #tpu.memory_space<vmem>>, vector<8x196xf32>
    tpu.vector_store %arg22[%c48, %c0_106], %149 {strides = array<i32>} : memref<108x784xf32, #tpu.memory_space<vmem>>, vector<8x196xf32>,
    %c0_107 = arith.constant 0 : index
    %c29_108 = arith.constant 29 : index
    %151 = vector.load %arg20[%c0_107, %c29_108] : memref<8x226xf32, #tpu.memory_space<vmem>>, vector<8x196xf32>
    %c56_109 = arith.constant 56 : index
    %c0_110 = arith.constant 0 : index
    %152 = vector.load %arg22[%c56_109, %c0_110] : memref<108x784xf32, #tpu.memory_space<vmem>>, vector<8x196xf32>
    tpu.vector_store %arg22[%c56_109, %c0_110], %151 {strides = array<i32>} : memref<108x784xf32, #tpu.memory_space<vmem>>, vector<8x196xf32>,
    %c0_111 = arith.constant 0 : index
    %c30_112 = arith.constant 30 : index
    %153 = vector.load %arg20[%c0_111, %c30_112] : memref<8x226xf32, #tpu.memory_space<vmem>>, vector<8x196xf32>
    %cst_113 = arith.constant 0.000000e+00 : f32
    %154 = vector.shape_cast %116 : vector<1x196xi1> to vector<1x196xi1>
    %155 = vector.broadcast %154 : vector<1x196xi1> to vector<8x196xi1>
    %156 = vector.broadcast %cst_113 : f32 to vector<8x196xf32>
    %157 = arith.select %155, %153, %156 : vector<8x196xi1>, vector<8x196xf32>
    %c64 = arith.constant 64 : index
    %c0_114 = arith.constant 0 : index
    %158 = vector.load %arg22[%c64, %c0_114] : memref<108x784xf32, #tpu.memory_space<vmem>>, vector<8x196xf32>
    tpu.vector_store %arg22[%c64, %c0_114], %157 {strides = array<i32>} : memref<108x784xf32, #tpu.memory_space<vmem>>, vector<8x196xf32>,
    %c0_115 = arith.constant 0 : index
    %c0_116 = arith.constant 0 : index
    %159 = vector.load %arg22[%c0_115, %c0_116] : memref<108x784xf32, #tpu.memory_space<vmem>>, vector<72x196xf32>
    %c0_117 = arith.constant 0 : index
    %c3 = arith.constant 3 : index
    %160 = vector.load %arg5[%c0_117, %c3] : memref<16x9xf32, #tpu.memory_space<vmem>>, vector<12x1xf32>
    %c0_118 = arith.constant 0 : index
    %c4_119 = arith.constant 4 : index
    %161 = vector.load %arg5[%c0_118, %c4_119] : memref<16x9xf32, #tpu.memory_space<vmem>>, vector<12x1xf32>
    %c0_120 = arith.constant 0 : index
    %c5 = arith.constant 5 : index
    %162 = vector.load %arg5[%c0_120, %c5] : memref<16x9xf32, #tpu.memory_space<vmem>>, vector<12x1xf32>
    %c0_121 = arith.constant 0 : index
    %c0_122 = arith.constant 0 : index
    %163 = vector.load %arg3[%c0_121, %c0_122] : memref<12x72xf32, #tpu.memory_space<vmem>>, vector<12x72xf32>
    %cst_123 = arith.constant dense<0.000000e+00> : vector<12x196xf32>
    %164 = tpu.matmul %163, %159, %cst_123 {dimension_numbers = #tpu.dot_dimension_numbers<[1], [0], [0], [1], [0, 0, 1, 1], [], []>} : vector<12x72xf32>, vector<72x196xf32>, vector<12x196xf32> -> vector<12x196xf32>
    %165 = vector.broadcast %160 : vector<12x1xf32> to vector<12x196xf32>
    %166 = arith.addf %164, %165 : vector<12x196xf32>
    %c0_124 = arith.constant 0 : index
    %c0_125 = arith.constant 0 : index
    %c0_126 = arith.constant 0 : index
    %167 = vector.load %arg15[%c0_124, %c0_125, %c0_126] : memref<1x12x196xf32, #tpu.memory_space<vmem>>, vector<1x12x196xf32>
    %168 = vector.shape_cast %167 : vector<1x12x196xf32> to vector<12x196xf32>
    %169 = vector.shape_cast %166 : vector<12x196xf32> to vector<1x12x196xf32>
    tpu.vector_store %arg15[%c0_124, %c0_125, %c0_126], %169 {strides = array<i32>} : memref<1x12x196xf32, #tpu.memory_space<vmem>>, vector<1x12x196xf32>,
    %170 = vector.broadcast %161 : vector<12x1xf32> to vector<12x196xf32>
    %171 = arith.mulf %166, %170 : vector<12x196xf32>
    %172 = vector.broadcast %162 : vector<12x1xf32> to vector<12x196xf32>
    %173 = arith.addf %171, %172 : vector<12x196xf32>
    %cst_127 = arith.constant 0.000000e+00 : f32
    %174 = vector.broadcast %cst_127 : f32 to vector<12x196xf32>
    %175 = arith.cmpf ogt, %173, %174 : vector<12x196xf32>
    %cst_128 = arith.constant 0.00999999977 : f32
    %176 = vector.broadcast %cst_128 : f32 to vector<12x196xf32>
    %177 = arith.mulf %176, %173 : vector<12x196xf32>
    %178 = arith.select %175, %173, %177 : vector<12x196xi1>, vector<12x196xf32>
    %c0_129 = arith.constant 0 : index
    %c0_130 = arith.constant 0 : index
    %c0_131 = arith.constant 0 : index
    %179 = vector.load %arg16[%c0_129, %c0_130, %c0_131] : memref<1x12x196xf32, #tpu.memory_space<vmem>>, vector<1x12x196xf32>
    %180 = vector.shape_cast %179 : vector<1x12x196xf32> to vector<12x196xf32>
    %181 = vector.shape_cast %178 : vector<12x196xf32> to vector<1x12x196xf32>
    tpu.vector_store %arg16[%c0_129, %c0_130, %c0_131], %181 {strides = array<i32>} : memref<1x12x196xf32, #tpu.memory_space<vmem>>, vector<1x12x196xf32>,
    %c195_i32 = arith.constant 195 : i32
    %182 = tpu.dynamic_rotate %178 by %c195_i32 dim 1 : vector<12x196xf32>, i32 -> vector<12x196xf32>
    %183 = arith.maximumf %178, %182 : vector<12x196xf32>
    %c182_i32 = arith.constant 182 : i32
    %184 = tpu.dynamic_rotate %178 by %c182_i32 dim 1 : vector<12x196xf32>, i32 -> vector<12x196xf32>
    %c181_i32 = arith.constant 181 : i32
    %185 = tpu.dynamic_rotate %178 by %c181_i32 dim 1 : vector<12x196xf32>, i32 -> vector<12x196xf32>
    %186 = arith.maximumf %184, %185 : vector<12x196xf32>
    %187 = arith.maximumf %183, %186 : vector<12x196xf32>
    %188 = arith.truncf %187 : vector<12x196xf32> to vector<12x196xbf16>
    %c0_132 = arith.constant 0 : index
    %c0_133 = arith.constant 0 : index
    %189 = vector.load %arg7[%c0_132, %c0_133] : memref<196x49xbf16, #tpu.memory_space<vmem>>, vector<196x49xbf16>
    %cst_134 = arith.constant dense<0.000000e+00> : vector<12x49xf32>
    %190 = tpu.matmul %188, %189, %cst_134 {dimension_numbers = #tpu.dot_dimension_numbers<[1], [0], [0], [1], [0, 0, 1, 1], [], []>} : vector<12x196xbf16>, vector<196x49xbf16>, vector<12x49xf32> -> vector<12x49xf32>
    %c0_135 = arith.constant 0 : index
    %c8_136 = arith.constant 8 : index
    %191 = vector.load %arg21[%c0_135, %c8_136] : memref<12x65xf32, #tpu.memory_space<vmem>>, vector<12x49xf32>
    tpu.vector_store %arg21[%c0_135, %c8_136], %190 {strides = array<i32>} : memref<12x65xf32, #tpu.memory_space<vmem>>, vector<12x49xf32>,
    %192 = tpu.iota {dimensions = array<i32: 1>} : vector<1x49xi32>
    %193 = arith.sitofp %192 : vector<1x49xi32> to vector<1x49xf32>
    %cst_137 = arith.constant 5.000000e-01 : f32
    %194 = vector.broadcast %cst_137 : f32 to vector<1x49xf32>
    %195 = arith.addf %193, %194 : vector<1x49xf32>
    %cst_138 = arith.constant 0.142857149 : f32
    %196 = vector.broadcast %cst_138 : f32 to vector<1x49xf32>
    %197 = arith.mulf %195, %196 : vector<1x49xf32>
    %198 = math.floor %197 : vector<1x49xf32>
    %cst_139 = arith.constant 7.000000e+00 : f32
    %199 = vector.broadcast %cst_139 : f32 to vector<1x49xf32>
    %200 = arith.mulf %198, %199 : vector<1x49xf32>
    %201 = arith.subf %193, %200 : vector<1x49xf32>
    %cst_140 = arith.constant 5.000000e-01 : f32
    %202 = vector.broadcast %cst_140 : f32 to vector<1x49xf32>
    %203 = arith.cmpf oge, %201, %202 : vector<1x49xf32>
    %cst_141 = arith.constant 5.500000e+00 : f32
    %204 = vector.broadcast %cst_141 : f32 to vector<1x49xf32>
    %205 = arith.cmpf ole, %201, %204 : vector<1x49xf32>
    %c0_142 = arith.constant 0 : index
    %c0_143 = arith.constant 0 : index
    %206 = vector.load %arg21[%c0_142, %c0_143] : memref<12x65xf32, #tpu.memory_space<vmem>>, vector<12x49xf32>
    %cst_144 = arith.constant 0.000000e+00 : f32
    %207 = vector.shape_cast %203 : vector<1x49xi1> to vector<1x49xi1>
    %208 = vector.broadcast %207 : vector<1x49xi1> to vector<12x49xi1>
    %209 = vector.broadcast %cst_144 : f32 to vector<12x49xf32>
    %210 = arith.select %208, %206, %209 : vector<12x49xi1>, vector<12x49xf32>
    %c0_145 = arith.constant 0 : index
    %c0_146 = arith.constant 0 : index
    %211 = vector.load %arg22[%c0_145, %c0_146] : memref<108x784xf32, #tpu.memory_space<vmem>>, vector<12x49xf32>
    tpu.vector_store %arg22[%c0_145, %c0_146], %210 {strides = array<i32>} : memref<108x784xf32, #tpu.memory_space<vmem>>, vector<12x49xf32>,
    %c0_147 = arith.constant 0 : index
    %c1_148 = arith.constant 1 : index
    %212 = vector.load %arg21[%c0_147, %c1_148] : memref<12x65xf32, #tpu.memory_space<vmem>>, vector<12x49xf32>
    %c12_149 = arith.constant 12 : index
    %c0_150 = arith.constant 0 : index
    %213 = vector.load %arg22[%c12_149, %c0_150] : memref<108x784xf32, #tpu.memory_space<vmem>>, vector<12x49xf32>
    tpu.vector_store %arg22[%c12_149, %c0_150], %212 {strides = array<i32>} : memref<108x784xf32, #tpu.memory_space<vmem>>, vector<12x49xf32>,
    %c0_151 = arith.constant 0 : index
    %c2_152 = arith.constant 2 : index
    %214 = vector.load %arg21[%c0_151, %c2_152] : memref<12x65xf32, #tpu.memory_space<vmem>>, vector<12x49xf32>
    %cst_153 = arith.constant 0.000000e+00 : f32
    %215 = vector.shape_cast %205 : vector<1x49xi1> to vector<1x49xi1>
    %216 = vector.broadcast %215 : vector<1x49xi1> to vector<12x49xi1>
    %217 = vector.broadcast %cst_153 : f32 to vector<12x49xf32>
    %218 = arith.select %216, %214, %217 : vector<12x49xi1>, vector<12x49xf32>
    %c24_154 = arith.constant 24 : index
    %c0_155 = arith.constant 0 : index
    %219 = vector.load %arg22[%c24_154, %c0_155] : memref<108x784xf32, #tpu.memory_space<vmem>>, vector<12x49xf32>
    tpu.vector_store %arg22[%c24_154, %c0_155], %218 {strides = array<i32>} : memref<108x784xf32, #tpu.memory_space<vmem>>, vector<12x49xf32>,
    %c0_156 = arith.constant 0 : index
    %c7 = arith.constant 7 : index
    %220 = vector.load %arg21[%c0_156, %c7] : memref<12x65xf32, #tpu.memory_space<vmem>>, vector<12x49xf32>
    %cst_157 = arith.constant 0.000000e+00 : f32
    %221 = vector.shape_cast %203 : vector<1x49xi1> to vector<1x49xi1>
    %222 = vector.broadcast %221 : vector<1x49xi1> to vector<12x49xi1>
    %223 = vector.broadcast %cst_157 : f32 to vector<12x49xf32>
    %224 = arith.select %222, %220, %223 : vector<12x49xi1>, vector<12x49xf32>
    %c36 = arith.constant 36 : index
    %c0_158 = arith.constant 0 : index
    %225 = vector.load %arg22[%c36, %c0_158] : memref<108x784xf32, #tpu.memory_space<vmem>>, vector<12x49xf32>
    tpu.vector_store %arg22[%c36, %c0_158], %224 {strides = array<i32>} : memref<108x784xf32, #tpu.memory_space<vmem>>, vector<12x49xf32>,
    %c0_159 = arith.constant 0 : index
    %c8_160 = arith.constant 8 : index
    %226 = vector.load %arg21[%c0_159, %c8_160] : memref<12x65xf32, #tpu.memory_space<vmem>>, vector<12x49xf32>
    %c48_161 = arith.constant 48 : index
    %c0_162 = arith.constant 0 : index
    %227 = vector.load %arg22[%c48_161, %c0_162] : memref<108x784xf32, #tpu.memory_space<vmem>>, vector<12x49xf32>
    tpu.vector_store %arg22[%c48_161, %c0_162], %226 {strides = array<i32>} : memref<108x784xf32, #tpu.memory_space<vmem>>, vector<12x49xf32>,
    %c0_163 = arith.constant 0 : index
    %c9 = arith.constant 9 : index
    %228 = vector.load %arg21[%c0_163, %c9] : memref<12x65xf32, #tpu.memory_space<vmem>>, vector<12x49xf32>
    %cst_164 = arith.constant 0.000000e+00 : f32
    %229 = vector.shape_cast %205 : vector<1x49xi1> to vector<1x49xi1>
    %230 = vector.broadcast %229 : vector<1x49xi1> to vector<12x49xi1>
    %231 = vector.broadcast %cst_164 : f32 to vector<12x49xf32>
    %232 = arith.select %230, %228, %231 : vector<12x49xi1>, vector<12x49xf32>
    %c60 = arith.constant 60 : index
    %c0_165 = arith.constant 0 : index
    %233 = vector.load %arg22[%c60, %c0_165] : memref<108x784xf32, #tpu.memory_space<vmem>>, vector<12x49xf32>
    tpu.vector_store %arg22[%c60, %c0_165], %232 {strides = array<i32>} : memref<108x784xf32, #tpu.memory_space<vmem>>, vector<12x49xf32>,
    %c0_166 = arith.constant 0 : index
    %c14_167 = arith.constant 14 : index
    %234 = vector.load %arg21[%c0_166, %c14_167] : memref<12x65xf32, #tpu.memory_space<vmem>>, vector<12x49xf32>
    %cst_168 = arith.constant 0.000000e+00 : f32
    %235 = vector.shape_cast %203 : vector<1x49xi1> to vector<1x49xi1>
    %236 = vector.broadcast %235 : vector<1x49xi1> to vector<12x49xi1>
    %237 = vector.broadcast %cst_168 : f32 to vector<12x49xf32>
    %238 = arith.select %236, %234, %237 : vector<12x49xi1>, vector<12x49xf32>
    %c72 = arith.constant 72 : index
    %c0_169 = arith.constant 0 : index
    %239 = vector.load %arg22[%c72, %c0_169] : memref<108x784xf32, #tpu.memory_space<vmem>>, vector<12x49xf32>
    tpu.vector_store %arg22[%c72, %c0_169], %238 {strides = array<i32>} : memref<108x784xf32, #tpu.memory_space<vmem>>, vector<12x49xf32>,
    %c0_170 = arith.constant 0 : index
    %c15_171 = arith.constant 15 : index
    %240 = vector.load %arg21[%c0_170, %c15_171] : memref<12x65xf32, #tpu.memory_space<vmem>>, vector<12x49xf32>
    %c84 = arith.constant 84 : index
    %c0_172 = arith.constant 0 : index
    %241 = vector.load %arg22[%c84, %c0_172] : memref<108x784xf32, #tpu.memory_space<vmem>>, vector<12x49xf32>
    tpu.vector_store %arg22[%c84, %c0_172], %240 {strides = array<i32>} : memref<108x784xf32, #tpu.memory_space<vmem>>, vector<12x49xf32>,
    %c0_173 = arith.constant 0 : index
    %c16_174 = arith.constant 16 : index
    %242 = vector.load %arg21[%c0_173, %c16_174] : memref<12x65xf32, #tpu.memory_space<vmem>>, vector<12x49xf32>
    %cst_175 = arith.constant 0.000000e+00 : f32
    %243 = vector.shape_cast %205 : vector<1x49xi1> to vector<1x49xi1>
    %244 = vector.broadcast %243 : vector<1x49xi1> to vector<12x49xi1>
    %245 = vector.broadcast %cst_175 : f32 to vector<12x49xf32>
    %246 = arith.select %244, %242, %245 : vector<12x49xi1>, vector<12x49xf32>
    %c96 = arith.constant 96 : index
    %c0_176 = arith.constant 0 : index
    %247 = vector.load %arg22[%c96, %c0_176] : memref<108x784xf32, #tpu.memory_space<vmem>>, vector<12x49xf32>
    tpu.vector_store %arg22[%c96, %c0_176], %246 {strides = array<i32>} : memref<108x784xf32, #tpu.memory_space<vmem>>, vector<12x49xf32>,
    %c0_177 = arith.constant 0 : index
    %c0_178 = arith.constant 0 : index
    %248 = vector.load %arg22[%c0_177, %c0_178] : memref<108x784xf32, #tpu.memory_space<vmem>>, vector<108x49xf32>
    %c0_179 = arith.constant 0 : index
    %c6_180 = arith.constant 6 : index
    %249 = vector.load %arg5[%c0_179, %c6_180] : memref<16x9xf32, #tpu.memory_space<vmem>>, vector<16x1xf32>
    %c0_181 = arith.constant 0 : index
    %c7_182 = arith.constant 7 : index
    %250 = vector.load %arg5[%c0_181, %c7_182] : memref<16x9xf32, #tpu.memory_space<vmem>>, vector<16x1xf32>
    %c0_183 = arith.constant 0 : index
    %c8_184 = arith.constant 8 : index
    %251 = vector.load %arg5[%c0_183, %c8_184] : memref<16x9xf32, #tpu.memory_space<vmem>>, vector<16x1xf32>
    %c0_185 = arith.constant 0 : index
    %c0_186 = arith.constant 0 : index
    %252 = vector.load %arg4[%c0_185, %c0_186] : memref<16x108xf32, #tpu.memory_space<vmem>>, vector<16x108xf32>
    %cst_187 = arith.constant dense<0.000000e+00> : vector<16x49xf32>
    %253 = tpu.matmul %252, %248, %cst_187 {dimension_numbers = #tpu.dot_dimension_numbers<[1], [0], [0], [1], [0, 0, 1, 1], [], []>} : vector<16x108xf32>, vector<108x49xf32>, vector<16x49xf32> -> vector<16x49xf32>
    %254 = vector.broadcast %249 : vector<16x1xf32> to vector<16x49xf32>
    %255 = arith.addf %253, %254 : vector<16x49xf32>
    %c0_188 = arith.constant 0 : index
    %c0_189 = arith.constant 0 : index
    %c0_190 = arith.constant 0 : index
    %256 = vector.load %arg17[%c0_188, %c0_189, %c0_190] : memref<1x16x49xf32, #tpu.memory_space<vmem>>, vector<1x16x49xf32>
    %257 = vector.shape_cast %256 : vector<1x16x49xf32> to vector<16x49xf32>
    %258 = vector.shape_cast %255 : vector<16x49xf32> to vector<1x16x49xf32>
    tpu.vector_store %arg17[%c0_188, %c0_189, %c0_190], %258 {strides = array<i32>} : memref<1x16x49xf32, #tpu.memory_space<vmem>>, vector<1x16x49xf32>,
    %259 = vector.broadcast %250 : vector<16x1xf32> to vector<16x49xf32>
    %260 = arith.mulf %255, %259 : vector<16x49xf32>
    %261 = vector.broadcast %251 : vector<16x1xf32> to vector<16x49xf32>
    %262 = arith.addf %260, %261 : vector<16x49xf32>
    %cst_191 = arith.constant 0.000000e+00 : f32
    %263 = vector.broadcast %cst_191 : f32 to vector<16x49xf32>
    %264 = arith.cmpf ogt, %262, %263 : vector<16x49xf32>
    %cst_192 = arith.constant 0.00999999977 : f32
    %265 = vector.broadcast %cst_192 : f32 to vector<16x49xf32>
    %266 = arith.mulf %265, %262 : vector<16x49xf32>
    %267 = arith.select %264, %262, %266 : vector<16x49xi1>, vector<16x49xf32>
    %c0_193 = arith.constant 0 : index
    %c0_194 = arith.constant 0 : index
    %c0_195 = arith.constant 0 : index
    %268 = vector.load %arg18[%c0_193, %c0_194, %c0_195] : memref<1x16x49xf32, #tpu.memory_space<vmem>>, vector<1x16x49xf32>
    %269 = vector.shape_cast %268 : vector<1x16x49xf32> to vector<16x49xf32>
    %270 = vector.shape_cast %267 : vector<16x49xf32> to vector<1x16x49xf32>
    tpu.vector_store %arg18[%c0_193, %c0_194, %c0_195], %270 {strides = array<i32>} : memref<1x16x49xf32, #tpu.memory_space<vmem>>, vector<1x16x49xf32>,
    %c48_i32 = arith.constant 48 : i32
    %271 = tpu.dynamic_rotate %267 by %c48_i32 dim 1 : vector<16x49xf32>, i32 -> vector<16x49xf32>
    %272 = arith.maximumf %267, %271 : vector<16x49xf32>
    %c42_i32 = arith.constant 42 : i32
    %273 = tpu.dynamic_rotate %267 by %c42_i32 dim 1 : vector<16x49xf32>, i32 -> vector<16x49xf32>
    %c41_i32 = arith.constant 41 : i32
    %274 = tpu.dynamic_rotate %267 by %c41_i32 dim 1 : vector<16x49xf32>, i32 -> vector<16x49xf32>
    %275 = arith.maximumf %273, %274 : vector<16x49xf32>
    %276 = arith.maximumf %272, %275 : vector<16x49xf32>
    %277 = vector.extract_strided_slice %276 {offsets = [0, 0], sizes = [1, 49], strides = [1, 1]} : vector<16x49xf32> to vector<1x49xf32>
    %c0_196 = arith.constant 0 : index
    %c0_197 = arith.constant 0 : index
    %278 = vector.load %arg23[%c0_196, %c0_197] : memref<2x392xf32, #tpu.memory_space<vmem>>, vector<1x49xf32>
    tpu.vector_store %arg23[%c0_196, %c0_197], %277 {strides = array<i32>} : memref<2x392xf32, #tpu.memory_space<vmem>>, vector<1x49xf32>,
    %279 = vector.extract_strided_slice %276 {offsets = [1, 0], sizes = [1, 49], strides = [1, 1]} : vector<16x49xf32> to vector<1x49xf32>
    %c0_198 = arith.constant 0 : index
    %c49 = arith.constant 49 : index
    %280 = vector.load %arg23[%c0_198, %c49] : memref<2x392xf32, #tpu.memory_space<vmem>>, vector<1x49xf32>
    tpu.vector_store %arg23[%c0_198, %c49], %279 {strides = array<i32>} : memref<2x392xf32, #tpu.memory_space<vmem>>, vector<1x49xf32>,
    %281 = vector.extract_strided_slice %276 {offsets = [2, 0], sizes = [1, 49], strides = [1, 1]} : vector<16x49xf32> to vector<1x49xf32>
    %c0_199 = arith.constant 0 : index
    %c98 = arith.constant 98 : index
    %282 = vector.load %arg23[%c0_199, %c98] : memref<2x392xf32, #tpu.memory_space<vmem>>, vector<1x49xf32>
    tpu.vector_store %arg23[%c0_199, %c98], %281 {strides = array<i32>} : memref<2x392xf32, #tpu.memory_space<vmem>>, vector<1x49xf32>,
    %283 = vector.extract_strided_slice %276 {offsets = [3, 0], sizes = [1, 49], strides = [1, 1]} : vector<16x49xf32> to vector<1x49xf32>
    %c0_200 = arith.constant 0 : index
    %c147 = arith.constant 147 : index
    %284 = vector.load %arg23[%c0_200, %c147] : memref<2x392xf32, #tpu.memory_space<vmem>>, vector<1x49xf32>
    tpu.vector_store %arg23[%c0_200, %c147], %283 {strides = array<i32>} : memref<2x392xf32, #tpu.memory_space<vmem>>, vector<1x49xf32>,
    %285 = vector.extract_strided_slice %276 {offsets = [4, 0], sizes = [1, 49], strides = [1, 1]} : vector<16x49xf32> to vector<1x49xf32>
    %c0_201 = arith.constant 0 : index
    %c196 = arith.constant 196 : index
    %286 = vector.load %arg23[%c0_201, %c196] : memref<2x392xf32, #tpu.memory_space<vmem>>, vector<1x49xf32>
    tpu.vector_store %arg23[%c0_201, %c196], %285 {strides = array<i32>} : memref<2x392xf32, #tpu.memory_space<vmem>>, vector<1x49xf32>,
    %287 = vector.extract_strided_slice %276 {offsets = [5, 0], sizes = [1, 49], strides = [1, 1]} : vector<16x49xf32> to vector<1x49xf32>
    %c0_202 = arith.constant 0 : index
    %c245 = arith.constant 245 : index
    %288 = vector.load %arg23[%c0_202, %c245] : memref<2x392xf32, #tpu.memory_space<vmem>>, vector<1x49xf32>
    tpu.vector_store %arg23[%c0_202, %c245], %287 {strides = array<i32>} : memref<2x392xf32, #tpu.memory_space<vmem>>, vector<1x49xf32>,
    %289 = vector.extract_strided_slice %276 {offsets = [6, 0], sizes = [1, 49], strides = [1, 1]} : vector<16x49xf32> to vector<1x49xf32>
    %c0_203 = arith.constant 0 : index
    %c294 = arith.constant 294 : index
    %290 = vector.load %arg23[%c0_203, %c294] : memref<2x392xf32, #tpu.memory_space<vmem>>, vector<1x49xf32>
    tpu.vector_store %arg23[%c0_203, %c294], %289 {strides = array<i32>} : memref<2x392xf32, #tpu.memory_space<vmem>>, vector<1x49xf32>,
    %291 = vector.extract_strided_slice %276 {offsets = [7, 0], sizes = [1, 49], strides = [1, 1]} : vector<16x49xf32> to vector<1x49xf32>
    %c0_204 = arith.constant 0 : index
    %c343 = arith.constant 343 : index
    %292 = vector.load %arg23[%c0_204, %c343] : memref<2x392xf32, #tpu.memory_space<vmem>>, vector<1x49xf32>
    tpu.vector_store %arg23[%c0_204, %c343], %291 {strides = array<i32>} : memref<2x392xf32, #tpu.memory_space<vmem>>, vector<1x49xf32>,
    %293 = vector.extract_strided_slice %276 {offsets = [8, 0], sizes = [1, 49], strides = [1, 1]} : vector<16x49xf32> to vector<1x49xf32>
    %c1_205 = arith.constant 1 : index
    %c0_206 = arith.constant 0 : index
    %294 = vector.load %arg23[%c1_205, %c0_206] : memref<2x392xf32, #tpu.memory_space<vmem>>, vector<1x49xf32>
    tpu.vector_store %arg23[%c1_205, %c0_206], %293 {strides = array<i32>} : memref<2x392xf32, #tpu.memory_space<vmem>>, vector<1x49xf32>,
    %295 = vector.extract_strided_slice %276 {offsets = [9, 0], sizes = [1, 49], strides = [1, 1]} : vector<16x49xf32> to vector<1x49xf32>
    %c1_207 = arith.constant 1 : index
    %c49_208 = arith.constant 49 : index
    %296 = vector.load %arg23[%c1_207, %c49_208] : memref<2x392xf32, #tpu.memory_space<vmem>>, vector<1x49xf32>
    tpu.vector_store %arg23[%c1_207, %c49_208], %295 {strides = array<i32>} : memref<2x392xf32, #tpu.memory_space<vmem>>, vector<1x49xf32>,
    %297 = vector.extract_strided_slice %276 {offsets = [10, 0], sizes = [1, 49], strides = [1, 1]} : vector<16x49xf32> to vector<1x49xf32>
    %c1_209 = arith.constant 1 : index
    %c98_210 = arith.constant 98 : index
    %298 = vector.load %arg23[%c1_209, %c98_210] : memref<2x392xf32, #tpu.memory_space<vmem>>, vector<1x49xf32>
    tpu.vector_store %arg23[%c1_209, %c98_210], %297 {strides = array<i32>} : memref<2x392xf32, #tpu.memory_space<vmem>>, vector<1x49xf32>,
    %299 = vector.extract_strided_slice %276 {offsets = [11, 0], sizes = [1, 49], strides = [1, 1]} : vector<16x49xf32> to vector<1x49xf32>
    %c1_211 = arith.constant 1 : index
    %c147_212 = arith.constant 147 : index
    %300 = vector.load %arg23[%c1_211, %c147_212] : memref<2x392xf32, #tpu.memory_space<vmem>>, vector<1x49xf32>
    tpu.vector_store %arg23[%c1_211, %c147_212], %299 {strides = array<i32>} : memref<2x392xf32, #tpu.memory_space<vmem>>, vector<1x49xf32>,
    %301 = vector.extract_strided_slice %276 {offsets = [12, 0], sizes = [1, 49], strides = [1, 1]} : vector<16x49xf32> to vector<1x49xf32>
    %c1_213 = arith.constant 1 : index
    %c196_214 = arith.constant 196 : index
    %302 = vector.load %arg23[%c1_213, %c196_214] : memref<2x392xf32, #tpu.memory_space<vmem>>, vector<1x49xf32>
    tpu.vector_store %arg23[%c1_213, %c196_214], %301 {strides = array<i32>} : memref<2x392xf32, #tpu.memory_space<vmem>>, vector<1x49xf32>,
    %303 = vector.extract_strided_slice %276 {offsets = [13, 0], sizes = [1, 49], strides = [1, 1]} : vector<16x49xf32> to vector<1x49xf32>
    %c1_215 = arith.constant 1 : index
    %c245_216 = arith.constant 245 : index
    %304 = vector.load %arg23[%c1_215, %c245_216] : memref<2x392xf32, #tpu.memory_space<vmem>>, vector<1x49xf32>
    tpu.vector_store %arg23[%c1_215, %c245_216], %303 {strides = array<i32>} : memref<2x392xf32, #tpu.memory_space<vmem>>, vector<1x49xf32>,
    %305 = vector.extract_strided_slice %276 {offsets = [14, 0], sizes = [1, 49], strides = [1, 1]} : vector<16x49xf32> to vector<1x49xf32>
    %c1_217 = arith.constant 1 : index
    %c294_218 = arith.constant 294 : index
    %306 = vector.load %arg23[%c1_217, %c294_218] : memref<2x392xf32, #tpu.memory_space<vmem>>, vector<1x49xf32>
    tpu.vector_store %arg23[%c1_217, %c294_218], %305 {strides = array<i32>} : memref<2x392xf32, #tpu.memory_space<vmem>>, vector<1x49xf32>,
    %307 = vector.extract_strided_slice %276 {offsets = [15, 0], sizes = [1, 49], strides = [1, 1]} : vector<16x49xf32> to vector<1x49xf32>
    %c1_219 = arith.constant 1 : index
    %c343_220 = arith.constant 343 : index
    %308 = vector.load %arg23[%c1_219, %c343_220] : memref<2x392xf32, #tpu.memory_space<vmem>>, vector<1x49xf32>
    tpu.vector_store %arg23[%c1_219, %c343_220], %307 {strides = array<i32>} : memref<2x392xf32, #tpu.memory_space<vmem>>, vector<1x49xf32>,
    %c0_221 = arith.constant 0 : index
    %c0_222 = arith.constant 0 : index
    %309 = vector.load %arg23[%c0_221, %c0_222] : memref<2x392xf32, #tpu.memory_space<vmem>>, vector<2x392xf32>
    %c0_223 = arith.constant 0 : index
    %c0_224 = arith.constant 0 : index
    %310 = vector.load %arg8[%c0_223, %c0_224] : memref<392x128xf32, #tpu.memory_space<vmem>>, vector<392x128xf32>
    %cst_225 = arith.constant dense<0.000000e+00> : vector<2x128xf32>
    %311 = tpu.matmul %309, %310, %cst_225 {dimension_numbers = #tpu.dot_dimension_numbers<[1], [0], [0], [1], [0, 0, 1, 1], [], []>} : vector<2x392xf32>, vector<392x128xf32>, vector<2x128xf32> -> vector<2x128xf32>
    %c0_226 = arith.constant 0 : index
    %c0_227 = arith.constant 0 : index
    %312 = vector.load %arg9[%c0_226, %c0_227] : memref<1x128xf32, #tpu.memory_space<vmem>>, vector<1x128xf32>
    %313 = vector.broadcast %312 : vector<1x128xf32> to vector<2x128xf32>
    %314 = arith.addf %311, %313 : vector<2x128xf32>
    %cst_228 = arith.constant 0.000000e+00 : f32
    %315 = vector.broadcast %cst_228 : f32 to vector<2x128xf32>
    %316 = arith.cmpf ogt, %314, %315 : vector<2x128xf32>
    %cst_229 = arith.constant 0.00999999977 : f32
    %317 = vector.broadcast %cst_229 : f32 to vector<2x128xf32>
    %318 = arith.mulf %317, %314 : vector<2x128xf32>
    %319 = arith.select %316, %314, %318 : vector<2x128xi1>, vector<2x128xf32>
    %c0_230 = arith.constant 0 : index
    %c0_231 = arith.constant 0 : index
    %320 = vector.load %arg10[%c0_230, %c0_231] : memref<128x10xf32, #tpu.memory_space<vmem>>, vector<128x10xf32>
    %cst_232 = arith.constant dense<0.000000e+00> : vector<2x10xf32>
    %321 = tpu.matmul %319, %320, %cst_232 {dimension_numbers = #tpu.dot_dimension_numbers<[1], [0], [0], [1], [0, 0, 1, 1], [], []>} : vector<2x128xf32>, vector<128x10xf32>, vector<2x10xf32> -> vector<2x10xf32>
    %c0_233 = arith.constant 0 : index
    %c0_234 = arith.constant 0 : index
    %322 = vector.load %arg11[%c0_233, %c0_234] : memref<1x10xf32, #tpu.memory_space<vmem>>, vector<1x10xf32>
    %323 = vector.broadcast %322 : vector<1x10xf32> to vector<2x10xf32>
    %324 = arith.addf %321, %323 : vector<2x10xf32>
    %c0_235 = arith.constant 0 : index
    %c0_236 = arith.constant 0 : index
    %325 = vector.load %arg12[%c0_235, %c0_236] : memref<2x10xf32, #tpu.memory_space<vmem>>, vector<2x10xf32>
    tpu.vector_store %arg12[%c0_235, %c0_236], %324 {strides = array<i32>} : memref<2x10xf32, #tpu.memory_space<vmem>>, vector<2x10xf32>,
    return
  }
  func.func @transform_0(%arg0: i32) -> (i32, i32) {
    %c0_i32 = arith.constant 0 : i32
    %c0_i32_0 = arith.constant 0 : i32
    return %arg0, %c0_i32 : i32, i32
  }
  func.func @transform_1(%arg0: i32) -> (i32, i32) {
    %c0_i32 = arith.constant 0 : i32
    %c0_i32_0 = arith.constant 0 : i32
    %c0_i32_1 = arith.constant 0 : i32
    return %c0_i32, %c0_i32_0 : i32, i32
  }
  func.func @transform_2(%arg0: i32) -> (i32, i32) {
    %c0_i32 = arith.constant 0 : i32
    %c0_i32_0 = arith.constant 0 : i32
    %c0_i32_1 = arith.constant 0 : i32
    return %c0_i32, %c0_i32_0 : i32, i32
  }
  func.func @transform_3(%arg0: i32) -> (i32, i32) {
    %c0_i32 = arith.constant 0 : i32
    %c0_i32_0 = arith.constant 0 : i32
    %c0_i32_1 = arith.constant 0 : i32
    return %c0_i32, %c0_i32_0 : i32, i32
  }
  func.func @transform_4(%arg0: i32) -> (i32, i32) {
    %c0_i32 = arith.constant 0 : i32
    %c0_i32_0 = arith.constant 0 : i32
    %c0_i32_1 = arith.constant 0 : i32
    return %c0_i32, %c0_i32_0 : i32, i32
  }
  func.func @transform_5(%arg0: i32) -> (i32, i32) {
    %c0_i32 = arith.constant 0 : i32
    %c0_i32_0 = arith.constant 0 : i32
    %c0_i32_1 = arith.constant 0 : i32
    return %c0_i32, %c0_i32_0 : i32, i32
  }
  func.func @transform_6(%arg0: i32) -> (i32, i32) {
    %c0_i32 = arith.constant 0 : i32
    %c0_i32_0 = arith.constant 0 : i32
    %c0_i32_1 = arith.constant 0 : i32
    return %c0_i32, %c0_i32_0 : i32, i32
  }
  func.func @transform_7(%arg0: i32) -> (i32, i32) {
    %c0_i32 = arith.constant 0 : i32
    %c0_i32_0 = arith.constant 0 : i32
    %c0_i32_1 = arith.constant 0 : i32
    return %c0_i32, %c0_i32_0 : i32, i32
  }
  func.func @transform_8(%arg0: i32) -> (i32, i32) {
    %c0_i32 = arith.constant 0 : i32
    %c0_i32_0 = arith.constant 0 : i32
    %c0_i32_1 = arith.constant 0 : i32
    return %c0_i32, %c0_i32_0 : i32, i32
  }
  func.func @transform_9(%arg0: i32) -> (i32, i32) {
    %c0_i32 = arith.constant 0 : i32
    %c0_i32_0 = arith.constant 0 : i32
    %c0_i32_1 = arith.constant 0 : i32
    return %c0_i32, %c0_i32_0 : i32, i32
  }
  func.func @transform_10(%arg0: i32) -> (i32, i32) {
    %c0_i32 = arith.constant 0 : i32
    %c0_i32_0 = arith.constant 0 : i32
    %c0_i32_1 = arith.constant 0 : i32
    return %c0_i32, %c0_i32_0 : i32, i32
  }
  func.func @transform_11(%arg0: i32) -> (i32, i32) {
    %c0_i32 = arith.constant 0 : i32
    %c0_i32_0 = arith.constant 0 : i32
    return %arg0, %c0_i32 : i32, i32
  }
  func.func @transform_12(%arg0: i32) -> (i32, i32, i32) {
    %c0_i32 = arith.constant 0 : i32
    %c0_i32_0 = arith.constant 0 : i32
    %c0_i32_1 = arith.constant 0 : i32
    return %arg0, %c0_i32, %c0_i32_0 : i32, i32, i32
  }
  func.func @transform_13(%arg0: i32) -> (i32, i32, i32) {
    %c0_i32 = arith.constant 0 : i32
    %c0_i32_0 = arith.constant 0 : i32
    %c0_i32_1 = arith.constant 0 : i32
    return %arg0, %c0_i32, %c0_i32_0 : i32, i32, i32
  }
  func.func @transform_14(%arg0: i32) -> (i32, i32, i32) {
    %c0_i32 = arith.constant 0 : i32
    %c0_i32_0 = arith.constant 0 : i32
    %c0_i32_1 = arith.constant 0 : i32
    return %arg0, %c0_i32, %c0_i32_0 : i32, i32, i32
  }
  func.func @transform_15(%arg0: i32) -> (i32, i32, i32) {
    %c0_i32 = arith.constant 0 : i32
    %c0_i32_0 = arith.constant 0 : i32
    %c0_i32_1 = arith.constant 0 : i32
    return %arg0, %c0_i32, %c0_i32_0 : i32, i32, i32
  }
  func.func @transform_16(%arg0: i32) -> (i32, i32, i32) {
    %c0_i32 = arith.constant 0 : i32
    %c0_i32_0 = arith.constant 0 : i32
    %c0_i32_1 = arith.constant 0 : i32
    return %arg0, %c0_i32, %c0_i32_0 : i32, i32, i32
  }
  func.func @transform_17(%arg0: i32) -> (i32, i32, i32) {
    %c0_i32 = arith.constant 0 : i32
    %c0_i32_0 = arith.constant 0 : i32
    %c0_i32_1 = arith.constant 0 : i32
    return %arg0, %c0_i32, %c0_i32_0 : i32, i32, i32
  }
}

</mosaic_0001>

<llo_original>
// kernel: tile.63
$region0: #{tile.63}
  #allocation0 [shape = 's32[1]{0}', space=sflag, size = 0x4, scoped, tag = 'scoped memory for tile.63']
  %s0 = inlined_call_operand.vmem [shape: f32[6], index: 0, kind: input, shape index: {}]
  %s1 = inlined_call_operand.vmem [shape: f32[2,6], index: 1, kind: output, shape index: {}]
  // Predicated region
  $region2: #{tile.63} parent=0 // pred_check
    _
  $region3: #{tile.63} parent=0 // pred_check_branch
    %3 = sbr.rel (0) target = $region5
  $region4: #{tile.63} parent=0 // pred_region
    _
  $region5: #{tile.63} parent=0 // pred_fallthru
    _
  %v4 = vld [vmem:[%s0] ss:$0 sm:$0xff]
  %5 = vst [vmem:[%s1] sm:$0x3] %v4

// kernel: tile.78
$region0: #{tile.78}
  #allocation0 [shape = 's32[1]{0}', space=sflag, size = 0x4, scoped, tag = 'scoped memory for tile.78']
  %s0 = inlined_call_operand.vmem [shape: f32[8], index: 0, kind: input, shape index: {}]
  %s1 = inlined_call_operand.vmem [shape: f32[2,8], index: 1, kind: output, shape index: {}]
  // Predicated region
  $region2: #{tile.78} parent=0 // pred_check
    _
  $region3: #{tile.78} parent=0 // pred_check_branch
    %3 = sbr.rel (0) target = $region5
  $region4: #{tile.78} parent=0 // pred_region
    _
  $region5: #{tile.78} parent=0 // pred_fallthru
    _
  %v4 = vld [vmem:[%s0] ss:$0 sm:$0xff]
  %5 = vst [vmem:[%s1] sm:$0x3] %v4

// kernel: three_layers_cnn_forward.1
$region0: #{three_layers_cnn_forward.1}
  #allocation0 [shape = 'u32[]', space=smem, size = 0x4, offset = 0x4, fixed_abs, tag = 'smem constant byte address 0x4 - core index']
  #allocation1 [shape = 'u32[144,128]{1,0:T(1,128)}', space=vmem, size = 0x12000, scoped, tag = 'internal scratch']
  #allocation2 [shape = 'f32[2,842]{1,0:T(2,128)}', space=vmem, size = 0x1c00, scoped, tag = 'scratch operand']
  #allocation3 [shape = 'f32[8,226]{1,0:T(8,128)}', space=vmem, size = 0x2000, scoped, tag = 'scratch operand']
  #allocation4 [shape = 'f32[12,65]{1,0:T(8,128)}', space=vmem, size = 0x2000, scoped, tag = 'scratch operand']
  #allocation5 [shape = 'f32[108,784]{1,0:T(8,128)}', space=vmem, size = 0x62000, scoped, tag = 'scratch operand']
  #allocation6 [shape = 'f32[2,392]{1,0:T(2,128)}', space=vmem, size = 0x1000, scoped, tag = 'scratch operand']
  %s0 = inlined_call_operand.vmem [shape: f32[2,784], index: 0, kind: input, shape index: {}]
  %s1 = inlined_call_operand.vmem [shape: f32[8,18], index: 1, kind: input, shape index: {}]
  %s2 = inlined_call_operand.vmem [shape: f32[12,72], index: 2, kind: input, shape index: {}]
  %s3 = inlined_call_operand.vmem [shape: f32[16,108], index: 3, kind: input, shape index: {}]
  %s4 = inlined_call_operand.vmem [shape: f32[16,9], index: 4, kind: input, shape index: {}]
  %s5 = inlined_call_operand.vmem [shape: bf16[784,196], index: 5, kind: input, shape index: {}]
  %s6 = inlined_call_operand.vmem [shape: bf16[196,49], index: 6, kind: input, shape index: {}]
  %s7 = inlined_call_operand.vmem [shape: f32[392,128], index: 7, kind: input, shape index: {}]
  %s8 = inlined_call_operand.vmem [shape: f32[1,128], index: 8, kind: input, shape index: {}]
  %s9 = inlined_call_operand.vmem [shape: f32[128,10], index: 9, kind: input, shape index: {}]
  %s10 = inlined_call_operand.vmem [shape: f32[1,10], index: 10, kind: input, shape index: {}]
  %s11 = inlined_call_operand.hbm [shape: f32[2,10], index: 11, kind: output, shape index: {0}]
  %s12 = inlined_call_operand.vmem [shape: f32[1,8,784], index: 12, kind: output, shape index: {1}]
  %s13 = inlined_call_operand.vmem [shape: f32[1,8,784], index: 13, kind: output, shape index: {2}]
  %s14 = inlined_call_operand.vmem [shape: f32[1,12,196], index: 14, kind: output, shape index: {3}]
  %s15 = inlined_call_operand.vmem [shape: f32[1,12,196], index: 15, kind: output, shape index: {4}]
  %s16 = inlined_call_operand.vmem [shape: f32[1,16,49], index: 16, kind: output, shape index: {5}]
  %s17 = inlined_call_operand.vmem [shape: f32[1,16,49], index: 17, kind: output, shape index: {6}]
  %18 = xla_tuple %s11, %s12, %s13, %s14, %s15, %s16, %s17
  %s19 = sld [smem:[#allocation0]]
  $region102: #{three_layers_cnn_forward.1} parent=0
    _
  %s21 = ssub.s32 1, %s19
  %s22 = scalar_select 0, %s21, %s19
  $region1: #{three_layers_cnn_forward.1} parent=0
    #allocation7 [shape = 'u8[1024]{0}', space=vmem, size = 0x400, scoped, tag = 'output window, operand 0, single buffered']
    #allocation8 [shape = 's32[1]{0}', space=sflag, size = 0x4, scoped, tag = 'scoped memory for three_layers_cnn_forward.1']
    %23 = vsyncpa [#allocation8], 0
    // Predicated region
    $region2: #{three_layers_cnn_forward.1} parent=1 // pred_check
      _
    $region3: #{three_layers_cnn_forward.1} parent=1 // pred_check_branch
      %25 = sbr.rel (0) target = $region5
    $region4: #{three_layers_cnn_forward.1} parent=1 // pred_region
      _
    $region5: #{three_layers_cnn_forward.1} parent=1 // pred_fallthru
      _
    // Predicated region
    $region6: #{three_layers_cnn_forward.1} parent=1 // pred_check
      _
    $region7: #{three_layers_cnn_forward.1} parent=1 // pred_check_branch
      %27 = sbr.rel (0) target = $region9
    $region8: #{three_layers_cnn_forward.1} parent=1 // pred_region
      _
    $region9: #{three_layers_cnn_forward.1} parent=1 // pred_fallthru
      _
    // Predicated region
    $region10: #{three_layers_cnn_forward.1} parent=1 // pred_check
      _
    $region11: #{three_layers_cnn_forward.1} parent=1 // pred_check_branch
      %29 = sbr.rel (0) target = $region13
    $region12: #{three_layers_cnn_forward.1} parent=1 // pred_region
      _
    $region13: #{three_layers_cnn_forward.1} parent=1 // pred_fallthru
      _
    // Predicated region
    $region14: #{three_layers_cnn_forward.1} parent=1 // pred_check
      _
    $region15: #{three_layers_cnn_forward.1} parent=1 // pred_check_branch
      %31 = sbr.rel (0) target = $region17
    $region16: #{three_layers_cnn_forward.1} parent=1 // pred_region
      _
    $region17: #{three_layers_cnn_forward.1} parent=1 // pred_fallthru
      _
    // Predicated region
    $region18: #{three_layers_cnn_forward.1} parent=1 // pred_check
      _
    $region19: #{three_layers_cnn_forward.1} parent=1 // pred_check_branch
      %33 = sbr.rel (0) target = $region21
    $region20: #{three_layers_cnn_forward.1} parent=1 // pred_region
      _
    $region21: #{three_layers_cnn_forward.1} parent=1 // pred_fallthru
      _
    // Predicated region
    $region22: #{three_layers_cnn_forward.1} parent=1 // pred_check
      _
    $region23: #{three_layers_cnn_forward.1} parent=1 // pred_check_branch
      %35 = sbr.rel (0) target = $region25
    $region24: #{three_layers_cnn_forward.1} parent=1 // pred_region
      _
    $region25: #{three_layers_cnn_forward.1} parent=1 // pred_fallthru
      _
    // Predicated region
    $region26: #{three_layers_cnn_forward.1} parent=1 // pred_check
      _
    $region27: #{three_layers_cnn_forward.1} parent=1 // pred_check_branch
      %37 = sbr.rel (0) target = $region29
    $region28: #{three_layers_cnn_forward.1} parent=1 // pred_region
      _
    $region29: #{three_layers_cnn_forward.1} parent=1 // pred_fallthru
      _
    // Predicated region
    $region30: #{three_layers_cnn_forward.1} parent=1 // pred_check
      _
    $region31: #{three_layers_cnn_forward.1} parent=1 // pred_check_branch
      %39 = sbr.rel (0) target = $region33
    $region32: #{three_layers_cnn_forward.1} parent=1 // pred_region
      _
    $region33: #{three_layers_cnn_forward.1} parent=1 // pred_fallthru
      _
    // Predicated region
    $region34: #{three_layers_cnn_forward.1} parent=1 // pred_check
      _
    $region35: #{three_layers_cnn_forward.1} parent=1 // pred_check_branch
      %41 = sbr.rel (0) target = $region37
    $region36: #{three_layers_cnn_forward.1} parent=1 // pred_region
      _
    $region37: #{three_layers_cnn_forward.1} parent=1 // pred_fallthru
      _
    // Predicated region
    $region38: #{three_layers_cnn_forward.1} parent=1 // pred_check
      _
    $region39: #{three_layers_cnn_forward.1} parent=1 // pred_check_branch
      %43 = sbr.rel (0) target = $region41
    $region40: #{three_layers_cnn_forward.1} parent=1 // pred_region
      _
    $region41: #{three_layers_cnn_forward.1} parent=1 // pred_fallthru
      _
    // Predicated region
    $region42: #{three_layers_cnn_forward.1} parent=1 // pred_check
      _
    $region43: #{three_layers_cnn_forward.1} parent=1 // pred_check_branch
      %45 = sbr.rel (0) target = $region45
    $region44: #{three_layers_cnn_forward.1} parent=1 // pred_region
      _
    $region45: #{three_layers_cnn_forward.1} parent=1 // pred_fallthru
      _
    %vm47 = vcmask 230400
    %48 = vst.msk [vmem:[#allocation2] sm:$0x3] %vm47, 0.0
    %vm49 = vcmask 599400
    %50 = vst.msk [vmem:[#allocation2 + $0xc] sm:$0x3] %vm49, 0.0
    %vm51 = vcmask 121856
    %52 = vst.msk [vmem:[#allocation3] sm:$0xff] %vm51, 0.0
    %vm53 = vcmask 802456
    %54 = vst.msk [vmem:[#allocation3 + $0x8] sm:$0xff] %vm53, 0.0
    %vm55 = vcmask 64512
    %56 = vst.msk [vmem:[#allocation4] sm:$0xff] %vm55, 0.0
    %vm57 = vcmask 60416
    %58 = vst.msk [vmem:[#allocation4 + $0x8] sm:$0xf] %vm57, 0.0
    %vm59 = vcmask 531912
    %60 = vst.msk [vmem:[#allocation4] sm:$0xff] %vm59, 0.0
    %vm61 = vcmask 527816
    %62 = vst.msk [vmem:[#allocation4 + $0x8] sm:$0xf] %vm61, 0.0
    %v63 = vld [vmem:[%s0] sm:$0xff]
    %v64 = vld [vmem:[%s0 + $0x8] sm:$0x3f]
    %67 = vrot.lane.b32.xlu0 %v63, 29
    %v68 = vpop.permute.xlu0 %67
    %69 = vrot.lane.b32.xlu0 %v64, 29
    %v70 = vpop.permute.xlu0 %69
    %v71 = vrot.slane %v68, 6
    %v72 = vrot.slane %v70, 6
    %vm73 = vcmask 236544
    %v74 = vsel %vm73, %v71, %v68
    %vm75 = vcmask 1041408
    %v76 = vsel %vm75, %v71, %v72
    %v77 = vsel %vm73, %v76, %v70
    %vm80 = vcmask 1041640
    %vm81 = vcmask 1043458
    %vm82 = vmor %vm81, %vm80
    %vm83 = vcmask 1045508
    %vm84 = vmor %vm83, %vm82
    %vm85 = vcmask 1047558
    %vm86 = vmor %vm85, %vm84
    %87 = vst.msk [vmem:[#allocation2] sm:$0xff] %vm86, %v74
    %vm88 = vmor %vm81, %vm75
    %vm89 = vcmask 365572
    %vm90 = vmor %vm89, %vm88
    %91 = vst.msk [vmem:[#allocation2 + $0x8] sm:$0x3f] %vm90, %v77
    %v92 = vlaneseq
    %v93 = vand.u32 %v92, 127
    %v94 = vadd.s32 %v93, 128
    %v95 = vadd.s32 %v93, 256
    %v96 = vadd.s32 %v93, 384
    %v97 = vadd.s32 %v93, 512
    %v98 = vadd.s32 %v93, 640
    %v99 = vadd.s32 %v93, 768
    %v100 = vcvt.s32.f32 %v93
    %v101 = vcvt.s32.f32 %v94
    %v102 = vcvt.s32.f32 %v95
    %v103 = vcvt.s32.f32 %v96
    %v104 = vcvt.s32.f32 %v97
    %v105 = vcvt.s32.f32 %v98
    %v106 = vcvt.s32.f32 %v99
    %v107 = vadd.f32 %v100, 0.5
    %v108 = vadd.f32 %v101, 0.5
    %v109 = vadd.f32 %v102, 0.5
    %v110 = vadd.f32 %v103, 0.5
    %v111 = vadd.f32 %v104, 0.5
    %v112 = vadd.f32 %v105, 0.5
    %v113 = vadd.f32 %v106, 0.5
    %v114 = vmul.f32 %v107, 0.035714287
    %v115 = vmul.f32 %v108, 0.035714287
    %v116 = vmul.f32 %v109, 0.035714287
    %v117 = vmul.f32 %v110, 0.035714287
    %v118 = vmul.f32 %v111, 0.035714287
    %v119 = vmul.f32 %v112, 0.035714287
    %v120 = vmul.f32 %v113, 0.035714287
    %v121 = vfloor.f32 %v114
    %v122 = vfloor.f32 %v115
    %v123 = vfloor.f32 %v116
    %v124 = vfloor.f32 %v117
    %v125 = vfloor.f32 %v118
    %v126 = vfloor.f32 %v119
    %v127 = vfloor.f32 %v120
    %v128 = vmul.f32 %v121, 28.0
    %v129 = vmul.f32 %v122, 28.0
    %v130 = vmul.f32 %v123, 28.0
    %v131 = vmul.f32 %v124, 28.0
    %v132 = vmul.f32 %v125, 28.0
    %v133 = vmul.f32 %v126, 28.0
    %v134 = vmul.f32 %v127, 28.0
    %v135 = vsub.f32 %v100, %v128
    %v136 = vsub.f32 %v101, %v129
    %v137 = vsub.f32 %v102, %v130
    %v138 = vsub.f32 %v103, %v131
    %v139 = vsub.f32 %v104, %v132
    %v140 = vsub.f32 %v105, %v133
    %v141 = vsub.f32 %v106, %v134
    %vm142 = vcmp.ge.f32.partialorder %v135, 0.5
    %vm143 = vcmp.ge.f32.partialorder %v136, 0.5
    %vm144 = vcmp.ge.f32.partialorder %v137, 0.5
    %vm145 = vcmp.ge.f32.partialorder %v138, 0.5
    %vm146 = vcmp.ge.f32.partialorder %v139, 0.5
    %vm147 = vcmp.ge.f32.partialorder %v140, 0.5
    %vm148 = vcmp.ge.f32.partialorder %v141, 0.5
    %vm149 = vcmp.le.f32.partialorder %v135, 26.5
    %vm150 = vcmp.le.f32.partialorder %v136, 26.5
    %vm151 = vcmp.le.f32.partialorder %v137, 26.5
    %vm152 = vcmp.le.f32.partialorder %v138, 26.5
    %vm153 = vcmp.le.f32.partialorder %v139, 26.5
    %vm154 = vcmp.le.f32.partialorder %v140, 26.5
    %vm155 = vcmp.le.f32.partialorder %v141, 26.5
    %v156 = vld [vmem:[#allocation2] sm:$0xff]
    %v157 = vld [vmem:[#allocation2 + $0x8] sm:$0x3f]
    %v158 = vsel %vm142, 1, 0
    %v159 = vsel %vm143, 1, 0
    %v160 = vsel %vm144, 1, 0
    %v161 = vsel %vm145, 1, 0
    %v162 = vsel %vm146, 1, 0
    %v163 = vsel %vm147, 1, 0
    %v164 = vsel %vm148, 1, 0
    %vm165 = vcmp.eq.s32.totalorder %v158, 1
    %vm166 = vcmp.eq.s32.totalorder %v159, 1
    %vm167 = vcmp.eq.s32.totalorder %v160, 1
    %vm168 = vcmp.eq.s32.totalorder %v161, 1
    %vm169 = vcmp.eq.s32.totalorder %v162, 1
    %vm170 = vcmp.eq.s32.totalorder %v163, 1
    %vm171 = vcmp.eq.s32.totalorder %v164, 1
    %v174 = vcombine.high %v156, %v156
    %v176 = vunpack.c.l.s4 1983009808
    %v177 = vunpack.c.0.s8 %v176
    %v178 = vlaneseq
    %v179 = vshrl.u32 %v178, 7
    %v180 = vsub.s32 %v177, %v179
    %v181 = vrot.slane %v156, %v180
    %v183 = vunpack.c.l.s4 1983009808
    %v184 = vunpack.c.0.s8 %v183
    %v185 = vlaneseq
    %v186 = vshrl.u32 %v185, 7
    %v187 = vsub.s32 %v184, %v186
    %v188 = vrot.slane %v174, %v187
    %v189 = vcombine.high %v181, %v181
    %v190 = vcombine.high %v188, %v188
    %v191 = vcombine.high %v157, %v157
    %v193 = vunpack.c.l.s4 1983009808
    %v194 = vunpack.c.0.s8 %v193
    %v195 = vlaneseq
    %v196 = vshrl.u32 %v195, 7
    %v197 = vsub.s32 %v194, %v196
    %v198 = vrot.slane %v157, %v197
    %v200 = vunpack.c.l.s4 1983009808
    %v201 = vunpack.c.0.s8 %v200
    %v202 = vlaneseq
    %v203 = vshrl.u32 %v202, 7
    %v204 = vsub.s32 %v201, %v203
    %v205 = vrot.slane %v191, %v204
    %v206 = vcombine.high %v198, %v198
    %v214 = vsel %vm165, %v181, 0.0
    %v215 = vsel %vm166, %v189, 0.0
    %v216 = vsel %vm167, %v188, 0.0
    %v217 = vsel %vm168, %v190, 0.0
    %v218 = vsel %vm169, %v198, 0.0
    %v219 = vsel %vm170, %v206, 0.0
    %v220 = vsel %vm171, %v205, 0.0
    %221 = vst [vmem:[#allocation5] sm:$0x3] %v214
    %222 = vst [vmem:[#allocation5 + $0x8] sm:$0x3] %v215
    %223 = vst [vmem:[#allocation5 + $0x10] sm:$0x3] %v216
    %224 = vst [vmem:[#allocation5 + $0x18] sm:$0x3] %v217
    %225 = vst [vmem:[#allocation5 + $0x20] sm:$0x3] %v218
    %226 = vst [vmem:[#allocation5 + $0x28] sm:$0x3] %v219
    %vm227 = vcmask 123904
    %228 = vst.msk [vmem:[#allocation5 + $0x30] sm:$0x3] %vm227, %v220
    %v229 = vld [vmem:[#allocation2] sm:$0xff]
    %v230 = vld [vmem:[#allocation2 + $0x8] sm:$0x3f]
    %v233 = vcombine.low %v229, %v229
    %v235 = vunpack.c.l.s4 1983009808
    %v236 = vunpack.c.0.s8 %v235
    %v237 = vlaneseq
    %v238 = vshrl.u32 %v237, 7
    %v239 = vsub.s32 %v236, %v238
    %v240 = vrot.slane %v233, %v239
    %v242 = vunpack.c.l.s4 1983009808
    %v243 = vunpack.c.0.s8 %v242
    %v244 = vlaneseq
    %v245 = vshrl.u32 %v244, 7
    %v246 = vsub.s32 %v243, %v245
    %v247 = vrot.slane %v229, %v246
    %v248 = vcombine.high %v240, %v240
    %v249 = vcombine.high %v247, %v247
    %v250 = vcombine.low %v230, %v230
    %v252 = vunpack.c.l.s4 1983009808
    %v253 = vunpack.c.0.s8 %v252
    %v254 = vlaneseq
    %v255 = vshrl.u32 %v254, 7
    %v256 = vsub.s32 %v253, %v255
    %v257 = vrot.slane %v250, %v256
    %v259 = vunpack.c.l.s4 1983009808
    %v260 = vunpack.c.0.s8 %v259
    %v261 = vlaneseq
    %v262 = vshrl.u32 %v261, 7
    %v263 = vsub.s32 %v260, %v262
    %v264 = vrot.slane %v230, %v263
    %v265 = vcombine.high %v257, %v257
    %266 = vrot.lane.b32.xlu0 %v240, 127
    %v267 = vpop.permute.xlu0 %266
    %268 = vrot.lane.b32.xlu0 %v248, 127
    %v269 = vpop.permute.xlu0 %268
    %270 = vrot.lane.b32.xlu0 %v247, 127
    %v271 = vpop.permute.xlu0 %270
    %272 = vrot.lane.b32.xlu0 %v249, 127
    %v273 = vpop.permute.xlu0 %272
    %274 = vrot.lane.b32.xlu0 %v257, 127
    %v275 = vpop.permute.xlu0 %274
    %276 = vrot.lane.b32.xlu0 %v265, 127
    %v277 = vpop.permute.xlu0 %276
    %278 = vrot.lane.b32.xlu0 %v264, 127
    %v279 = vpop.permute.xlu0 %278
    %vm280 = vcmask 1039360
    %v281 = vsel %vm280, %v267, %v269
    %v282 = vsel %vm280, %v269, %v271
    %v283 = vsel %vm280, %v271, %v273
    %v284 = vsel %vm280, %v273, %v275
    %v285 = vsel %vm280, %v275, %v277
    %v286 = vsel %vm280, %v277, %v279
    %294 = vst [vmem:[#allocation5] sm:$0xc] %v281
    %295 = vst [vmem:[#allocation5 + $0x8] sm:$0xc] %v282
    %296 = vst [vmem:[#allocation5 + $0x10] sm:$0xc] %v283
    %297 = vst [vmem:[#allocation5 + $0x18] sm:$0xc] %v284
    %298 = vst [vmem:[#allocation5 + $0x20] sm:$0xc] %v285
    %299 = vst [vmem:[#allocation5 + $0x28] sm:$0xc] %v286
    %vm300 = vcmask 125954
    %301 = vst.msk [vmem:[#allocation5 + $0x30] sm:$0xc] %vm300, %v279
    %v302 = vld [vmem:[#allocation2] sm:$0xff]
    %v303 = vld [vmem:[#allocation2 + $0x8] sm:$0x3f]
    %v304 = vsel %vm149, 1, 0
    %v305 = vsel %vm150, 1, 0
    %v306 = vsel %vm151, 1, 0
    %v307 = vsel %vm152, 1, 0
    %v308 = vsel %vm153, 1, 0
    %v309 = vsel %vm154, 1, 0
    %v310 = vsel %vm155, 1, 0
    %vm311 = vcmp.eq.s32.totalorder %v304, 1
    %vm312 = vcmp.eq.s32.totalorder %v305, 1
    %vm313 = vcmp.eq.s32.totalorder %v306, 1
    %vm314 = vcmp.eq.s32.totalorder %v307, 1
    %vm315 = vcmp.eq.s32.totalorder %v308, 1
    %vm316 = vcmp.eq.s32.totalorder %v309, 1
    %vm317 = vcmp.eq.s32.totalorder %v310, 1
    %v320 = vcombine.high %v302, %v302
    %v322 = vunpack.c.l.s4 1983009808
    %v323 = vunpack.c.0.s8 %v322
    %v324 = vlaneseq
    %v325 = vshrl.u32 %v324, 7
    %v326 = vsub.s32 %v323, %v325
    %v327 = vrot.slane %v302, %v326
    %v329 = vunpack.c.l.s4 1983009808
    %v330 = vunpack.c.0.s8 %v329
    %v331 = vlaneseq
    %v332 = vshrl.u32 %v331, 7
    %v333 = vsub.s32 %v330, %v332
    %v334 = vrot.slane %v320, %v333
    %v335 = vcombine.high %v327, %v327
    %v336 = vcombine.high %v334, %v334
    %v337 = vcombine.high %v303, %v303
    %v339 = vunpack.c.l.s4 1983009808
    %v340 = vunpack.c.0.s8 %v339
    %v341 = vlaneseq
    %v342 = vshrl.u32 %v341, 7
    %v343 = vsub.s32 %v340, %v342
    %v344 = vrot.slane %v303, %v343
    %v346 = vunpack.c.l.s4 1983009808
    %v347 = vunpack.c.0.s8 %v346
    %v348 = vlaneseq
    %v349 = vshrl.u32 %v348, 7
    %v350 = vsub.s32 %v347, %v349
    %v351 = vrot.slane %v337, %v350
    %v352 = vcombine.high %v344, %v344
    %353 = vrot.lane.b32.xlu0 %v327, 126
    %v354 = vpop.permute.xlu0 %353
    %355 = vrot.lane.b32.xlu0 %v335, 126
    %v356 = vpop.permute.xlu0 %355
    %357 = vrot.lane.b32.xlu0 %v334, 126
    %v358 = vpop.permute.xlu0 %357
    %359 = vrot.lane.b32.xlu0 %v336, 126
    %v360 = vpop.permute.xlu0 %359
    %361 = vrot.lane.b32.xlu0 %v344, 126
    %v362 = vpop.permute.xlu0 %361
    %363 = vrot.lane.b32.xlu0 %v352, 126
    %v364 = vpop.permute.xlu0 %363
    %365 = vrot.lane.b32.xlu0 %v351, 126
    %v366 = vpop.permute.xlu0 %365
    %vm367 = vcmask 1031168
    %v368 = vsel %vm367, %v354, %v356
    %v369 = vsel %vm367, %v356, %v358
    %v370 = vsel %vm367, %v358, %v360
    %v371 = vsel %vm367, %v360, %v362
    %v372 = vsel %vm367, %v362, %v364
    %v373 = vsel %vm367, %v364, %v366
    %v381 = vsel %vm311, %v368, 0.0
    %v382 = vsel %vm312, %v369, 0.0
    %v383 = vsel %vm313, %v370, 0.0
    %v384 = vsel %vm314, %v371, 0.0
    %v385 = vsel %vm315, %v372, 0.0
    %v386 = vsel %vm316, %v373, 0.0
    %v387 = vsel %vm317, %v366, 0.0
    %v395 = vrot.slane %v381, 4
    %v396 = vrot.slane %v382, 4
    %v397 = vrot.slane %v383, 4
    %v398 = vrot.slane %v384, 4
    %v399 = vrot.slane %v385, 4
    %v400 = vrot.slane %v386, 4
    %v401 = vrot.slane %v387, 4
    %409 = vst [vmem:[#allocation5] sm:$0x30] %v395
    %410 = vst [vmem:[#allocation5 + $0x8] sm:$0x30] %v396
    %411 = vst [vmem:[#allocation5 + $0x10] sm:$0x30] %v397
    %412 = vst [vmem:[#allocation5 + $0x18] sm:$0x30] %v398
    %413 = vst [vmem:[#allocation5 + $0x20] sm:$0x30] %v399
    %414 = vst [vmem:[#allocation5 + $0x28] sm:$0x30] %v400
    %vm415 = vcmask 128004
    %416 = vst.msk [vmem:[#allocation5 + $0x30] sm:$0x30] %vm415, %v401
    %v417 = vld [vmem:[#allocation2] sm:$0xff]
    %v418 = vld [vmem:[#allocation2 + $0x8] sm:$0x3f]
    %v421 = vcombine.high %v417, %v417
    %v423 = vunpack.c.l.s4 1983009808
    %v424 = vunpack.c.0.s8 %v423
    %v425 = vlaneseq
    %v426 = vshrl.u32 %v425, 7
    %v427 = vsub.s32 %v424, %v426
    %v428 = vrot.slane %v417, %v427
    %v430 = vunpack.c.l.s4 1983009808
    %v431 = vunpack.c.0.s8 %v430
    %v432 = vlaneseq
    %v433 = vshrl.u32 %v432, 7
    %v434 = vsub.s32 %v431, %v433
    %v435 = vrot.slane %v421, %v434
    %v436 = vcombine.high %v428, %v428
    %v437 = vcombine.high %v435, %v435
    %v438 = vcombine.high %v418, %v418
    %v440 = vunpack.c.l.s4 1983009808
    %v441 = vunpack.c.0.s8 %v440
    %v442 = vlaneseq
    %v443 = vshrl.u32 %v442, 7
    %v444 = vsub.s32 %v441, %v443
    %v445 = vrot.slane %v418, %v444
    %v447 = vunpack.c.l.s4 1983009808
    %v448 = vunpack.c.0.s8 %v447
    %v449 = vlaneseq
    %v450 = vshrl.u32 %v449, 7
    %v451 = vsub.s32 %v448, %v450
    %v452 = vrot.slane %v438, %v451
    %v453 = vcombine.high %v445, %v445
    %454 = vrot.lane.b32.xlu0 %v428, 100
    %v455 = vpop.permute.xlu0 %454
    %456 = vrot.lane.b32.xlu0 %v436, 100
    %v457 = vpop.permute.xlu0 %456
    %458 = vrot.lane.b32.xlu0 %v435, 100
    %v459 = vpop.permute.xlu0 %458
    %460 = vrot.lane.b32.xlu0 %v437, 100
    %v461 = vpop.permute.xlu0 %460
    %462 = vrot.lane.b32.xlu0 %v445, 100
    %v463 = vpop.permute.xlu0 %462
    %464 = vrot.lane.b32.xlu0 %v453, 100
    %v465 = vpop.permute.xlu0 %464
    %466 = vrot.lane.b32.xlu0 %v452, 100
    %v467 = vpop.permute.xlu0 %466
    %vm468 = vcmask 818176
    %v469 = vsel %vm468, %v455, %v457
    %v470 = vsel %vm468, %v457, %v459
    %v471 = vsel %vm468, %v459, %v461
    %v472 = vsel %vm468, %v461, %v463
    %v473 = vsel %vm468, %v463, %v465
    %v474 = vsel %vm468, %v465, %v467
    %v482 = vsel %vm165, %v469, 0.0
    %v483 = vsel %vm166, %v470, 0.0
    %v484 = vsel %vm167, %v471, 0.0
    %v485 = vsel %vm168, %v472, 0.0
    %v486 = vsel %vm169, %v473, 0.0
    %v487 = vsel %vm170, %v474, 0.0
    %v488 = vsel %vm171, %v467, 0.0
    %v496 = vrot.slane %v482, 2
    %v497 = vrot.slane %v483, 2
    %v498 = vrot.slane %v484, 2
    %v499 = vrot.slane %v485, 2
    %v500 = vrot.slane %v486, 2
    %v501 = vrot.slane %v487, 2
    %v502 = vrot.slane %v488, 2
    %510 = vst [vmem:[#allocation5] sm:$0xc0] %v496
    %511 = vst [vmem:[#allocation5 + $0x8] sm:$0xc0] %v497
    %512 = vst [vmem:[#allocation5 + $0x10] sm:$0xc0] %v498
    %513 = vst [vmem:[#allocation5 + $0x18] sm:$0xc0] %v499
    %514 = vst [vmem:[#allocation5 + $0x20] sm:$0xc0] %v500
    %515 = vst [vmem:[#allocation5 + $0x28] sm:$0xc0] %v501
    %vm516 = vcmask 130054
    %517 = vst.msk [vmem:[#allocation5 + $0x30] sm:$0xc0] %vm516, %v502
    %v518 = vld [vmem:[#allocation2] sm:$0xff]
    %v519 = vld [vmem:[#allocation2 + $0x8] sm:$0x3f]
    %v522 = vcombine.high %v518, %v518
    %v524 = vunpack.c.l.s4 1983009808
    %v525 = vunpack.c.0.s8 %v524
    %v526 = vlaneseq
    %v527 = vshrl.u32 %v526, 7
    %v528 = vsub.s32 %v525, %v527
    %v529 = vrot.slane %v518, %v528
    %v531 = vunpack.c.l.s4 1983009808
    %v532 = vunpack.c.0.s8 %v531
    %v533 = vlaneseq
    %v534 = vshrl.u32 %v533, 7
    %v535 = vsub.s32 %v532, %v534
    %v536 = vrot.slane %v522, %v535
    %v537 = vcombine.high %v529, %v529
    %v538 = vcombine.high %v536, %v536
    %v539 = vcombine.high %v519, %v519
    %v541 = vunpack.c.l.s4 1983009808
    %v542 = vunpack.c.0.s8 %v541
    %v543 = vlaneseq
    %v544 = vshrl.u32 %v543, 7
    %v545 = vsub.s32 %v542, %v544
    %v546 = vrot.slane %v519, %v545
    %v548 = vunpack.c.l.s4 1983009808
    %v549 = vunpack.c.0.s8 %v548
    %v550 = vlaneseq
    %v551 = vshrl.u32 %v550, 7
    %v552 = vsub.s32 %v549, %v551
    %v553 = vrot.slane %v539, %v552
    %v554 = vcombine.high %v546, %v546
    %555 = vrot.lane.b32.xlu0 %v529, 99
    %v556 = vpop.permute.xlu0 %555
    %557 = vrot.lane.b32.xlu0 %v537, 99
    %v558 = vpop.permute.xlu0 %557
    %559 = vrot.lane.b32.xlu0 %v536, 99
    %v560 = vpop.permute.xlu0 %559
    %561 = vrot.lane.b32.xlu0 %v538, 99
    %v562 = vpop.permute.xlu0 %561
    %563 = vrot.lane.b32.xlu0 %v546, 99
    %v564 = vpop.permute.xlu0 %563
    %565 = vrot.lane.b32.xlu0 %v554, 99
    %v566 = vpop.permute.xlu0 %565
    %567 = vrot.lane.b32.xlu0 %v553, 99
    %v568 = vpop.permute.xlu0 %567
    %vm569 = vcmask 809984
    %v570 = vsel %vm569, %v556, %v558
    %v571 = vsel %vm569, %v558, %v560
    %v572 = vsel %vm569, %v560, %v562
    %v573 = vsel %vm569, %v562, %v564
    %v574 = vsel %vm569, %v564, %v566
    %v575 = vsel %vm569, %v566, %v568
    %583 = vst [vmem:[#allocation5 + $0x38] sm:$0x3] %v570
    %584 = vst [vmem:[#allocation5 + $0x40] sm:$0x3] %v571
    %585 = vst [vmem:[#allocation5 + $0x48] sm:$0x3] %v572
    %586 = vst [vmem:[#allocation5 + $0x50] sm:$0x3] %v573
    %587 = vst [vmem:[#allocation5 + $0x58] sm:$0x3] %v574
    %588 = vst [vmem:[#allocation5 + $0x60] sm:$0x3] %v575
    %589 = vst.msk [vmem:[#allocation5 + $0x68] sm:$0x3] %vm227, %v568
    %v590 = vld [vmem:[#allocation2] sm:$0xff]
    %v591 = vld [vmem:[#allocation2 + $0x8] sm:$0x3f]
    %v594 = vcombine.high %v590, %v590
    %v596 = vunpack.c.l.s4 1983009808
    %v597 = vunpack.c.0.s8 %v596
    %v598 = vlaneseq
    %v599 = vshrl.u32 %v598, 7
    %v600 = vsub.s32 %v597, %v599
    %v601 = vrot.slane %v590, %v600
    %v603 = vunpack.c.l.s4 1983009808
    %v604 = vunpack.c.0.s8 %v603
    %v605 = vlaneseq
    %v606 = vshrl.u32 %v605, 7
    %v607 = vsub.s32 %v604, %v606
    %v608 = vrot.slane %v594, %v607
    %v609 = vcombine.high %v601, %v601
    %v610 = vcombine.high %v608, %v608
    %v611 = vcombine.high %v591, %v591
    %v613 = vunpack.c.l.s4 1983009808
    %v614 = vunpack.c.0.s8 %v613
    %v615 = vlaneseq
    %v616 = vshrl.u32 %v615, 7
    %v617 = vsub.s32 %v614, %v616
    %v618 = vrot.slane %v591, %v617
    %v620 = vunpack.c.l.s4 1983009808
    %v621 = vunpack.c.0.s8 %v620
    %v622 = vlaneseq
    %v623 = vshrl.u32 %v622, 7
    %v624 = vsub.s32 %v621, %v623
    %v625 = vrot.slane %v611, %v624
    %v626 = vcombine.high %v618, %v618
    %627 = vrot.lane.b32.xlu0 %v601, 98
    %v628 = vpop.permute.xlu0 %627
    %629 = vrot.lane.b32.xlu0 %v609, 98
    %v630 = vpop.permute.xlu0 %629
    %631 = vrot.lane.b32.xlu0 %v608, 98
    %v632 = vpop.permute.xlu0 %631
    %633 = vrot.lane.b32.xlu0 %v610, 98
    %v634 = vpop.permute.xlu0 %633
    %635 = vrot.lane.b32.xlu0 %v618, 98
    %v636 = vpop.permute.xlu0 %635
    %637 = vrot.lane.b32.xlu0 %v626, 98
    %v638 = vpop.permute.xlu0 %637
    %639 = vrot.lane.b32.xlu0 %v625, 98
    %v640 = vpop.permute.xlu0 %639
    %vm641 = vcmask 801792
    %v642 = vsel %vm641, %v628, %v630
    %v643 = vsel %vm641, %v630, %v632
    %v644 = vsel %vm641, %v632, %v634
    %v645 = vsel %vm641, %v634, %v636
    %v646 = vsel %vm641, %v636, %v638
    %v647 = vsel %vm641, %v638, %v640
    %v655 = vsel %vm311, %v642, 0.0
    %v656 = vsel %vm312, %v643, 0.0
    %v657 = vsel %vm313, %v644, 0.0
    %v658 = vsel %vm314, %v645, 0.0
    %v659 = vsel %vm315, %v646, 0.0
    %v660 = vsel %vm316, %v647, 0.0
    %v661 = vsel %vm317, %v640, 0.0
    %v669 = vrot.slane %v655, 6
    %v670 = vrot.slane %v656, 6
    %v671 = vrot.slane %v657, 6
    %v672 = vrot.slane %v658, 6
    %v673 = vrot.slane %v659, 6
    %v674 = vrot.slane %v660, 6
    %v675 = vrot.slane %v661, 6
    %683 = vst [vmem:[#allocation5 + $0x38] sm:$0xc] %v669
    %684 = vst [vmem:[#allocation5 + $0x40] sm:$0xc] %v670
    %685 = vst [vmem:[#allocation5 + $0x48] sm:$0xc] %v671
    %686 = vst [vmem:[#allocation5 + $0x50] sm:$0xc] %v672
    %687 = vst [vmem:[#allocation5 + $0x58] sm:$0xc] %v673
    %688 = vst [vmem:[#allocation5 + $0x60] sm:$0xc] %v674
    %689 = vst.msk [vmem:[#allocation5 + $0x68] sm:$0xc] %vm300, %v675
    %v690 = vld [vmem:[#allocation2] sm:$0xff]
    %v691 = vld [vmem:[#allocation2 + $0x8] sm:$0x3f]
    %v694 = vcombine.high %v690, %v690
    %v696 = vunpack.c.l.s4 1983009808
    %v697 = vunpack.c.0.s8 %v696
    %v698 = vlaneseq
    %v699 = vshrl.u32 %v698, 7
    %v700 = vsub.s32 %v697, %v699
    %v701 = vrot.slane %v690, %v700
    %v703 = vunpack.c.l.s4 1983009808
    %v704 = vunpack.c.0.s8 %v703
    %v705 = vlaneseq
    %v706 = vshrl.u32 %v705, 7
    %v707 = vsub.s32 %v704, %v706
    %v708 = vrot.slane %v694, %v707
    %v709 = vcombine.high %v701, %v701
    %v710 = vcombine.high %v708, %v708
    %v711 = vcombine.high %v691, %v691
    %v713 = vunpack.c.l.s4 1983009808
    %v714 = vunpack.c.0.s8 %v713
    %v715 = vlaneseq
    %v716 = vshrl.u32 %v715, 7
    %v717 = vsub.s32 %v714, %v716
    %v718 = vrot.slane %v691, %v717
    %v720 = vunpack.c.l.s4 1983009808
    %v721 = vunpack.c.0.s8 %v720
    %v722 = vlaneseq
    %v723 = vshrl.u32 %v722, 7
    %v724 = vsub.s32 %v721, %v723
    %v725 = vrot.slane %v711, %v724
    %v726 = vcombine.high %v718, %v718
    %727 = vrot.lane.b32.xlu0 %v701, 72
    %v728 = vpop.permute.xlu0 %727
    %729 = vrot.lane.b32.xlu0 %v709, 72
    %v730 = vpop.permute.xlu0 %729
    %731 = vrot.lane.b32.xlu0 %v708, 72
    %v732 = vpop.permute.xlu0 %731
    %733 = vrot.lane.b32.xlu0 %v710, 72
    %v734 = vpop.permute.xlu0 %733
    %735 = vrot.lane.b32.xlu0 %v718, 72
    %v736 = vpop.permute.xlu0 %735
    %737 = vrot.lane.b32.xlu0 %v726, 72
    %v738 = vpop.permute.xlu0 %737
    %739 = vrot.lane.b32.xlu0 %v725, 72
    %v740 = vpop.permute.xlu0 %739
    %vm741 = vcmask 588800
    %v742 = vsel %vm741, %v728, %v730
    %v743 = vsel %vm741, %v730, %v732
    %v744 = vsel %vm741, %v732, %v734
    %v745 = vsel %vm741, %v734, %v736
    %v746 = vsel %vm741, %v736, %v738
    %v747 = vsel %vm741, %v738, %v740
    %v755 = vsel %vm165, %v742, 0.0
    %v756 = vsel %vm166, %v743, 0.0
    %v757 = vsel %vm167, %v744, 0.0
    %v758 = vsel %vm168, %v745, 0.0
    %v759 = vsel %vm169, %v746, 0.0
    %v760 = vsel %vm170, %v747, 0.0
    %v761 = vsel %vm171, %v740, 0.0
    %v769 = vrot.slane %v755, 4
    %v770 = vrot.slane %v756, 4
    %v771 = vrot.slane %v757, 4
    %v772 = vrot.slane %v758, 4
    %v773 = vrot.slane %v759, 4
    %v774 = vrot.slane %v760, 4
    %v775 = vrot.slane %v761, 4
    %783 = vst [vmem:[#allocation5 + $0x38] sm:$0x30] %v769
    %784 = vst [vmem:[#allocation5 + $0x40] sm:$0x30] %v770
    %785 = vst [vmem:[#allocation5 + $0x48] sm:$0x30] %v771
    %786 = vst [vmem:[#allocation5 + $0x50] sm:$0x30] %v772
    %787 = vst [vmem:[#allocation5 + $0x58] sm:$0x30] %v773
    %788 = vst [vmem:[#allocation5 + $0x60] sm:$0x30] %v774
    %789 = vst.msk [vmem:[#allocation5 + $0x68] sm:$0x30] %vm415, %v775
    %v790 = vld [vmem:[#allocation2] sm:$0xff]
    %v791 = vld [vmem:[#allocation2 + $0x8] sm:$0x3f]
    %v794 = vcombine.low %v790, %v790
    %v796 = vunpack.c.l.s4 1983009808
    %v797 = vunpack.c.0.s8 %v796
    %v798 = vlaneseq
    %v799 = vshrl.u32 %v798, 7
    %v800 = vsub.s32 %v797, %v799
    %v801 = vrot.slane %v794, %v800
    %v803 = vunpack.c.l.s4 1983009808
    %v804 = vunpack.c.0.s8 %v803
    %v805 = vlaneseq
    %v806 = vshrl.u32 %v805, 7
    %v807 = vsub.s32 %v804, %v806
    %v808 = vrot.slane %v790, %v807
    %v809 = vcombine.low %v801, %v801
    %v810 = vcombine.low %v808, %v808
    %v811 = vcombine.low %v791, %v791
    %v813 = vunpack.c.l.s4 1983009808
    %v814 = vunpack.c.0.s8 %v813
    %v815 = vlaneseq
    %v816 = vshrl.u32 %v815, 7
    %v817 = vsub.s32 %v814, %v816
    %v818 = vrot.slane %v811, %v817
    %v820 = vunpack.c.l.s4 1983009808
    %v821 = vunpack.c.0.s8 %v820
    %v822 = vlaneseq
    %v823 = vshrl.u32 %v822, 7
    %v824 = vsub.s32 %v821, %v823
    %v825 = vrot.slane %v791, %v824
    %v826 = vcombine.low %v818, %v818
    %v827 = vcombine.low %v825, %v825
    %828 = vrot.lane.b32.xlu0 %v809, 71
    %v829 = vpop.permute.xlu0 %828
    %830 = vrot.lane.b32.xlu0 %v801, 71
    %v831 = vpop.permute.xlu0 %830
    %832 = vrot.lane.b32.xlu0 %v810, 71
    %v833 = vpop.permute.xlu0 %832
    %834 = vrot.lane.b32.xlu0 %v808, 71
    %v835 = vpop.permute.xlu0 %834
    %836 = vrot.lane.b32.xlu0 %v826, 71
    %v837 = vpop.permute.xlu0 %836
    %838 = vrot.lane.b32.xlu0 %v818, 71
    %v839 = vpop.permute.xlu0 %838
    %840 = vrot.lane.b32.xlu0 %v827, 71
    %v841 = vpop.permute.xlu0 %840
    %vm842 = vcmask 580608
    %v843 = vsel %vm842, %v829, %v831
    %v844 = vsel %vm842, %v831, %v833
    %v845 = vsel %vm842, %v833, %v835
    %v846 = vsel %vm842, %v835, %v837
    %v847 = vsel %vm842, %v837, %v839
    %v848 = vsel %vm842, %v839, %v841
    %856 = vst [vmem:[#allocation5 + $0x38] sm:$0xc0] %v843
    %857 = vst [vmem:[#allocation5 + $0x40] sm:$0xc0] %v844
    %858 = vst [vmem:[#allocation5 + $0x48] sm:$0xc0] %v845
    %859 = vst [vmem:[#allocation5 + $0x50] sm:$0xc0] %v846
    %860 = vst [vmem:[#allocation5 + $0x58] sm:$0xc0] %v847
    %861 = vst [vmem:[#allocation5 + $0x60] sm:$0xc0] %v848
    %862 = vst.msk [vmem:[#allocation5 + $0x68] sm:$0xc0] %vm516, %v841
    %v863 = vld [vmem:[#allocation2] sm:$0xff]
    %v864 = vld [vmem:[#allocation2 + $0x8] sm:$0x3f]
    %v867 = vcombine.high %v863, %v863
    %v869 = vunpack.c.l.s4 1983009808
    %v870 = vunpack.c.0.s8 %v869
    %v871 = vlaneseq
    %v872 = vshrl.u32 %v871, 7
    %v873 = vsub.s32 %v870, %v872
    %v874 = vrot.slane %v863, %v873
    %v876 = vunpack.c.l.s4 1983009808
    %v877 = vunpack.c.0.s8 %v876
    %v878 = vlaneseq
    %v879 = vshrl.u32 %v878, 7
    %v880 = vsub.s32 %v877, %v879
    %v881 = vrot.slane %v867, %v880
    %v882 = vcombine.high %v874, %v874
    %v883 = vcombine.high %v881, %v881
    %v884 = vcombine.high %v864, %v864
    %v886 = vunpack.c.l.s4 1983009808
    %v887 = vunpack.c.0.s8 %v886
    %v888 = vlaneseq
    %v889 = vshrl.u32 %v888, 7
    %v890 = vsub.s32 %v887, %v889
    %v891 = vrot.slane %v864, %v890
    %v893 = vunpack.c.l.s4 1983009808
    %v894 = vunpack.c.0.s8 %v893
    %v895 = vlaneseq
    %v896 = vshrl.u32 %v895, 7
    %v897 = vsub.s32 %v894, %v896
    %v898 = vrot.slane %v884, %v897
    %v899 = vcombine.high %v891, %v891
    %900 = vrot.lane.b32.xlu0 %v874, 70
    %v901 = vpop.permute.xlu0 %900
    %902 = vrot.lane.b32.xlu0 %v882, 70
    %v903 = vpop.permute.xlu0 %902
    %904 = vrot.lane.b32.xlu0 %v881, 70
    %v905 = vpop.permute.xlu0 %904
    %906 = vrot.lane.b32.xlu0 %v883, 70
    %v907 = vpop.permute.xlu0 %906
    %908 = vrot.lane.b32.xlu0 %v891, 70
    %v909 = vpop.permute.xlu0 %908
    %910 = vrot.lane.b32.xlu0 %v899, 70
    %v911 = vpop.permute.xlu0 %910
    %912 = vrot.lane.b32.xlu0 %v898, 70
    %v913 = vpop.permute.xlu0 %912
    %vm914 = vcmask 572416
    %v915 = vsel %vm914, %v901, %v903
    %v916 = vsel %vm914, %v903, %v905
    %v917 = vsel %vm914, %v905, %v907
    %v918 = vsel %vm914, %v907, %v909
    %v919 = vsel %vm914, %v909, %v911
    %v920 = vsel %vm914, %v911, %v913
    %v928 = vsel %vm311, %v915, 0.0
    %v929 = vsel %vm312, %v916, 0.0
    %v930 = vsel %vm313, %v917, 0.0
    %v931 = vsel %vm314, %v918, 0.0
    %v932 = vsel %vm315, %v919, 0.0
    %v933 = vsel %vm316, %v920, 0.0
    %v934 = vsel %vm317, %v913, 0.0
    %935 = vst [vmem:[#allocation5 + $0x70] sm:$0x3] %v928
    %936 = vst [vmem:[#allocation5 + $0x78] sm:$0x3] %v929
    %937 = vst [vmem:[#allocation5 + $0x80] sm:$0x3] %v930
    %938 = vst [vmem:[#allocation5 + $0x88] sm:$0x3] %v931
    %939 = vst [vmem:[#allocation5 + $0x90] sm:$0x3] %v932
    %940 = vst [vmem:[#allocation5 + $0x98] sm:$0x3] %v933
    %941 = vst.msk [vmem:[#allocation5 + $0xa0] sm:$0x3] %vm227, %v934
    %v942 = vld [vmem:[#allocation5] sm:$0xff]
    %v943 = vld [vmem:[#allocation5 + $0x8] sm:$0xff]
    %v944 = vld [vmem:[#allocation5 + $0x10] sm:$0xff]
    %v945 = vld [vmem:[#allocation5 + $0x18] sm:$0xff]
    %v946 = vld [vmem:[#allocation5 + $0x20] sm:$0xff]
    %v947 = vld [vmem:[#allocation5 + $0x28] sm:$0xff]
    %v948 = vld [vmem:[#allocation5 + $0x30] sm:$0xff]
    %v949 = vld [vmem:[#allocation5 + $0x38] sm:$0xff]
    %v950 = vld [vmem:[#allocation5 + $0x40] sm:$0xff]
    %v951 = vld [vmem:[#allocation5 + $0x48] sm:$0xff]
    %v952 = vld [vmem:[#allocation5 + $0x50] sm:$0xff]
    %v953 = vld [vmem:[#allocation5 + $0x58] sm:$0xff]
    %v954 = vld [vmem:[#allocation5 + $0x60] sm:$0xff]
    %v955 = vld [vmem:[#allocation5 + $0x68] sm:$0xff]
    %v956 = vld [vmem:[#allocation5 + $0x70] sm:$0x3]
    %v957 = vld [vmem:[#allocation5 + $0x78] sm:$0x3]
    %v958 = vld [vmem:[#allocation5 + $0x80] sm:$0x3]
    %v959 = vld [vmem:[#allocation5 + $0x88] sm:$0x3]
    %v960 = vld [vmem:[#allocation5 + $0x90] sm:$0x3]
    %v961 = vld [vmem:[#allocation5 + $0x98] sm:$0x3]
    %v962 = vld [vmem:[#allocation5 + $0xa0] sm:$0x3]
    %v963 = vld [vmem:[%s4] sm:$0xff]
    %v964 = vld [vmem:[%s1] sm:$0xff]
    %966 = vset.pattern.permute.xlu0 0
    %967 = vperm.xlu0 %966, %v963
    %v968 = vpop.permute.xlu0 %967
    %vm970 = vcmask 146432
    %v972 = vsel %vm970, %v964, 0
    %v975 = vsel %vm75, %v956, 0
    %v978 = vsel %vm75, %v957, 0
    %v981 = vsel %vm75, %v958, 0
    %v984 = vsel %vm75, %v959, 0
    %v987 = vsel %vm75, %v960, 0
    %v990 = vsel %vm75, %v961, 0
    %v993 = vsel %vm75, %v962, 0
    %995 = vmatprep.subr.mxu0 0.0
    %996 = vmatpush1.msra.mxu0 0.0
    %997 = vmatprep.subr.mxu0 0.0
    %998 = vmatpush1.msra.mxu0 0.0
    %999 = vmatprep.subr.mxu0 0.0
    %1000 = vmatpush1.msra.mxu0 0.0
    %1001 = vmatprep.subr.mxu0 0.0
    %1002 = vmatpush1.msra.mxu0 0.0
    %1003 = vmatprep.subr.mxu0 0.0
    %1004 = vmatpush1.msra.mxu0 0.0
    %1005 = vmatprep.subr.mxu0 0.0
    %1006 = vmatpush1.msra.mxu0 0.0
    %1007 = vmatprep.subr.mxu0 0.0
    %1008 = vmatpush1.msra.mxu0 0.0
    %1009 = vmatprep.subr.mxu0 0.0
    %1010 = vmatpush1.msra.mxu0 0.0
    %1011 = vmatprep.subr.mxu0 0.0
    %1012 = vmatpush1.msra.mxu0 0.0
    %1013 = vmatprep.subr.mxu0 0.0
    %1014 = vmatpush1.msra.mxu0 0.0
    %1015 = vmatprep.subr.mxu0 0.0
    %1016 = vmatpush1.msra.mxu0 0.0
    %1017 = vmatprep.subr.mxu0 0.0
    %1018 = vmatpush1.msra.mxu0 0.0
    %1019 = vmatprep.subr.mxu0 0.0
    %1020 = vmatpush1.msra.mxu0 0.0
    %1021 = vmatprep.subr.mxu0 %v978
    %1022 = vmatpush1.msra.mxu0 %v975
    %1023 = vmatprep.subr.mxu0 %v950
    %1024 = vmatpush1.msra.mxu0 %v949
    %1025 = vmatprep.subr.mxu0 %v943
    %1026 = vmatpush1.msra.mxu0 %v942
    %1027 = vmatprep.subr.mxu0 0.0
    %1028 = vmatpush2.msra.mxu0 0.0
    %1029 = vmatprep.subr.mxu0 0.0
    %1030 = vmatpush2.msra.mxu0 0.0
    %1031 = vmatprep.subr.mxu0 0.0
    %1032 = vmatpush2.msra.mxu0 0.0
    %1033 = vmatprep.subr.mxu0 0.0
    %1034 = vmatpush2.msra.mxu0 0.0
    %1035 = vmatprep.subr.mxu0 0.0
    %1036 = vmatpush2.msra.mxu0 0.0
    %1037 = vmatprep.subr.mxu0 0.0
    %1038 = vmatpush2.msra.mxu0 0.0
    %1039 = vmatprep.subr.mxu0 0.0
    %1040 = vmatpush2.msra.mxu0 0.0
    %1041 = vmatprep.subr.mxu0 0.0
    %1042 = vmatpush2.msra.mxu0 0.0
    %1043 = vmatprep.subr.mxu0 0.0
    %1044 = vmatpush2.msra.mxu0 0.0
    %1045 = vmatprep.subr.mxu0 0.0
    %1046 = vmatpush2.msra.mxu0 0.0
    %1047 = vmatprep.subr.mxu0 0.0
    %1048 = vmatpush2.msra.mxu0 0.0
    %1049 = vmatprep.subr.mxu0 0.0
    %1050 = vmatpush2.msra.mxu0 0.0
    %1051 = vmatprep.subr.mxu0 0.0
    %1052 = vmatpush2.msra.mxu0 0.0
    %1053 = vmatprep.subr.mxu0 0.0
    %1054 = vmatpush2.msra.mxu0 0.0
    %1055 = vmatprep.subr.mxu0 0.0
    %1056 = vmatpush2.msra.mxu0 0.0
    %1057 = vmatprep.subr.mxu0 0.0
    %1058 = vmatpush2.msra.mxu0 0.0
    %1059 = vmatprep.mubr.f32.mxu0 0.0
    %1060 = vmatmul.mubr.f32.gmra.mxu0 %v972
    %v1061 = vpop.f32.mrf.mxu0
    %v1062 = vadd.f32 %v968, %v1061
    %v1063 = vpop.f32.mrf.mxu0
    %v1064 = vadd.f32 %v968, %v1063
    %1065 = vdwg.mxu0
    %1066 = vmatprep.subr.mxu0 0.0
    %1067 = vmatpush1.msra.mxu0 0.0
    %1068 = vmatprep.subr.mxu0 0.0
    %1069 = vmatpush1.msra.mxu0 0.0
    %1070 = vmatprep.subr.mxu0 0.0
    %1071 = vmatpush1.msra.mxu0 0.0
    %1072 = vmatprep.subr.mxu0 0.0
    %1073 = vmatpush1.msra.mxu0 0.0
    %1074 = vmatprep.subr.mxu0 0.0
    %1075 = vmatpush1.msra.mxu0 0.0
    %1076 = vmatprep.subr.mxu0 0.0
    %1077 = vmatpush1.msra.mxu0 0.0
    %1078 = vmatprep.subr.mxu0 0.0
    %1079 = vmatpush1.msra.mxu0 0.0
    %1080 = vmatprep.subr.mxu0 0.0
    %1081 = vmatpush1.msra.mxu0 0.0
    %1082 = vmatprep.subr.mxu0 0.0
    %1083 = vmatpush1.msra.mxu0 0.0
    %1084 = vmatprep.subr.mxu0 0.0
    %1085 = vmatpush1.msra.mxu0 0.0
    %1086 = vmatprep.subr.mxu0 0.0
    %1087 = vmatpush1.msra.mxu0 0.0
    %1088 = vmatprep.subr.mxu0 0.0
    %1089 = vmatpush1.msra.mxu0 0.0
    %1090 = vmatprep.subr.mxu0 0.0
    %1091 = vmatpush1.msra.mxu0 0.0
    %1092 = vmatprep.subr.mxu0 %v984
    %1093 = vmatpush1.msra.mxu0 %v981
    %1094 = vmatprep.subr.mxu0 %v952
    %1095 = vmatpush1.msra.mxu0 %v951
    %1096 = vmatprep.subr.mxu0 %v945
    %1097 = vmatpush1.msra.mxu0 %v944
    %1098 = vmatprep.subr.mxu0 0.0
    %1099 = vmatpush2.msra.mxu0 0.0
    %1100 = vmatprep.subr.mxu0 0.0
    %1101 = vmatpush2.msra.mxu0 0.0
    %1102 = vmatprep.subr.mxu0 0.0
    %1103 = vmatpush2.msra.mxu0 0.0
    %1104 = vmatprep.subr.mxu0 0.0
    %1105 = vmatpush2.msra.mxu0 0.0
    %1106 = vmatprep.subr.mxu0 0.0
    %1107 = vmatpush2.msra.mxu0 0.0
    %1108 = vmatprep.subr.mxu0 0.0
    %1109 = vmatpush2.msra.mxu0 0.0
    %1110 = vmatprep.subr.mxu0 0.0
    %1111 = vmatpush2.msra.mxu0 0.0
    %1112 = vmatprep.subr.mxu0 0.0
    %1113 = vmatpush2.msra.mxu0 0.0
    %1114 = vmatprep.subr.mxu0 0.0
    %1115 = vmatpush2.msra.mxu0 0.0
    %1116 = vmatprep.subr.mxu0 0.0
    %1117 = vmatpush2.msra.mxu0 0.0
    %1118 = vmatprep.subr.mxu0 0.0
    %1119 = vmatpush2.msra.mxu0 0.0
    %1120 = vmatprep.subr.mxu0 0.0
    %1121 = vmatpush2.msra.mxu0 0.0
    %1122 = vmatprep.subr.mxu0 0.0
    %1123 = vmatpush2.msra.mxu0 0.0
    %1124 = vmatprep.subr.mxu0 0.0
    %1125 = vmatpush2.msra.mxu0 0.0
    %1126 = vmatprep.subr.mxu0 0.0
    %1127 = vmatpush2.msra.mxu0 0.0
    %1128 = vmatprep.subr.mxu0 0.0
    %1129 = vmatpush2.msra.mxu0 0.0
    %1130 = vmatprep.mubr.f32.mxu0 0.0
    %1131 = vmatmul.mubr.f32.gmra.mxu0 %v972
    %v1132 = vpop.f32.mrf.mxu0
    %v1133 = vadd.f32 %v968, %v1132
    %v1134 = vpop.f32.mrf.mxu0
    %v1135 = vadd.f32 %v968, %v1134
    %1136 = vdwg.mxu0
    %1137 = vmatprep.subr.mxu0 0.0
    %1138 = vmatpush1.msra.mxu0 0.0
    %1139 = vmatprep.subr.mxu0 0.0
    %1140 = vmatpush1.msra.mxu0 0.0
    %1141 = vmatprep.subr.mxu0 0.0
    %1142 = vmatpush1.msra.mxu0 0.0
    %1143 = vmatprep.subr.mxu0 0.0
    %1144 = vmatpush1.msra.mxu0 0.0
    %1145 = vmatprep.subr.mxu0 0.0
    %1146 = vmatpush1.msra.mxu0 0.0
    %1147 = vmatprep.subr.mxu0 0.0
    %1148 = vmatpush1.msra.mxu0 0.0
    %1149 = vmatprep.subr.mxu0 0.0
    %1150 = vmatpush1.msra.mxu0 0.0
    %1151 = vmatprep.subr.mxu0 0.0
    %1152 = vmatpush1.msra.mxu0 0.0
    %1153 = vmatprep.subr.mxu0 0.0
    %1154 = vmatpush1.msra.mxu0 0.0
    %1155 = vmatprep.subr.mxu0 0.0
    %1156 = vmatpush1.msra.mxu0 0.0
    %1157 = vmatprep.subr.mxu0 0.0
    %1158 = vmatpush1.msra.mxu0 0.0
    %1159 = vmatprep.subr.mxu0 0.0
    %1160 = vmatpush1.msra.mxu0 0.0
    %1161 = vmatprep.subr.mxu0 0.0
    %1162 = vmatpush1.msra.mxu0 0.0
    %1163 = vmatprep.subr.mxu0 %v990
    %1164 = vmatpush1.msra.mxu0 %v987
    %1165 = vmatprep.subr.mxu0 %v954
    %1166 = vmatpush1.msra.mxu0 %v953
    %1167 = vmatprep.subr.mxu0 %v947
    %1168 = vmatpush1.msra.mxu0 %v946
    %1169 = vmatprep.subr.mxu0 0.0
    %1170 = vmatpush2.msra.mxu0 0.0
    %1171 = vmatprep.subr.mxu0 0.0
    %1172 = vmatpush2.msra.mxu0 0.0
    %1173 = vmatprep.subr.mxu0 0.0
    %1174 = vmatpush2.msra.mxu0 0.0
    %1175 = vmatprep.subr.mxu0 0.0
    %1176 = vmatpush2.msra.mxu0 0.0
    %1177 = vmatprep.subr.mxu0 0.0
    %1178 = vmatpush2.msra.mxu0 0.0
    %1179 = vmatprep.subr.mxu0 0.0
    %1180 = vmatpush2.msra.mxu0 0.0
    %1181 = vmatprep.subr.mxu0 0.0
    %1182 = vmatpush2.msra.mxu0 0.0
    %1183 = vmatprep.subr.mxu0 0.0
    %1184 = vmatpush2.msra.mxu0 0.0
    %1185 = vmatprep.subr.mxu0 0.0
    %1186 = vmatpush2.msra.mxu0 0.0
    %1187 = vmatprep.subr.mxu0 0.0
    %1188 = vmatpush2.msra.mxu0 0.0
    %1189 = vmatprep.subr.mxu0 0.0
    %1190 = vmatpush2.msra.mxu0 0.0
    %1191 = vmatprep.subr.mxu0 0.0
    %1192 = vmatpush2.msra.mxu0 0.0
    %1193 = vmatprep.subr.mxu0 0.0
    %1194 = vmatpush2.msra.mxu0 0.0
    %1195 = vmatprep.subr.mxu0 0.0
    %1196 = vmatpush2.msra.mxu0 0.0
    %1197 = vmatprep.subr.mxu0 0.0
    %1198 = vmatpush2.msra.mxu0 0.0
    %1199 = vmatprep.subr.mxu0 0.0
    %1200 = vmatpush2.msra.mxu0 0.0
    %1201 = vmatprep.mubr.f32.mxu0 0.0
    %1202 = vmatmul.mubr.f32.gmra.mxu0 %v972
    %v1203 = vpop.f32.mrf.mxu0
    %v1204 = vadd.f32 %v968, %v1203
    %v1205 = vpop.f32.mrf.mxu0
    %v1206 = vadd.f32 %v968, %v1205
    %1207 = vdwg.mxu0
    %1208 = vmatprep.subr.mxu0 0.0
    %1209 = vmatpush1.msra.mxu0 0.0
    %1210 = vmatprep.subr.mxu0 0.0
    %1211 = vmatpush1.msra.mxu0 0.0
    %1212 = vmatprep.subr.mxu0 0.0
    %1213 = vmatpush1.msra.mxu0 0.0
    %1214 = vmatprep.subr.mxu0 0.0
    %1215 = vmatpush1.msra.mxu0 0.0
    %1216 = vmatprep.subr.mxu0 0.0
    %1217 = vmatpush1.msra.mxu0 0.0
    %1218 = vmatprep.subr.mxu0 0.0
    %1219 = vmatpush1.msra.mxu0 0.0
    %1220 = vmatprep.subr.mxu0 0.0
    %1221 = vmatpush1.msra.mxu0 0.0
    %1222 = vmatprep.subr.mxu0 0.0
    %1223 = vmatpush1.msra.mxu0 0.0
    %1224 = vmatprep.subr.mxu0 0.0
    %1225 = vmatpush1.msra.mxu0 0.0
    %1226 = vmatprep.subr.mxu0 0.0
    %1227 = vmatpush1.msra.mxu0 0.0
    %1228 = vmatprep.subr.mxu0 0.0
    %1229 = vmatpush1.msra.mxu0 0.0
    %1230 = vmatprep.subr.mxu0 0.0
    %1231 = vmatpush1.msra.mxu0 0.0
    %1232 = vmatprep.subr.mxu0 0.0
    %1233 = vmatpush1.msra.mxu0 0.0
    %1234 = vmatprep.subr.mxu0 0.0
    %1235 = vmatpush1.msra.mxu0 %v993
    %1236 = vmatprep.subr.mxu0 0.0
    %1237 = vmatpush1.msra.mxu0 %v955
    %1238 = vmatprep.subr.mxu0 0.0
    %1239 = vmatpush1.msra.mxu0 %v948
    %1240 = vmatprep.subr.mxu0 0.0
    %1241 = vmatpush2.msra.mxu0 0.0
    %1242 = vmatprep.subr.mxu0 0.0
    %1243 = vmatpush2.msra.mxu0 0.0
    %1244 = vmatprep.subr.mxu0 0.0
    %1245 = vmatpush2.msra.mxu0 0.0
    %1246 = vmatprep.subr.mxu0 0.0
    %1247 = vmatpush2.msra.mxu0 0.0
    %1248 = vmatprep.subr.mxu0 0.0
    %1249 = vmatpush2.msra.mxu0 0.0
    %1250 = vmatprep.subr.mxu0 0.0
    %1251 = vmatpush2.msra.mxu0 0.0
    %1252 = vmatprep.subr.mxu0 0.0
    %1253 = vmatpush2.msra.mxu0 0.0
    %1254 = vmatprep.subr.mxu0 0.0
    %1255 = vmatpush2.msra.mxu0 0.0
    %1256 = vmatprep.subr.mxu0 0.0
    %1257 = vmatpush2.msra.mxu0 0.0
    %1258 = vmatprep.subr.mxu0 0.0
    %1259 = vmatpush2.msra.mxu0 0.0
    %1260 = vmatprep.subr.mxu0 0.0
    %1261 = vmatpush2.msra.mxu0 0.0
    %1262 = vmatprep.subr.mxu0 0.0
    %1263 = vmatpush2.msra.mxu0 0.0
    %1264 = vmatprep.subr.mxu0 0.0
    %1265 = vmatpush2.msra.mxu0 0.0
    %1266 = vmatprep.subr.mxu0 0.0
    %1267 = vmatpush2.msra.mxu0 0.0
    %1268 = vmatprep.subr.mxu0 0.0
    %1269 = vmatpush2.msra.mxu0 0.0
    %1270 = vmatprep.subr.mxu0 0.0
    %1271 = vmatpush2.msra.mxu0 0.0
    %1272 = vmatprep.mubr.f32.mxu0 0.0
    %1273 = vmatmul.mubr.f32.gmra.mxu0 %v972
    %v1274 = vpop.f32.mrf.mxu0
    %v1275 = vadd.f32 %v968, %v1274
    %v1276 = vpop.f32.mrf.mxu0
    %1277 = vdwg.mxu0
    %1278 = vst [vmem:[%s12] sm:$0xff] %v1062
    %1279 = vst [vmem:[%s12 + $0x8] sm:$0xff] %v1064
    %1280 = vst [vmem:[%s12 + $0x10] sm:$0xff] %v1133
    %1281 = vst [vmem:[%s12 + $0x18] sm:$0xff] %v1135
    %1282 = vst [vmem:[%s12 + $0x20] sm:$0xff] %v1204
    %1283 = vst [vmem:[%s12 + $0x28] sm:$0xff] %v1206
    %vm1284 = vcmask 130048
    %1285 = vst.msk [vmem:[%s12 + $0x30] sm:$0xff] %vm1284, %v1275
    %1286 = vset.pattern.permute.xlu0 1
    %1287 = vperm.xlu0 %1286, %v963
    %v1288 = vpop.permute.xlu0 %1287
    %v1290 = vmul.f32 %v1062, %v1288
    %v1291 = vmul.f32 %v1064, %v1288
    %v1292 = vmul.f32 %v1133, %v1288
    %v1293 = vmul.f32 %v1135, %v1288
    %v1294 = vmul.f32 %v1204, %v1288
    %v1295 = vmul.f32 %v1206, %v1288
    %v1296 = vmul.f32 %v1275, %v1288
    %1297 = vset.pattern.permute.xlu0 2
    %1298 = vperm.xlu0 %1297, %v963
    %v1299 = vpop.permute.xlu0 %1298
    %v1301 = vadd.f32 %v1290, %v1299
    %v1302 = vadd.f32 %v1291, %v1299
    %v1303 = vadd.f32 %v1292, %v1299
    %v1304 = vadd.f32 %v1293, %v1299
    %v1305 = vadd.f32 %v1294, %v1299
    %v1306 = vadd.f32 %v1295, %v1299
    %v1307 = vadd.f32 %v1296, %v1299
    %vm1308 = vcmp.gt.f32.partialorder %v1301, 0.0
    %vm1309 = vcmp.gt.f32.partialorder %v1302, 0.0
    %vm1310 = vcmp.gt.f32.partialorder %v1303, 0.0
    %vm1311 = vcmp.gt.f32.partialorder %v1304, 0.0
    %vm1312 = vcmp.gt.f32.partialorder %v1305, 0.0
    %vm1313 = vcmp.gt.f32.partialorder %v1306, 0.0
    %vm1314 = vcmp.gt.f32.partialorder %v1307, 0.0
    %v1315 = vmul.f32 %v1301, 0.01
    %v1316 = vmul.f32 %v1302, 0.01
    %v1317 = vmul.f32 %v1303, 0.01
    %v1318 = vmul.f32 %v1304, 0.01
    %v1319 = vmul.f32 %v1305, 0.01
    %v1320 = vmul.f32 %v1306, 0.01
    %v1321 = vmul.f32 %v1307, 0.01
    %v1322 = vsel %vm1308, %v1301, %v1315
    %v1323 = vsel %vm1309, %v1302, %v1316
    %v1324 = vsel %vm1310, %v1303, %v1317
    %v1325 = vsel %vm1311, %v1304, %v1318
    %v1326 = vsel %vm1312, %v1305, %v1319
    %v1327 = vsel %vm1313, %v1306, %v1320
    %v1328 = vsel %vm1314, %v1307, %v1321
    %1329 = vst [vmem:[%s13] sm:$0xff] %v1322
    %1330 = vst [vmem:[%s13 + $0x8] sm:$0xff] %v1323
    %1331 = vst [vmem:[%s13 + $0x10] sm:$0xff] %v1324
    %1332 = vst [vmem:[%s13 + $0x18] sm:$0xff] %v1325
    %1333 = vst [vmem:[%s13 + $0x20] sm:$0xff] %v1326
    %1334 = vst [vmem:[%s13 + $0x28] sm:$0xff] %v1327
    %1335 = vst.msk [vmem:[%s13 + $0x30] sm:$0xff] %vm1284, %v1328
    %vm1336 = vcmask 1047680
    %1337 = vrot.lane.b32.xlu0 %v1322, 16
    %v1338 = vpop.permute.xlu0 %1337
    %v1339 = vsel %vm1336, %v1338, %v1328
    %1347 = vrot.lane.b32.xlu0 %v1322, 127
    %v1348 = vpop.permute.xlu0 %1347
    %1349 = vrot.lane.b32.xlu0 %v1323, 127
    %v1350 = vpop.permute.xlu0 %1349
    %1351 = vrot.lane.b32.xlu0 %v1324, 127
    %v1352 = vpop.permute.xlu0 %1351
    %1353 = vrot.lane.b32.xlu0 %v1325, 127
    %v1354 = vpop.permute.xlu0 %1353
    %1355 = vrot.lane.b32.xlu0 %v1326, 127
    %v1356 = vpop.permute.xlu0 %1355
    %1357 = vrot.lane.b32.xlu0 %v1327, 127
    %v1358 = vpop.permute.xlu0 %1357
    %1359 = vrot.lane.b32.xlu0 %v1339, 127
    %v1360 = vpop.permute.xlu0 %1359
    %v1361 = vsel %vm280, %v1348, %v1350
    %v1362 = vsel %vm280, %v1350, %v1352
    %v1363 = vsel %vm280, %v1352, %v1354
    %v1364 = vsel %vm280, %v1354, %v1356
    %v1365 = vsel %vm280, %v1356, %v1358
    %v1366 = vsel %vm280, %v1358, %v1360
    %v1374 = vmax.f32 %v1322, %v1361
    %v1375 = vmax.f32 %v1323, %v1362
    %v1376 = vmax.f32 %v1324, %v1363
    %v1377 = vmax.f32 %v1325, %v1364
    %v1378 = vmax.f32 %v1326, %v1365
    %v1379 = vmax.f32 %v1327, %v1366
    %v1380 = vmax.f32 %v1328, %v1360
    %v1381 = vmax.f32 %v1339, %v1360
    %1389 = vrot.lane.b32.xlu0 %v1374, 100
    %v1390 = vpop.permute.xlu0 %1389
    %1391 = vrot.lane.b32.xlu0 %v1375, 100
    %v1392 = vpop.permute.xlu0 %1391
    %1393 = vrot.lane.b32.xlu0 %v1376, 100
    %v1394 = vpop.permute.xlu0 %1393
    %1395 = vrot.lane.b32.xlu0 %v1377, 100
    %v1396 = vpop.permute.xlu0 %1395
    %1397 = vrot.lane.b32.xlu0 %v1378, 100
    %v1398 = vpop.permute.xlu0 %1397
    %1399 = vrot.lane.b32.xlu0 %v1379, 100
    %v1400 = vpop.permute.xlu0 %1399
    %1401 = vrot.lane.b32.xlu0 %v1381, 100
    %v1402 = vpop.permute.xlu0 %1401
    %v1403 = vsel %vm468, %v1390, %v1392
    %v1404 = vsel %vm468, %v1392, %v1394
    %v1405 = vsel %vm468, %v1394, %v1396
    %v1406 = vsel %vm468, %v1396, %v1398
    %v1407 = vsel %vm468, %v1398, %v1400
    %v1408 = vsel %vm468, %v1400, %v1402
    %v1416 = vmax.f32 %v1374, %v1403
    %v1417 = vmax.f32 %v1375, %v1404
    %v1418 = vmax.f32 %v1376, %v1405
    %v1419 = vmax.f32 %v1377, %v1406
    %v1420 = vmax.f32 %v1378, %v1407
    %v1421 = vmax.f32 %v1379, %v1408
    %v1422 = vmax.f32 %v1380, %v1402
    %v1423 = vpack.c.bf16 %v1416, %v1416
    %v1424 = vpack.c.bf16 %v1417, %v1417
    %v1425 = vpack.c.bf16 %v1418, %v1418
    %v1426 = vpack.c.bf16 %v1419, %v1419
    %v1427 = vpack.c.bf16 %v1420, %v1420
    %v1428 = vpack.c.bf16 %v1421, %v1421
    %v1429 = vpack.c.bf16 %v1422, %v1422
    %v1430 = vld [vmem:[%s5] sm:$0xff]
    %v1431 = vld [vmem:[%s5 + $0x8] sm:$0xff]
    %v1432 = vld [vmem:[%s5 + $0x10] sm:$0xff]
    %v1433 = vld [vmem:[%s5 + $0x18] sm:$0xff]
    %v1434 = vld [vmem:[%s5 + $0x20] sm:$0xff]
    %v1435 = vld [vmem:[%s5 + $0x28] sm:$0xff]
    %v1436 = vld [vmem:[%s5 + $0x30] sm:$0xff]
    %v1437 = vld [vmem:[%s5 + $0x38] sm:$0xff]
    %v1438 = vld [vmem:[%s5 + $0x40] sm:$0xff]
    %v1439 = vld [vmem:[%s5 + $0x48] sm:$0xff]
    %v1440 = vld [vmem:[%s5 + $0x50] sm:$0xff]
    %v1441 = vld [vmem:[%s5 + $0x58] sm:$0xff]
    %v1442 = vld [vmem:[%s5 + $0x60] sm:$0xff]
    %v1443 = vld [vmem:[%s5 + $0x68] sm:$0xff]
    %v1444 = vld [vmem:[%s5 + $0x70] sm:$0xff]
    %v1445 = vld [vmem:[%s5 + $0x78] sm:$0xff]
    %v1446 = vld [vmem:[%s5 + $0x80] sm:$0xff]
    %v1447 = vld [vmem:[%s5 + $0x88] sm:$0xff]
    %v1448 = vld [vmem:[%s5 + $0x90] sm:$0xff]
    %v1449 = vld [vmem:[%s5 + $0x98] sm:$0xff]
    %v1450 = vld [vmem:[%s5 + $0xa0] sm:$0xff]
    %v1451 = vld [vmem:[%s5 + $0xa8] sm:$0xff]
    %v1452 = vld [vmem:[%s5 + $0xb0] sm:$0xff]
    %v1453 = vld [vmem:[%s5 + $0xb8] sm:$0xff]
    %v1454 = vld [vmem:[%s5 + $0xc0] sm:$0xff]
    %v1455 = vld [vmem:[%s5 + $0xc8] sm:$0xff]
    %v1456 = vld [vmem:[%s5 + $0xd0] sm:$0xff]
    %v1457 = vld [vmem:[%s5 + $0xd8] sm:$0xff]
    %v1458 = vld [vmem:[%s5 + $0xe0] sm:$0xff]
    %v1459 = vld [vmem:[%s5 + $0xe8] sm:$0xff]
    %v1460 = vld [vmem:[%s5 + $0xf0] sm:$0xff]
    %v1461 = vld [vmem:[%s5 + $0xf8] sm:$0xff]
    %v1462 = vld [vmem:[%s5 + $0x100] sm:$0xff]
    %v1463 = vld [vmem:[%s5 + $0x108] sm:$0xff]
    %v1464 = vld [vmem:[%s5 + $0x110] sm:$0xff]
    %v1465 = vld [vmem:[%s5 + $0x118] sm:$0xff]
    %v1466 = vld [vmem:[%s5 + $0x120] sm:$0xff]
    %v1467 = vld [vmem:[%s5 + $0x128] sm:$0xff]
    %v1468 = vld [vmem:[%s5 + $0x130] sm:$0xff]
    %v1469 = vld [vmem:[%s5 + $0x138] sm:$0xff]
    %v1470 = vld [vmem:[%s5 + $0x140] sm:$0xff]
    %v1471 = vld [vmem:[%s5 + $0x148] sm:$0xff]
    %v1472 = vld [vmem:[%s5 + $0x150] sm:$0xff]
    %v1473 = vld [vmem:[%s5 + $0x158] sm:$0xff]
    %v1474 = vld [vmem:[%s5 + $0x160] sm:$0xff]
    %v1475 = vld [vmem:[%s5 + $0x168] sm:$0xff]
    %v1476 = vld [vmem:[%s5 + $0x170] sm:$0xff]
    %v1477 = vld [vmem:[%s5 + $0x178] sm:$0xff]
    %v1478 = vld [vmem:[%s5 + $0x180] sm:$0xff]
    %v1479 = vld [vmem:[%s5 + $0x188] sm:$0xff]
    %v1480 = vld [vmem:[%s5 + $0x190] sm:$0xff]
    %v1481 = vld [vmem:[%s5 + $0x198] sm:$0xff]
    %v1482 = vld [vmem:[%s5 + $0x1a0] sm:$0xff]
    %v1483 = vld [vmem:[%s5 + $0x1a8] sm:$0xff]
    %v1484 = vld [vmem:[%s5 + $0x1b0] sm:$0xff]
    %v1485 = vld [vmem:[%s5 + $0x1b8] sm:$0xff]
    %v1486 = vld [vmem:[%s5 + $0x1c0] sm:$0xff]
    %v1487 = vld [vmem:[%s5 + $0x1c8] sm:$0xff]
    %v1488 = vld [vmem:[%s5 + $0x1d0] sm:$0xff]
    %v1489 = vld [vmem:[%s5 + $0x1d8] sm:$0xff]
    %v1490 = vld [vmem:[%s5 + $0x1e0] sm:$0xff]
    %v1491 = vld [vmem:[%s5 + $0x1e8] sm:$0xff]
    %v1492 = vld [vmem:[%s5 + $0x1f0] sm:$0xff]
    %v1493 = vld [vmem:[%s5 + $0x1f8] sm:$0xff]
    %v1494 = vld [vmem:[%s5 + $0x200] sm:$0xff]
    %v1495 = vld [vmem:[%s5 + $0x208] sm:$0xff]
    %v1496 = vld [vmem:[%s5 + $0x210] sm:$0xff]
    %v1497 = vld [vmem:[%s5 + $0x218] sm:$0xff]
    %v1498 = vld [vmem:[%s5 + $0x220] sm:$0xff]
    %v1499 = vld [vmem:[%s5 + $0x228] sm:$0xff]
    %v1500 = vld [vmem:[%s5 + $0x230] sm:$0xff]
    %v1501 = vld [vmem:[%s5 + $0x238] sm:$0xff]
    %v1502 = vld [vmem:[%s5 + $0x240] sm:$0xff]
    %v1503 = vld [vmem:[%s5 + $0x248] sm:$0xff]
    %v1504 = vld [vmem:[%s5 + $0x250] sm:$0xff]
    %v1505 = vld [vmem:[%s5 + $0x258] sm:$0xff]
    %v1506 = vld [vmem:[%s5 + $0x260] sm:$0xff]
    %v1507 = vld [vmem:[%s5 + $0x268] sm:$0xff]
    %v1508 = vld [vmem:[%s5 + $0x270] sm:$0xff]
    %v1509 = vld [vmem:[%s5 + $0x278] sm:$0xff]
    %v1510 = vld [vmem:[%s5 + $0x280] sm:$0xff]
    %v1511 = vld [vmem:[%s5 + $0x288] sm:$0xff]
    %v1512 = vld [vmem:[%s5 + $0x290] sm:$0xff]
    %v1513 = vld [vmem:[%s5 + $0x298] sm:$0xff]
    %v1514 = vld [vmem:[%s5 + $0x2a0] sm:$0xff]
    %v1515 = vld [vmem:[%s5 + $0x2a8] sm:$0xff]
    %v1516 = vld [vmem:[%s5 + $0x2b0] sm:$0xff]
    %v1517 = vld [vmem:[%s5 + $0x2b8] sm:$0xff]
    %v1518 = vld [vmem:[%s5 + $0x2c0] sm:$0xff]
    %v1519 = vld [vmem:[%s5 + $0x2c8] sm:$0xff]
    %v1520 = vld [vmem:[%s5 + $0x2d0] sm:$0xff]
    %v1521 = vld [vmem:[%s5 + $0x2d8] sm:$0xff]
    %v1522 = vld [vmem:[%s5 + $0x2e0] sm:$0xff]
    %v1523 = vld [vmem:[%s5 + $0x2e8] sm:$0xff]
    %v1524 = vld [vmem:[%s5 + $0x2f0] sm:$0xff]
    %v1525 = vld [vmem:[%s5 + $0x2f8] sm:$0xff]
    %v1526 = vld [vmem:[%s5 + $0x300] sm:$0xff]
    %v1527 = vld [vmem:[%s5 + $0x308] sm:$0xff]
    %v1626 = vunpack.c.l.b16 %v1430
    %v1627 = vunpack.c.h.b16 %v1430
    %v1628 = vunpack.c.l.b16 %v1431
    %v1629 = vunpack.c.h.b16 %v1431
    %v1630 = vunpack.c.l.b16 %v1432
    %v1631 = vunpack.c.h.b16 %v1432
    %v1632 = vunpack.c.l.b16 %v1433
    %v1633 = vunpack.c.h.b16 %v1433
    %v1634 = vunpack.c.l.b16 %v1434
    %v1635 = vunpack.c.h.b16 %v1434
    %v1636 = vunpack.c.l.b16 %v1435
    %v1637 = vunpack.c.h.b16 %v1435
    %v1638 = vunpack.c.l.b16 %v1436
    %v1639 = vunpack.c.h.b16 %v1436
    %v1640 = vunpack.c.l.b16 %v1437
    %v1641 = vunpack.c.h.b16 %v1437
    %v1642 = vunpack.c.l.b16 %v1438
    %v1643 = vunpack.c.h.b16 %v1438
    %v1644 = vunpack.c.l.b16 %v1439
    %v1645 = vunpack.c.h.b16 %v1439
    %v1646 = vunpack.c.l.b16 %v1440
    %v1647 = vunpack.c.h.b16 %v1440
    %v1648 = vunpack.c.l.b16 %v1441
    %v1649 = vunpack.c.h.b16 %v1441
    %v1650 = vunpack.c.l.b16 %v1442
    %v1651 = vunpack.c.h.b16 %v1442
    %v1652 = vunpack.c.l.b16 %v1443
    %v1653 = vunpack.c.h.b16 %v1443
    %v1654 = vunpack.c.l.b16 %v1444
    %v1655 = vunpack.c.h.b16 %v1444
    %v1656 = vunpack.c.l.b16 %v1445
    %v1657 = vunpack.c.h.b16 %v1445
    %v1658 = vunpack.c.l.b16 %v1446
    %v1659 = vunpack.c.h.b16 %v1446
    %v1660 = vunpack.c.l.b16 %v1447
    %v1661 = vunpack.c.h.b16 %v1447
    %v1662 = vunpack.c.l.b16 %v1448
    %v1663 = vunpack.c.h.b16 %v1448
    %v1664 = vunpack.c.l.b16 %v1449
    %v1665 = vunpack.c.h.b16 %v1449
    %v1666 = vunpack.c.l.b16 %v1450
    %v1667 = vunpack.c.h.b16 %v1450
    %v1668 = vunpack.c.l.b16 %v1451
    %v1669 = vunpack.c.h.b16 %v1451
    %v1670 = vunpack.c.l.b16 %v1452
    %v1671 = vunpack.c.h.b16 %v1452
    %v1672 = vunpack.c.l.b16 %v1453
    %v1673 = vunpack.c.h.b16 %v1453
    %v1674 = vunpack.c.l.b16 %v1454
    %v1675 = vunpack.c.h.b16 %v1454
    %v1676 = vunpack.c.l.b16 %v1455
    %v1677 = vunpack.c.h.b16 %v1455
    %v1678 = vunpack.c.l.b16 %v1456
    %v1679 = vunpack.c.h.b16 %v1456
    %v1680 = vunpack.c.l.b16 %v1457
    %v1681 = vunpack.c.h.b16 %v1457
    %v1682 = vunpack.c.l.b16 %v1458
    %v1683 = vunpack.c.h.b16 %v1458
    %v1684 = vunpack.c.l.b16 %v1459
    %v1685 = vunpack.c.h.b16 %v1459
    %v1686 = vunpack.c.l.b16 %v1460
    %v1687 = vunpack.c.h.b16 %v1460
    %v1688 = vunpack.c.l.b16 %v1461
    %v1689 = vunpack.c.h.b16 %v1461
    %v1690 = vunpack.c.l.b16 %v1462
    %v1691 = vunpack.c.h.b16 %v1462
    %v1692 = vunpack.c.l.b16 %v1463
    %v1693 = vunpack.c.h.b16 %v1463
    %v1694 = vunpack.c.l.b16 %v1464
    %v1695 = vunpack.c.h.b16 %v1464
    %v1696 = vunpack.c.l.b16 %v1465
    %v1697 = vunpack.c.h.b16 %v1465
    %v1698 = vunpack.c.l.b16 %v1466
    %v1699 = vunpack.c.h.b16 %v1466
    %v1700 = vunpack.c.l.b16 %v1467
    %v1701 = vunpack.c.h.b16 %v1467
    %v1702 = vunpack.c.l.b16 %v1468
    %v1703 = vunpack.c.h.b16 %v1468
    %v1704 = vunpack.c.l.b16 %v1469
    %v1705 = vunpack.c.h.b16 %v1469
    %v1706 = vunpack.c.l.b16 %v1470
    %v1707 = vunpack.c.h.b16 %v1470
    %v1708 = vunpack.c.l.b16 %v1471
    %v1709 = vunpack.c.h.b16 %v1471
    %v1710 = vunpack.c.l.b16 %v1472
    %v1711 = vunpack.c.h.b16 %v1472
    %v1712 = vunpack.c.l.b16 %v1473
    %v1713 = vunpack.c.h.b16 %v1473
    %v1714 = vunpack.c.l.b16 %v1474
    %v1715 = vunpack.c.h.b16 %v1474
    %v1716 = vunpack.c.l.b16 %v1475
    %v1717 = vunpack.c.h.b16 %v1475
    %v1718 = vunpack.c.l.b16 %v1476
    %v1719 = vunpack.c.h.b16 %v1476
    %v1720 = vunpack.c.l.b16 %v1477
    %v1721 = vunpack.c.h.b16 %v1477
    %v1722 = vunpack.c.l.b16 %v1478
    %v1723 = vunpack.c.h.b16 %v1478
    %v1724 = vunpack.c.l.b16 %v1479
    %v1725 = vunpack.c.h.b16 %v1479
    %v1726 = vunpack.c.l.b16 %v1480
    %v1727 = vunpack.c.h.b16 %v1480
    %v1728 = vunpack.c.l.b16 %v1481
    %v1729 = vunpack.c.h.b16 %v1481
    %v1730 = vunpack.c.l.b16 %v1482
    %v1731 = vunpack.c.h.b16 %v1482
    %v1732 = vunpack.c.l.b16 %v1483
    %v1733 = vunpack.c.h.b16 %v1483
    %v1734 = vunpack.c.l.b16 %v1484
    %v1735 = vunpack.c.h.b16 %v1484
    %v1736 = vunpack.c.l.b16 %v1485
    %v1737 = vunpack.c.h.b16 %v1485
    %v1738 = vunpack.c.l.b16 %v1486
    %v1739 = vunpack.c.h.b16 %v1486
    %v1740 = vunpack.c.l.b16 %v1487
    %v1741 = vunpack.c.h.b16 %v1487
    %v1742 = vunpack.c.l.b16 %v1488
    %v1743 = vunpack.c.h.b16 %v1488
    %v1744 = vunpack.c.l.b16 %v1489
    %v1745 = vunpack.c.h.b16 %v1489
    %v1746 = vunpack.c.l.b16 %v1490
    %v1747 = vunpack.c.h.b16 %v1490
    %v1748 = vunpack.c.l.b16 %v1491
    %v1749 = vunpack.c.h.b16 %v1491
    %v1750 = vunpack.c.l.b16 %v1492
    %v1751 = vunpack.c.h.b16 %v1492
    %v1752 = vunpack.c.l.b16 %v1493
    %v1753 = vunpack.c.h.b16 %v1493
    %v1754 = vunpack.c.l.b16 %v1494
    %v1755 = vunpack.c.h.b16 %v1494
    %v1756 = vunpack.c.l.b16 %v1495
    %v1757 = vunpack.c.h.b16 %v1495
    %v1758 = vunpack.c.l.b16 %v1496
    %v1759 = vunpack.c.h.b16 %v1496
    %v1760 = vunpack.c.l.b16 %v1497
    %v1761 = vunpack.c.h.b16 %v1497
    %v1762 = vunpack.c.l.b16 %v1498
    %v1763 = vunpack.c.h.b16 %v1498
    %v1764 = vunpack.c.l.b16 %v1499
    %v1765 = vunpack.c.h.b16 %v1499
    %v1766 = vunpack.c.l.b16 %v1500
    %v1767 = vunpack.c.h.b16 %v1500
    %v1768 = vunpack.c.l.b16 %v1501
    %v1769 = vunpack.c.h.b16 %v1501
    %v1770 = vunpack.c.l.b16 %v1502
    %v1771 = vunpack.c.h.b16 %v1502
    %v1772 = vunpack.c.l.b16 %v1503
    %v1773 = vunpack.c.h.b16 %v1503
    %v1774 = vunpack.c.l.b16 %v1504
    %v1775 = vunpack.c.h.b16 %v1504
    %v1776 = vunpack.c.l.b16 %v1505
    %v1777 = vunpack.c.h.b16 %v1505
    %v1778 = vunpack.c.l.b16 %v1506
    %v1779 = vunpack.c.h.b16 %v1506
    %v1780 = vunpack.c.l.b16 %v1507
    %v1781 = vunpack.c.h.b16 %v1507
    %v1782 = vunpack.c.l.b16 %v1508
    %v1783 = vunpack.c.h.b16 %v1508
    %v1784 = vunpack.c.l.b16 %v1509
    %v1785 = vunpack.c.h.b16 %v1509
    %v1786 = vunpack.c.l.b16 %v1510
    %v1787 = vunpack.c.h.b16 %v1510
    %v1788 = vunpack.c.l.b16 %v1511
    %v1789 = vunpack.c.h.b16 %v1511
    %v1790 = vunpack.c.l.b16 %v1512
    %v1791 = vunpack.c.h.b16 %v1512
    %v1792 = vunpack.c.l.b16 %v1513
    %v1793 = vunpack.c.h.b16 %v1513
    %v1794 = vunpack.c.l.b16 %v1514
    %v1795 = vunpack.c.h.b16 %v1514
    %v1796 = vunpack.c.l.b16 %v1515
    %v1797 = vunpack.c.h.b16 %v1515
    %v1798 = vunpack.c.l.b16 %v1516
    %v1799 = vunpack.c.h.b16 %v1516
    %v1800 = vunpack.c.l.b16 %v1517
    %v1801 = vunpack.c.h.b16 %v1517
    %v1802 = vunpack.c.l.b16 %v1518
    %v1803 = vunpack.c.h.b16 %v1518
    %v1804 = vunpack.c.l.b16 %v1519
    %v1805 = vunpack.c.h.b16 %v1519
    %v1806 = vunpack.c.l.b16 %v1520
    %v1807 = vunpack.c.h.b16 %v1520
    %v1808 = vunpack.c.l.b16 %v1521
    %v1809 = vunpack.c.h.b16 %v1521
    %v1810 = vunpack.c.l.b16 %v1522
    %v1811 = vunpack.c.h.b16 %v1522
    %v1812 = vunpack.c.l.b16 %v1523
    %v1813 = vunpack.c.h.b16 %v1523
    %v1814 = vunpack.c.l.b16 %v1524
    %v1815 = vunpack.c.h.b16 %v1524
    %v1816 = vunpack.c.l.b16 %v1525
    %v1817 = vunpack.c.h.b16 %v1525
    %v1818 = vunpack.c.l.b16 %v1526
    %v1819 = vunpack.c.h.b16 %v1526
    %v1820 = vunpack.c.l.b16 %v1527
    %v1821 = vunpack.c.h.b16 %v1527
    %v1822 = vpack.c.b16 %v1628, %v1626
    %v1823 = vpack.c.b16 %v1629, %v1627
    %v1824 = vpack.c.b16 %v1632, %v1630
    %v1825 = vpack.c.b16 %v1633, %v1631
    %v1826 = vpack.c.b16 %v1636, %v1634
    %v1827 = vpack.c.b16 %v1637, %v1635
    %v1828 = vpack.c.b16 %v1640, %v1638
    %v1829 = vpack.c.b16 %v1641, %v1639
    %v1830 = vpack.c.b16 %v1644, %v1642
    %v1831 = vpack.c.b16 %v1645, %v1643
    %v1832 = vpack.c.b16 %v1648, %v1646
    %v1833 = vpack.c.b16 %v1649, %v1647
    %v1834 = vpack.c.b16 %v1652, %v1650
    %v1835 = vpack.c.b16 %v1653, %v1651
    %v1836 = vpack.c.b16 %v1656, %v1654
    %v1837 = vpack.c.b16 %v1657, %v1655
    %v1838 = vpack.c.b16 %v1660, %v1658
    %v1839 = vpack.c.b16 %v1661, %v1659
    %v1840 = vpack.c.b16 %v1664, %v1662
    %v1841 = vpack.c.b16 %v1665, %v1663
    %v1842 = vpack.c.b16 %v1668, %v1666
    %v1843 = vpack.c.b16 %v1669, %v1667
    %v1844 = vpack.c.b16 %v1672, %v1670
    %v1845 = vpack.c.b16 %v1673, %v1671
    %v1846 = vpack.c.b16 %v1676, %v1674
    %v1847 = vpack.c.b16 %v1677, %v1675
    %v1848 = vpack.c.b16 %v1680, %v1678
    %v1849 = vpack.c.b16 %v1681, %v1679
    %v1850 = vpack.c.b16 %v1684, %v1682
    %v1851 = vpack.c.b16 %v1685, %v1683
    %v1852 = vpack.c.b16 %v1688, %v1686
    %v1853 = vpack.c.b16 %v1689, %v1687
    %v1854 = vpack.c.b16 %v1692, %v1690
    %v1855 = vpack.c.b16 %v1693, %v1691
    %v1856 = vpack.c.b16 %v1696, %v1694
    %v1857 = vpack.c.b16 %v1697, %v1695
    %v1858 = vpack.c.b16 %v1700, %v1698
    %v1859 = vpack.c.b16 %v1701, %v1699
    %v1860 = vpack.c.b16 %v1704, %v1702
    %v1861 = vpack.c.b16 %v1705, %v1703
    %v1862 = vpack.c.b16 %v1708, %v1706
    %v1863 = vpack.c.b16 %v1709, %v1707
    %v1864 = vpack.c.b16 %v1712, %v1710
    %v1865 = vpack.c.b16 %v1713, %v1711
    %v1866 = vpack.c.b16 %v1716, %v1714
    %v1867 = vpack.c.b16 %v1717, %v1715
    %v1868 = vpack.c.b16 %v1720, %v1718
    %v1869 = vpack.c.b16 %v1721, %v1719
    %v1870 = vpack.c.b16 %v1724, %v1722
    %v1871 = vpack.c.b16 %v1725, %v1723
    %v1872 = vpack.c.b16 %v1728, %v1726
    %v1873 = vpack.c.b16 %v1729, %v1727
    %v1874 = vpack.c.b16 %v1732, %v1730
    %v1875 = vpack.c.b16 %v1733, %v1731
    %v1876 = vpack.c.b16 %v1736, %v1734
    %v1877 = vpack.c.b16 %v1737, %v1735
    %v1878 = vpack.c.b16 %v1740, %v1738
    %v1879 = vpack.c.b16 %v1741, %v1739
    %v1880 = vpack.c.b16 %v1744, %v1742
    %v1881 = vpack.c.b16 %v1745, %v1743
    %v1882 = vpack.c.b16 %v1748, %v1746
    %v1883 = vpack.c.b16 %v1749, %v1747
    %v1884 = vpack.c.b16 %v1752, %v1750
    %v1885 = vpack.c.b16 %v1753, %v1751
    %v1886 = vpack.c.b16 %v1756, %v1754
    %v1887 = vpack.c.b16 %v1757, %v1755
    %v1888 = vpack.c.b16 %v1760, %v1758
    %v1889 = vpack.c.b16 %v1761, %v1759
    %v1890 = vpack.c.b16 %v1764, %v1762
    %v1891 = vpack.c.b16 %v1765, %v1763
    %v1892 = vpack.c.b16 %v1768, %v1766
    %v1893 = vpack.c.b16 %v1769, %v1767
    %v1894 = vpack.c.b16 %v1772, %v1770
    %v1895 = vpack.c.b16 %v1773, %v1771
    %v1896 = vpack.c.b16 %v1776, %v1774
    %v1897 = vpack.c.b16 %v1777, %v1775
    %v1898 = vpack.c.b16 %v1780, %v1778
    %v1899 = vpack.c.b16 %v1781, %v1779
    %v1900 = vpack.c.b16 %v1784, %v1782
    %v1901 = vpack.c.b16 %v1785, %v1783
    %v1902 = vpack.c.b16 %v1788, %v1786
    %v1903 = vpack.c.b16 %v1789, %v1787
    %v1904 = vpack.c.b16 %v1792, %v1790
    %v1905 = vpack.c.b16 %v1793, %v1791
    %v1906 = vpack.c.b16 %v1796, %v1794
    %v1907 = vpack.c.b16 %v1797, %v1795
    %v1908 = vpack.c.b16 %v1800, %v1798
    %v1909 = vpack.c.b16 %v1801, %v1799
    %v1910 = vpack.c.b16 %v1804, %v1802
    %v1911 = vpack.c.b16 %v1805, %v1803
    %v1912 = vpack.c.b16 %v1808, %v1806
    %v1913 = vpack.c.b16 %v1809, %v1807
    %v1914 = vpack.c.b16 %v1812, %v1810
    %v1915 = vpack.c.b16 %v1813, %v1811
    %v1916 = vpack.c.b16 %v1816, %v1814
    %v1917 = vpack.c.b16 %v1817, %v1815
    %v1918 = vpack.c.b16 %v1820, %v1818
    %v1919 = vpack.c.b16 %v1821, %v1819
    %v2019 = vsel %vm1284, %v1429, 0
    %2021 = vmatprep.subr.bf16.mxu0 %v1837
    %2022 = vmatpush1.bf16.msra.mxu0 %v1836
    %2023 = vmatprep.subr.bf16.mxu0 %v1835
    %2024 = vmatpush1.bf16.msra.mxu0 %v1834
    %2025 = vmatprep.subr.bf16.mxu0 %v1833
    %2026 = vmatpush1.bf16.msra.mxu0 %v1832
    %2027 = vmatprep.subr.bf16.mxu0 %v1831
    %2028 = vmatpush1.bf16.msra.mxu0 %v1830
    %2029 = vmatprep.subr.bf16.mxu0 %v1829
    %2030 = vmatpush1.bf16.msra.mxu0 %v1828
    %2031 = vmatprep.subr.bf16.mxu0 %v1827
    %2032 = vmatpush1.bf16.msra.mxu0 %v1826
    %2033 = vmatprep.subr.bf16.mxu0 %v1825
    %2034 = vmatpush1.bf16.msra.mxu0 %v1824
    %2035 = vmatprep.subr.bf16.mxu0 %v1823
    %2036 = vmatpush1.bf16.msra.mxu0 %v1822
    %2037 = vmatprep.subr.bf16.mxu0 %v1853
    %2038 = vmatpush2.bf16.msra.mxu0 %v1852
    %2039 = vmatprep.subr.bf16.mxu0 %v1851
    %2040 = vmatpush2.bf16.msra.mxu0 %v1850
    %2041 = vmatprep.subr.bf16.mxu0 %v1849
    %2042 = vmatpush2.bf16.msra.mxu0 %v1848
    %2043 = vmatprep.subr.bf16.mxu0 %v1847
    %2044 = vmatpush2.bf16.msra.mxu0 %v1846
    %2045 = vmatprep.subr.bf16.mxu0 %v1845
    %2046 = vmatpush2.bf16.msra.mxu0 %v1844
    %2047 = vmatprep.subr.bf16.mxu0 %v1843
    %2048 = vmatpush2.bf16.msra.mxu0 %v1842
    %2049 = vmatprep.subr.bf16.mxu0 %v1841
    %2050 = vmatpush2.bf16.msra.mxu0 %v1840
    %2051 = vmatprep.subr.bf16.mxu0 %v1839
    %2052 = vmatpush2.bf16.msra.mxu0 %v1838
    %2053 = vmatprep.mubr.bf16.mxu0 %v1424
    %2054 = vmatmul.mubr.bf16.gmra.mxu0 %v1423
    %v2055 = vpop.f32.mrf.mxu0
    %v2056 = vadd.f32 0.0, %v2055
    %v2057 = vpop.f32.mrf.mxu0
    %v2058 = vadd.f32 0.0, %v2057
    %v2059 = vpop.f32.mrf.mxu0
    %v2060 = vpop.f32.mrf.mxu0
    %2061 = vdwg.mxu0
    %2062 = vmatprep.subr.bf16.mxu0 %v1869
    %2063 = vmatpush1.bf16.msra.mxu0 %v1868
    %2064 = vmatprep.subr.bf16.mxu0 %v1867
    %2065 = vmatpush1.bf16.msra.mxu0 %v1866
    %2066 = vmatprep.subr.bf16.mxu0 %v1865
    %2067 = vmatpush1.bf16.msra.mxu0 %v1864
    %2068 = vmatprep.subr.bf16.mxu0 %v1863
    %2069 = vmatpush1.bf16.msra.mxu0 %v1862
    %2070 = vmatprep.subr.bf16.mxu0 %v1861
    %2071 = vmatpush1.bf16.msra.mxu0 %v1860
    %2072 = vmatprep.subr.bf16.mxu0 %v1859
    %2073 = vmatpush1.bf16.msra.mxu0 %v1858
    %2074 = vmatprep.subr.bf16.mxu0 %v1857
    %2075 = vmatpush1.bf16.msra.mxu0 %v1856
    %2076 = vmatprep.subr.bf16.mxu0 %v1855
    %2077 = vmatpush1.bf16.msra.mxu0 %v1854
    %2078 = vmatprep.subr.bf16.mxu0 %v1885
    %2079 = vmatpush2.bf16.msra.mxu0 %v1884
    %2080 = vmatprep.subr.bf16.mxu0 %v1883
    %2081 = vmatpush2.bf16.msra.mxu0 %v1882
    %2082 = vmatprep.subr.bf16.mxu0 %v1881
    %2083 = vmatpush2.bf16.msra.mxu0 %v1880
    %2084 = vmatprep.subr.bf16.mxu0 %v1879
    %2085 = vmatpush2.bf16.msra.mxu0 %v1878
    %2086 = vmatprep.subr.bf16.mxu0 %v1877
    %2087 = vmatpush2.bf16.msra.mxu0 %v1876
    %2088 = vmatprep.subr.bf16.mxu0 %v1875
    %2089 = vmatpush2.bf16.msra.mxu0 %v1874
    %2090 = vmatprep.subr.bf16.mxu0 %v1873
    %2091 = vmatpush2.bf16.msra.mxu0 %v1872
    %2092 = vmatprep.subr.bf16.mxu0 %v1871
    %2093 = vmatpush2.bf16.msra.mxu0 %v1870
    %2094 = vmatprep.mubr.bf16.mxu0 %v1426
    %2095 = vmatmul.mubr.bf16.gmra.mxu0 %v1425
    %v2096 = vpop.f32.mrf.mxu0
    %v2097 = vadd.f32 %v2056, %v2096
    %v2098 = vpop.f32.mrf.mxu0
    %v2099 = vadd.f32 %v2058, %v2098
    %v2100 = vpop.f32.mrf.mxu0
    %v2101 = vpop.f32.mrf.mxu0
    %2102 = vdwg.mxu0
    %2103 = vmatprep.subr.bf16.mxu0 %v1901
    %2104 = vmatpush1.bf16.msra.mxu0 %v1900
    %2105 = vmatprep.subr.bf16.mxu0 %v1899
    %2106 = vmatpush1.bf16.msra.mxu0 %v1898
    %2107 = vmatprep.subr.bf16.mxu0 %v1897
    %2108 = vmatpush1.bf16.msra.mxu0 %v1896
    %2109 = vmatprep.subr.bf16.mxu0 %v1895
    %2110 = vmatpush1.bf16.msra.mxu0 %v1894
    %2111 = vmatprep.subr.bf16.mxu0 %v1893
    %2112 = vmatpush1.bf16.msra.mxu0 %v1892
    %2113 = vmatprep.subr.bf16.mxu0 %v1891
    %2114 = vmatpush1.bf16.msra.mxu0 %v1890
    %2115 = vmatprep.subr.bf16.mxu0 %v1889
    %2116 = vmatpush1.bf16.msra.mxu0 %v1888
    %2117 = vmatprep.subr.bf16.mxu0 %v1887
    %2118 = vmatpush1.bf16.msra.mxu0 %v1886
    %2119 = vmatprep.subr.bf16.mxu0 %v1917
    %2120 = vmatpush2.bf16.msra.mxu0 %v1916
    %2121 = vmatprep.subr.bf16.mxu0 %v1915
    %2122 = vmatpush2.bf16.msra.mxu0 %v1914
    %2123 = vmatprep.subr.bf16.mxu0 %v1913
    %2124 = vmatpush2.bf16.msra.mxu0 %v1912
    %2125 = vmatprep.subr.bf16.mxu0 %v1911
    %2126 = vmatpush2.bf16.msra.mxu0 %v1910
    %2127 = vmatprep.subr.bf16.mxu0 %v1909
    %2128 = vmatpush2.bf16.msra.mxu0 %v1908
    %2129 = vmatprep.subr.bf16.mxu0 %v1907
    %2130 = vmatpush2.bf16.msra.mxu0 %v1906
    %2131 = vmatprep.subr.bf16.mxu0 %v1905
    %2132 = vmatpush2.bf16.msra.mxu0 %v1904
    %2133 = vmatprep.subr.bf16.mxu0 %v1903
    %2134 = vmatpush2.bf16.msra.mxu0 %v1902
    %2135 = vmatprep.mubr.bf16.mxu0 %v1428
    %2136 = vmatmul.mubr.bf16.gmra.mxu0 %v1427
    %v2137 = vpop.f32.mrf.mxu0
    %v2138 = vadd.f32 %v2097, %v2137
    %v2139 = vpop.f32.mrf.mxu0
    %v2140 = vadd.f32 %v2099, %v2139
    %v2141 = vpop.f32.mrf.mxu0
    %v2142 = vpop.f32.mrf.mxu0
    %2143 = vdwg.mxu0
    %2144 = vmatprep.subr.bf16.mxu0 0
    %2145 = vmatpush1.bf16.msra.mxu0 0
    %2146 = vmatprep.subr.bf16.mxu0 0
    %2147 = vmatpush1.bf16.msra.mxu0 0
    %2148 = vmatprep.subr.bf16.mxu0 0
    %2149 = vmatpush1.bf16.msra.mxu0 0
    %2150 = vmatprep.subr.bf16.mxu0 0
    %2151 = vmatpush1.bf16.msra.mxu0 0
    %2152 = vmatprep.subr.bf16.mxu0 0
    %2153 = vmatpush1.bf16.msra.mxu0 0
    %2154 = vmatprep.subr.bf16.mxu0 0
    %2155 = vmatpush1.bf16.msra.mxu0 0
    %2156 = vmatprep.subr.bf16.mxu0 0
    %2157 = vmatpush1.bf16.msra.mxu0 0
    %2158 = vmatprep.subr.bf16.mxu0 %v1919
    %2159 = vmatpush1.bf16.msra.mxu0 %v1918
    %2160 = vmatprep.subr.bf16.mxu0 0
    %2161 = vmatpush2.bf16.msra.mxu0 0
    %2162 = vmatprep.subr.bf16.mxu0 0
    %2163 = vmatpush2.bf16.msra.mxu0 0
    %2164 = vmatprep.subr.bf16.mxu0 0
    %2165 = vmatpush2.bf16.msra.mxu0 0
    %2166 = vmatprep.subr.bf16.mxu0 0
    %2167 = vmatpush2.bf16.msra.mxu0 0
    %2168 = vmatprep.subr.bf16.mxu0 0
    %2169 = vmatpush2.bf16.msra.mxu0 0
    %2170 = vmatprep.subr.bf16.mxu0 0
    %2171 = vmatpush2.bf16.msra.mxu0 0
    %2172 = vmatprep.subr.bf16.mxu0 0
    %2173 = vmatpush2.bf16.msra.mxu0 0
    %2174 = vmatprep.subr.bf16.mxu0 0
    %2175 = vmatpush2.bf16.msra.mxu0 0
    %2176 = vmatprep.mubr.bf16.mxu0 0
    %2177 = vmatmul.mubr.bf16.gmra.mxu0 %v2019
    %v2178 = vpop.f32.mrf.mxu0
    %v2179 = vadd.f32 %v2138, %v2178
    %v2180 = vpop.f32.mrf.mxu0
    %v2181 = vadd.f32 %v2140, %v2180
    %v2182 = vpop.f32.mrf.mxu0
    %v2183 = vpop.f32.mrf.mxu0
    %2184 = vdwg.mxu0
    %2187 = vrot.lane.b32.xlu0 %v2179, 15
    %v2188 = vpop.permute.xlu0 %2187
    %2189 = vrot.lane.b32.xlu0 %v2181, 15
    %v2190 = vpop.permute.xlu0 %2189
    %v2191 = vsel %vm51, %v2188, %v2190
    %vm2194 = vcmask 1047672
    %2195 = vst.msk [vmem:[#allocation3] sm:$0xff] %vm2194, %v2188
    %vm2196 = vcmask 678912
    %2197 = vst.msk [vmem:[#allocation3 + $0x8] sm:$0xff] %vm2196, %v2191
    %v2198 = vmul.f32 %v107, 0.071428575
    %v2199 = vmul.f32 %v108, 0.071428575
    %v2200 = vfloor.f32 %v2198
    %v2201 = vfloor.f32 %v2199
    %v2202 = vmul.f32 %v2200, 14.0
    %v2203 = vmul.f32 %v2201, 14.0
    %v2204 = vsub.f32 %v100, %v2202
    %v2205 = vsub.f32 %v101, %v2203
    %vm2206 = vcmp.ge.f32.partialorder %v2204, 0.5
    %vm2207 = vcmp.ge.f32.partialorder %v2205, 0.5
    %vm2208 = vcmp.le.f32.partialorder %v2204, 12.5
    %vm2209 = vcmp.le.f32.partialorder %v2205, 12.5
    %v2210 = vld [vmem:[#allocation3] sm:$0xff]
    %v2211 = vld [vmem:[#allocation3 + $0x8] sm:$0xff]
    %v2212 = vsel %vm2206, 1, 0
    %v2213 = vsel %vm2207, 1, 0
    %vm2214 = vcmp.eq.s32.totalorder %v2212, 1
    %vm2215 = vcmp.eq.s32.totalorder %v2213, 1
    %v2216 = vsel %vm2214, %v2210, 0.0
    %v2217 = vsel %vm2215, %v2211, 0.0
    %2218 = vst [vmem:[#allocation5] sm:$0xff] %v2216
    %vm2219 = vcmask 556032
    %2220 = vst.msk [vmem:[#allocation5 + $0x8] sm:$0xff] %vm2219, %v2217
    %v2221 = vld [vmem:[#allocation3] sm:$0xff]
    %v2222 = vld [vmem:[#allocation3 + $0x8] sm:$0xff]
    %2225 = vrot.lane.b32.xlu0 %v2221, 127
    %v2226 = vpop.permute.xlu0 %2225
    %2227 = vrot.lane.b32.xlu0 %v2222, 127
    %v2228 = vpop.permute.xlu0 %2227
    %v2229 = vsel %vm280, %v2226, %v2228
    %2232 = vst [vmem:[#allocation5 + $0x38] sm:$0xff] %v2229
    %2233 = vst.msk [vmem:[#allocation5 + $0x40] sm:$0xff] %vm2219, %v2228
    %v2234 = vld [vmem:[#allocation3] sm:$0xff]
    %v2235 = vld [vmem:[#allocation3 + $0x8] sm:$0xff]
    %v2236 = vsel %vm2208, 1, 0
    %v2237 = vsel %vm2209, 1, 0
    %vm2238 = vcmp.eq.s32.totalorder %v2236, 1
    %vm2239 = vcmp.eq.s32.totalorder %v2237, 1
    %2242 = vrot.lane.b32.xlu0 %v2234, 126
    %v2243 = vpop.permute.xlu0 %2242
    %2244 = vrot.lane.b32.xlu0 %v2235, 126
    %v2245 = vpop.permute.xlu0 %2244
    %v2246 = vsel %vm367, %v2243, %v2245
    %v2249 = vsel %vm2238, %v2246, 0.0
    %v2250 = vsel %vm2239, %v2245, 0.0
    %2251 = vst [vmem:[#allocation5 + $0x70] sm:$0xff] %v2249
    %2252 = vst.msk [vmem:[#allocation5 + $0x78] sm:$0xff] %vm2219, %v2250
    %v2253 = vld [vmem:[#allocation3] sm:$0xff]
    %v2254 = vld [vmem:[#allocation3 + $0x8] sm:$0xff]
    %2257 = vrot.lane.b32.xlu0 %v2253, 114
    %v2258 = vpop.permute.xlu0 %2257
    %2259 = vrot.lane.b32.xlu0 %v2254, 114
    %v2260 = vpop.permute.xlu0 %2259
    %vm2261 = vcmask 932864
    %v2262 = vsel %vm2261, %v2258, %v2260
    %v2265 = vsel %vm2214, %v2262, 0.0
    %v2266 = vsel %vm2215, %v2260, 0.0
    %2267 = vst [vmem:[#allocation5 + $0xa8] sm:$0xff] %v2265
    %2268 = vst.msk [vmem:[#allocation5 + $0xb0] sm:$0xff] %vm2219, %v2266
    %v2269 = vld [vmem:[#allocation3] sm:$0xff]
    %v2270 = vld [vmem:[#allocation3 + $0x8] sm:$0xff]
    %2273 = vrot.lane.b32.xlu0 %v2269, 113
    %v2274 = vpop.permute.xlu0 %2273
    %2275 = vrot.lane.b32.xlu0 %v2270, 113
    %v2276 = vpop.permute.xlu0 %2275
    %vm2277 = vcmask 924672
    %v2278 = vsel %vm2277, %v2274, %v2276
    %2281 = vst [vmem:[#allocation5 + $0xe0] sm:$0xff] %v2278
    %2282 = vst.msk [vmem:[#allocation5 + $0xe8] sm:$0xff] %vm2219, %v2276
    %v2283 = vld [vmem:[#allocation3] sm:$0xff]
    %v2284 = vld [vmem:[#allocation3 + $0x8] sm:$0xff]
    %2287 = vrot.lane.b32.xlu0 %v2283, 112
    %v2288 = vpop.permute.xlu0 %2287
    %2289 = vrot.lane.b32.xlu0 %v2284, 112
    %v2290 = vpop.permute.xlu0 %2289
    %vm2291 = vcmask 916480
    %v2292 = vsel %vm2291, %v2288, %v2290
    %v2295 = vsel %vm2238, %v2292, 0.0
    %v2296 = vsel %vm2239, %v2290, 0.0
    %2297 = vst [vmem:[#allocation5 + $0x118] sm:$0xff] %v2295
    %2298 = vst.msk [vmem:[#allocation5 + $0x120] sm:$0xff] %vm2219, %v2296
    %v2299 = vld [vmem:[#allocation3] sm:$0xff]
    %v2300 = vld [vmem:[#allocation3 + $0x8] sm:$0xff]
    %2303 = vrot.lane.b32.xlu0 %v2299, 100
    %v2304 = vpop.permute.xlu0 %2303
    %2305 = vrot.lane.b32.xlu0 %v2300, 100
    %v2306 = vpop.permute.xlu0 %2305
    %v2307 = vsel %vm468, %v2304, %v2306
    %v2310 = vsel %vm2214, %v2307, 0.0
    %v2311 = vsel %vm2215, %v2306, 0.0
    %2312 = vst [vmem:[#allocation5 + $0x150] sm:$0xff] %v2310
    %2313 = vst.msk [vmem:[#allocation5 + $0x158] sm:$0xff] %vm2219, %v2311
    %v2314 = vld [vmem:[#allocation3] sm:$0xff]
    %v2315 = vld [vmem:[#allocation3 + $0x8] sm:$0xff]
    %2318 = vrot.lane.b32.xlu0 %v2314, 99
    %v2319 = vpop.permute.xlu0 %2318
    %2320 = vrot.lane.b32.xlu0 %v2315, 99
    %v2321 = vpop.permute.xlu0 %2320
    %v2322 = vsel %vm569, %v2319, %v2321
    %2325 = vst [vmem:[#allocation5 + $0x188] sm:$0xff] %v2322
    %2326 = vst.msk [vmem:[#allocation5 + $0x190] sm:$0xff] %vm2219, %v2321
    %v2327 = vld [vmem:[#allocation3] sm:$0xff]
    %v2328 = vld [vmem:[#allocation3 + $0x8] sm:$0xff]
    %2331 = vrot.lane.b32.xlu0 %v2327, 98
    %v2332 = vpop.permute.xlu0 %2331
    %2333 = vrot.lane.b32.xlu0 %v2328, 98
    %v2334 = vpop.permute.xlu0 %2333
    %v2335 = vsel %vm641, %v2332, %v2334
    %v2338 = vsel %vm2238, %v2335, 0.0
    %v2339 = vsel %vm2239, %v2334, 0.0
    %2340 = vst [vmem:[#allocation5 + $0x1c0] sm:$0xff] %v2338
    %2341 = vst.msk [vmem:[#allocation5 + $0x1c8] sm:$0xff] %vm2219, %v2339
    %v2342 = vld [vmem:[#allocation5] sm:$0xff]
    %v2343 = vld [vmem:[#allocation5 + $0x8] sm:$0xff]
    %v2344 = vld [vmem:[#allocation5 + $0x38] sm:$0xff]
    %v2345 = vld [vmem:[#allocation5 + $0x40] sm:$0xff]
    %v2346 = vld [vmem:[#allocation5 + $0x70] sm:$0xff]
    %v2347 = vld [vmem:[#allocation5 + $0x78] sm:$0xff]
    %v2348 = vld [vmem:[#allocation5 + $0xa8] sm:$0xff]
    %v2349 = vld [vmem:[#allocation5 + $0xb0] sm:$0xff]
    %v2350 = vld [vmem:[#allocation5 + $0xe0] sm:$0xff]
    %v2351 = vld [vmem:[#allocation5 + $0xe8] sm:$0xff]
    %v2352 = vld [vmem:[#allocation5 + $0x118] sm:$0xff]
    %v2353 = vld [vmem:[#allocation5 + $0x120] sm:$0xff]
    %v2354 = vld [vmem:[#allocation5 + $0x150] sm:$0xff]
    %v2355 = vld [vmem:[#allocation5 + $0x158] sm:$0xff]
    %v2356 = vld [vmem:[#allocation5 + $0x188] sm:$0xff]
    %v2357 = vld [vmem:[#allocation5 + $0x190] sm:$0xff]
    %v2358 = vld [vmem:[#allocation5 + $0x1c0] sm:$0xff]
    %v2359 = vld [vmem:[#allocation5 + $0x1c8] sm:$0xff]
    %v2360 = vld [vmem:[%s4] sm:$0xff]
    %v2361 = vld [vmem:[%s4 + $0x8] sm:$0xf]
    %v2362 = vld [vmem:[%s2] sm:$0xff]
    %v2363 = vld [vmem:[%s2 + $0x8] sm:$0xf]
    %2365 = vset.pattern.permute.xlu0 3
    %2366 = vperm.xlu0 %2365, %v2360
    %v2367 = vpop.permute.xlu0 %2366
    %2370 = vset.pattern.permute.xlu0 3
    %2371 = vperm.xlu0 %2370, %v2361
    %v2372 = vpop.permute.xlu0 %2371
    %v2375 = vsel %vm741, %v2362, 0
    %v2378 = vsel %vm741, %v2363, 0
    %2380 = vmatprep.subr.mxu0 0.0
    %2381 = vmatpush1.msra.mxu0 0.0
    %2382 = vmatprep.subr.mxu0 0.0
    %2383 = vmatpush1.msra.mxu0 0.0
    %2384 = vmatprep.subr.mxu0 0.0
    %2385 = vmatpush1.msra.mxu0 0.0
    %2386 = vmatprep.subr.mxu0 0.0
    %2387 = vmatpush1.msra.mxu0 0.0
    %2388 = vmatprep.subr.mxu0 0.0
    %2389 = vmatpush1.msra.mxu0 0.0
    %2390 = vmatprep.subr.mxu0 0.0
    %2391 = vmatpush1.msra.mxu0 0.0
    %2392 = vmatprep.subr.mxu0 0.0
    %2393 = vmatpush1.msra.mxu0 0.0
    %2394 = vmatprep.subr.mxu0 %v2359
    %2395 = vmatpush1.msra.mxu0 %v2358
    %2396 = vmatprep.subr.mxu0 %v2357
    %2397 = vmatpush1.msra.mxu0 %v2356
    %2398 = vmatprep.subr.mxu0 %v2355
    %2399 = vmatpush1.msra.mxu0 %v2354
    %2400 = vmatprep.subr.mxu0 %v2353
    %2401 = vmatpush1.msra.mxu0 %v2352
    %2402 = vmatprep.subr.mxu0 %v2351
    %2403 = vmatpush1.msra.mxu0 %v2350
    %2404 = vmatprep.subr.mxu0 %v2349
    %2405 = vmatpush1.msra.mxu0 %v2348
    %2406 = vmatprep.subr.mxu0 %v2347
    %2407 = vmatpush1.msra.mxu0 %v2346
    %2408 = vmatprep.subr.mxu0 %v2345
    %2409 = vmatpush1.msra.mxu0 %v2344
    %2410 = vmatprep.subr.mxu0 %v2343
    %2411 = vmatpush1.msra.mxu0 %v2342
    %2412 = vmatprep.subr.mxu0 0.0
    %2413 = vmatpush2.msra.mxu0 0.0
    %2414 = vmatprep.subr.mxu0 0.0
    %2415 = vmatpush2.msra.mxu0 0.0
    %2416 = vmatprep.subr.mxu0 0.0
    %2417 = vmatpush2.msra.mxu0 0.0
    %2418 = vmatprep.subr.mxu0 0.0
    %2419 = vmatpush2.msra.mxu0 0.0
    %2420 = vmatprep.subr.mxu0 0.0
    %2421 = vmatpush2.msra.mxu0 0.0
    %2422 = vmatprep.subr.mxu0 0.0
    %2423 = vmatpush2.msra.mxu0 0.0
    %2424 = vmatprep.subr.mxu0 0.0
    %2425 = vmatpush2.msra.mxu0 0.0
    %2426 = vmatprep.subr.mxu0 0.0
    %2427 = vmatpush2.msra.mxu0 0.0
    %2428 = vmatprep.subr.mxu0 0.0
    %2429 = vmatpush2.msra.mxu0 0.0
    %2430 = vmatprep.subr.mxu0 0.0
    %2431 = vmatpush2.msra.mxu0 0.0
    %2432 = vmatprep.subr.mxu0 0.0
    %2433 = vmatpush2.msra.mxu0 0.0
    %2434 = vmatprep.subr.mxu0 0.0
    %2435 = vmatpush2.msra.mxu0 0.0
    %2436 = vmatprep.subr.mxu0 0.0
    %2437 = vmatpush2.msra.mxu0 0.0
    %2438 = vmatprep.subr.mxu0 0.0
    %2439 = vmatpush2.msra.mxu0 0.0
    %2440 = vmatprep.subr.mxu0 0.0
    %2441 = vmatpush2.msra.mxu0 0.0
    %2442 = vmatprep.subr.mxu0 0.0
    %2443 = vmatpush2.msra.mxu0 0.0
    %2444 = vmatprep.mubr.f32.mxu0 0.0
    %2445 = vmatmul.mubr.f32.gmra.mxu0 %v2375
    %v2446 = vpop.f32.mrf.mxu0
    %v2447 = vadd.f32 %v2367, %v2446
    %v2448 = vpop.f32.mrf.mxu0
    %v2449 = vadd.f32 %v2367, %v2448
    %2450 = vmatprep.mubr.f32.mxu0 0.0
    %2451 = vmatmul.mubr.f32.gmra.mxu0 %v2378
    %v2452 = vpop.f32.mrf.mxu0
    %v2453 = vadd.f32 %v2372, %v2452
    %v2454 = vpop.f32.mrf.mxu0
    %v2455 = vadd.f32 %v2372, %v2454
    %2456 = vdwg.mxu0
    %2457 = vst [vmem:[%s14] sm:$0xff] %v2447
    %2458 = vst.msk [vmem:[%s14 + $0x8] sm:$0xff] %vm2219, %v2449
    %2459 = vst [vmem:[%s14 + $0x10] sm:$0xf] %v2453
    %vm2460 = vcmask 551936
    %2461 = vst.msk [vmem:[%s14 + $0x18] sm:$0xf] %vm2460, %v2455
    %2462 = vset.pattern.permute.xlu0 4
    %2463 = vperm.xlu0 %2462, %v2360
    %v2464 = vpop.permute.xlu0 %2463
    %2466 = vset.pattern.permute.xlu0 4
    %2467 = vperm.xlu0 %2466, %v2361
    %v2468 = vpop.permute.xlu0 %2467
    %v2470 = vmul.f32 %v2447, %v2464
    %v2471 = vmul.f32 %v2449, %v2464
    %v2472 = vmul.f32 %v2453, %v2468
    %v2473 = vmul.f32 %v2455, %v2468
    %2474 = vset.pattern.permute.xlu0 5
    %2475 = vperm.xlu0 %2474, %v2360
    %v2476 = vpop.permute.xlu0 %2475
    %2478 = vset.pattern.permute.xlu0 5
    %2479 = vperm.xlu0 %2478, %v2361
    %v2480 = vpop.permute.xlu0 %2479
    %v2482 = vadd.f32 %v2470, %v2476
    %v2483 = vadd.f32 %v2471, %v2476
    %v2484 = vadd.f32 %v2472, %v2480
    %v2485 = vadd.f32 %v2473, %v2480
    %vm2486 = vcmp.gt.f32.partialorder %v2482, 0.0
    %vm2487 = vcmp.gt.f32.partialorder %v2483, 0.0
    %vm2488 = vcmp.gt.f32.partialorder %v2484, 0.0
    %vm2489 = vcmp.gt.f32.partialorder %v2485, 0.0
    %v2490 = vmul.f32 %v2482, 0.01
    %v2491 = vmul.f32 %v2483, 0.01
    %v2492 = vmul.f32 %v2484, 0.01
    %v2493 = vmul.f32 %v2485, 0.01
    %v2494 = vsel %vm2486, %v2482, %v2490
    %v2495 = vsel %vm2487, %v2483, %v2491
    %v2496 = vsel %vm2488, %v2484, %v2492
    %v2497 = vsel %vm2489, %v2485, %v2493
    %2498 = vst [vmem:[%s15] sm:$0xff] %v2494
    %2499 = vst.msk [vmem:[%s15 + $0x8] sm:$0xff] %vm2219, %v2495
    %2500 = vst [vmem:[%s15 + $0x10] sm:$0xf] %v2496
    %2501 = vst.msk [vmem:[%s15 + $0x18] sm:$0xf] %vm2460, %v2497
    %vm2502 = vcmask 1048096
    %2503 = vrot.lane.b32.xlu0 %v2494, 68
    %v2504 = vpop.permute.xlu0 %2503
    %2505 = vrot.lane.b32.xlu0 %v2496, 68
    %v2506 = vpop.permute.xlu0 %2505
    %v2507 = vsel %vm2502, %v2504, %v2495
    %v2508 = vsel %vm2502, %v2506, %v2497
    %2513 = vrot.lane.b32.xlu0 %v2494, 127
    %v2514 = vpop.permute.xlu0 %2513
    %2515 = vrot.lane.b32.xlu0 %v2507, 127
    %v2516 = vpop.permute.xlu0 %2515
    %2517 = vrot.lane.b32.xlu0 %v2496, 127
    %v2518 = vpop.permute.xlu0 %2517
    %2519 = vrot.lane.b32.xlu0 %v2508, 127
    %v2520 = vpop.permute.xlu0 %2519
    %v2521 = vsel %vm280, %v2514, %v2516
    %v2522 = vsel %vm280, %v2518, %v2520
    %v2527 = vmax.f32 %v2494, %v2521
    %v2528 = vmax.f32 %v2495, %v2516
    %v2529 = vmax.f32 %v2496, %v2522
    %v2530 = vmax.f32 %v2497, %v2520
    %v2531 = vmax.f32 %v2507, %v2516
    %v2532 = vmax.f32 %v2508, %v2520
    %2537 = vrot.lane.b32.xlu0 %v2527, 114
    %v2538 = vpop.permute.xlu0 %2537
    %2539 = vrot.lane.b32.xlu0 %v2531, 114
    %v2540 = vpop.permute.xlu0 %2539
    %2541 = vrot.lane.b32.xlu0 %v2529, 114
    %v2542 = vpop.permute.xlu0 %2541
    %2543 = vrot.lane.b32.xlu0 %v2532, 114
    %v2544 = vpop.permute.xlu0 %2543
    %v2545 = vsel %vm2261, %v2538, %v2540
    %v2546 = vsel %vm2261, %v2542, %v2544
    %v2551 = vmax.f32 %v2527, %v2545
    %v2552 = vmax.f32 %v2528, %v2540
    %v2553 = vmax.f32 %v2529, %v2546
    %v2554 = vmax.f32 %v2530, %v2544
    %v2555 = vpack.c.bf16 %v2553, %v2551
    %v2556 = vpack.c.bf16 %v2554, %v2552
    %v2557 = vld [vmem:[%s6] sm:$0xf]
    %v2558 = vld [vmem:[%s6 + $0x4] sm:$0xf]
    %v2559 = vld [vmem:[%s6 + $0x8] sm:$0xf]
    %v2560 = vld [vmem:[%s6 + $0xc] sm:$0xf]
    %v2561 = vld [vmem:[%s6 + $0x10] sm:$0xf]
    %v2562 = vld [vmem:[%s6 + $0x14] sm:$0xf]
    %v2563 = vld [vmem:[%s6 + $0x18] sm:$0xf]
    %v2564 = vld [vmem:[%s6 + $0x1c] sm:$0xf]
    %v2565 = vld [vmem:[%s6 + $0x20] sm:$0xf]
    %v2566 = vld [vmem:[%s6 + $0x24] sm:$0xf]
    %v2567 = vld [vmem:[%s6 + $0x28] sm:$0xf]
    %v2568 = vld [vmem:[%s6 + $0x2c] sm:$0xf]
    %v2569 = vld [vmem:[%s6 + $0x30] sm:$0xf]
    %v2570 = vld [vmem:[%s6 + $0x34] sm:$0xf]
    %v2571 = vld [vmem:[%s6 + $0x38] sm:$0xf]
    %v2572 = vld [vmem:[%s6 + $0x3c] sm:$0xf]
    %v2573 = vld [vmem:[%s6 + $0x40] sm:$0xf]
    %v2574 = vld [vmem:[%s6 + $0x44] sm:$0xf]
    %v2575 = vld [vmem:[%s6 + $0x48] sm:$0xf]
    %v2576 = vld [vmem:[%s6 + $0x4c] sm:$0xf]
    %v2577 = vld [vmem:[%s6 + $0x50] sm:$0xf]
    %v2578 = vld [vmem:[%s6 + $0x54] sm:$0xf]
    %v2579 = vld [vmem:[%s6 + $0x58] sm:$0xf]
    %v2580 = vld [vmem:[%s6 + $0x5c] sm:$0xf]
    %v2581 = vld [vmem:[%s6 + $0x60] sm:$0x3]
    %v2607 = vunpack.c.l.b16 %v2557
    %v2608 = vunpack.c.l.b16 %v2558
    %v2609 = vunpack.c.l.b16 %v2559
    %v2610 = vunpack.c.l.b16 %v2560
    %v2611 = vunpack.c.l.b16 %v2561
    %v2612 = vunpack.c.l.b16 %v2562
    %v2613 = vunpack.c.l.b16 %v2563
    %v2614 = vunpack.c.l.b16 %v2564
    %v2615 = vunpack.c.l.b16 %v2565
    %v2616 = vunpack.c.l.b16 %v2566
    %v2617 = vunpack.c.l.b16 %v2567
    %v2618 = vunpack.c.l.b16 %v2568
    %v2619 = vunpack.c.l.b16 %v2569
    %v2620 = vunpack.c.l.b16 %v2570
    %v2621 = vunpack.c.l.b16 %v2571
    %v2622 = vunpack.c.l.b16 %v2572
    %v2623 = vunpack.c.l.b16 %v2573
    %v2624 = vunpack.c.l.b16 %v2574
    %v2625 = vunpack.c.l.b16 %v2575
    %v2626 = vunpack.c.l.b16 %v2576
    %v2627 = vunpack.c.l.b16 %v2577
    %v2628 = vunpack.c.l.b16 %v2578
    %v2629 = vunpack.c.l.b16 %v2579
    %v2630 = vunpack.c.l.b16 %v2580
    %v2631 = vunpack.c.l.b16 %v2581
    %v2632 = vpack.c.b16 %v2608, %v2607
    %v2633 = vpack.c.b16 %v2610, %v2609
    %v2634 = vpack.c.b16 %v2612, %v2611
    %v2635 = vpack.c.b16 %v2614, %v2613
    %v2636 = vpack.c.b16 %v2616, %v2615
    %v2637 = vpack.c.b16 %v2618, %v2617
    %v2638 = vpack.c.b16 %v2620, %v2619
    %v2639 = vpack.c.b16 %v2622, %v2621
    %v2640 = vpack.c.b16 %v2624, %v2623
    %v2641 = vpack.c.b16 %v2626, %v2625
    %v2642 = vpack.c.b16 %v2628, %v2627
    %v2643 = vpack.c.b16 %v2630, %v2629
    %v2644 = vpack.c.b16 %v2631, %v2631
    %v2658 = vsel %vm2219, %v2556, 0
    %v2661 = vsel %vm75, %v2644, 0
    %2663 = vmatprep.subr.bf16.mxu0 0
    %2664 = vmatpush1.bf16.msra.mxu0 %v2639
    %2665 = vmatprep.subr.bf16.mxu0 0
    %2666 = vmatpush1.bf16.msra.mxu0 %v2638
    %2667 = vmatprep.subr.bf16.mxu0 0
    %2668 = vmatpush1.bf16.msra.mxu0 %v2637
    %2669 = vmatprep.subr.bf16.mxu0 0
    %2670 = vmatpush1.bf16.msra.mxu0 %v2636
    %2671 = vmatprep.subr.bf16.mxu0 0
    %2672 = vmatpush1.bf16.msra.mxu0 %v2635
    %2673 = vmatprep.subr.bf16.mxu0 0
    %2674 = vmatpush1.bf16.msra.mxu0 %v2634
    %2675 = vmatprep.subr.bf16.mxu0 0
    %2676 = vmatpush1.bf16.msra.mxu0 %v2633
    %2677 = vmatprep.subr.bf16.mxu0 0
    %2678 = vmatpush1.bf16.msra.mxu0 %v2632
    %2679 = vmatprep.subr.bf16.mxu0 0
    %2680 = vmatpush2.bf16.msra.mxu0 0
    %2681 = vmatprep.subr.bf16.mxu0 0
    %2682 = vmatpush2.bf16.msra.mxu0 0
    %2683 = vmatprep.subr.bf16.mxu0 0
    %2684 = vmatpush2.bf16.msra.mxu0 0
    %2685 = vmatprep.subr.bf16.mxu0 0
    %2686 = vmatpush2.bf16.msra.mxu0 %v2661
    %2687 = vmatprep.subr.bf16.mxu0 0
    %2688 = vmatpush2.bf16.msra.mxu0 %v2643
    %2689 = vmatprep.subr.bf16.mxu0 0
    %2690 = vmatpush2.bf16.msra.mxu0 %v2642
    %2691 = vmatprep.subr.bf16.mxu0 0
    %2692 = vmatpush2.bf16.msra.mxu0 %v2641
    %2693 = vmatprep.subr.bf16.mxu0 0
    %2694 = vmatpush2.bf16.msra.mxu0 %v2640
    %2695 = vmatprep.mubr.bf16.mxu0 %v2658
    %2696 = vmatmul.mubr.bf16.gmra.mxu0 %v2555
    %v2697 = vpop.f32.mrf.mxu0
    %v2698 = vadd.f32 0.0, %v2697
    %v2699 = vpop.f32.mrf.mxu0
    %v2700 = vpop.f32.mrf.mxu0
    %v2701 = vadd.f32 0.0, %v2700
    %v2702 = vpop.f32.mrf.mxu0
    %2703 = vdwg.mxu0
    %2706 = vrot.lane.b32.xlu0 %v2698, 8
    %v2707 = vpop.permute.xlu0 %2706
    %2708 = vrot.lane.b32.xlu0 %v2701, 8
    %v2709 = vpop.permute.xlu0 %2708
    %vm2712 = vcmask 465984
    %2713 = vst.msk [vmem:[#allocation4] sm:$0xff] %vm2712, %v2707
    %vm2714 = vcmask 461888
    %2715 = vst.msk [vmem:[#allocation4 + $0x8] sm:$0xf] %vm2714, %v2709
    %v2716 = vmul.f32 %v107, 0.14285715
    %v2717 = vfloor.f32 %v2716
    %v2718 = vmul.f32 %v2717, 7.0
    %v2719 = vsub.f32 %v100, %v2718
    %vm2720 = vcmp.ge.f32.partialorder %v2719, 0.5
    %vm2721 = vcmp.le.f32.partialorder %v2719, 5.5
    %v2722 = vld [vmem:[#allocation4] sm:$0xff]
    %v2723 = vld [vmem:[#allocation4 + $0x8] sm:$0xf]
    %v2724 = vsel %vm2720, 1, 0
    %vm2725 = vcmp.eq.s32.totalorder %v2724, 1
    %v2726 = vsel %vm2725, %v2722, 0.0
    %v2727 = vsel %vm2725, %v2723, 0.0
    %vm2728 = vcmask 400384
    %2729 = vst.msk [vmem:[#allocation5] sm:$0xff] %vm2728, %v2726
    %vm2730 = vcmask 396288
    %2731 = vst.msk [vmem:[#allocation5 + $0x38] sm:$0xf] %vm2730, %v2727
    %v2732 = vld [vmem:[#allocation4] sm:$0xff]
    %v2733 = vld [vmem:[#allocation4 + $0x8] sm:$0xf]
    %vm2736 = vcmask 1043456
    %v2737 = vrot.slane %v2732, 4
    %v2738 = vrot.slane %v2733, 4
    %v2739 = vsel %vm2736, %v2737, %v2738
    %2740 = vrot.lane.b32.xlu0 %v2737, 127
    %v2741 = vpop.permute.xlu0 %2740
    %2742 = vrot.lane.b32.xlu0 %v2739, 127
    %v2743 = vpop.permute.xlu0 %2742
    %vm2746 = vcmask 400388
    %2747 = vst.msk [vmem:[#allocation5 + $0x38] sm:$0xf0] %vm2746, %v2741
    %2748 = vst.msk [vmem:[#allocation5 + $0x70] sm:$0xff] %vm2728, %v2743
    %v2749 = vld [vmem:[#allocation4] sm:$0xff]
    %v2750 = vld [vmem:[#allocation4 + $0x8] sm:$0xf]
    %v2751 = vsel %vm2721, 1, 0
    %vm2752 = vcmp.eq.s32.totalorder %v2751, 1
    %2755 = vrot.lane.b32.xlu0 %v2749, 126
    %v2756 = vpop.permute.xlu0 %2755
    %2757 = vrot.lane.b32.xlu0 %v2750, 126
    %v2758 = vpop.permute.xlu0 %2757
    %v2761 = vsel %vm2752, %v2756, 0.0
    %v2762 = vsel %vm2752, %v2758, 0.0
    %2763 = vst.msk [vmem:[#allocation5 + $0xa8] sm:$0xff] %vm2728, %v2761
    %2764 = vst.msk [vmem:[#allocation5 + $0xe0] sm:$0xf] %vm2730, %v2762
    %v2765 = vld [vmem:[#allocation4] sm:$0xff]
    %v2766 = vld [vmem:[#allocation4 + $0x8] sm:$0xf]
    %2769 = vrot.lane.b32.xlu0 %v2765, 121
    %v2770 = vpop.permute.xlu0 %2769
    %2771 = vrot.lane.b32.xlu0 %v2766, 121
    %v2772 = vpop.permute.xlu0 %2771
    %v2775 = vsel %vm2725, %v2770, 0.0
    %v2776 = vsel %vm2725, %v2772, 0.0
    %v2779 = vrot.slane %v2775, 4
    %v2780 = vrot.slane %v2776, 4
    %v2781 = vsel %vm2736, %v2779, %v2780
    %2784 = vst.msk [vmem:[#allocation5 + $0xe0] sm:$0xf0] %vm2746, %v2779
    %2785 = vst.msk [vmem:[#allocation5 + $0x118] sm:$0xff] %vm2728, %v2781
    %v2786 = vld [vmem:[#allocation4] sm:$0xff]
    %v2787 = vld [vmem:[#allocation4 + $0x8] sm:$0xf]
    %2790 = vrot.lane.b32.xlu0 %v2786, 120
    %v2791 = vpop.permute.xlu0 %2790
    %2792 = vrot.lane.b32.xlu0 %v2787, 120
    %v2793 = vpop.permute.xlu0 %2792
    %2796 = vst.msk [vmem:[#allocation5 + $0x150] sm:$0xff] %vm2728, %v2791
    %2797 = vst.msk [vmem:[#allocation5 + $0x188] sm:$0xf] %vm2730, %v2793
    %v2798 = vld [vmem:[#allocation4] sm:$0xff]
    %v2799 = vld [vmem:[#allocation4 + $0x8] sm:$0xf]
    %2802 = vrot.lane.b32.xlu0 %v2798, 119
    %v2803 = vpop.permute.xlu0 %2802
    %2804 = vrot.lane.b32.xlu0 %v2799, 119
    %v2805 = vpop.permute.xlu0 %2804
    %v2808 = vsel %vm2752, %v2803, 0.0
    %v2809 = vsel %vm2752, %v2805, 0.0
    %v2812 = vrot.slane %v2808, 4
    %v2813 = vrot.slane %v2809, 4
    %v2814 = vsel %vm2736, %v2812, %v2813
    %2817 = vst.msk [vmem:[#allocation5 + $0x188] sm:$0xf0] %vm2746, %v2812
    %2818 = vst.msk [vmem:[#allocation5 + $0x1c0] sm:$0xff] %vm2728, %v2814
    %v2819 = vld [vmem:[#allocation4] sm:$0xff]
    %v2820 = vld [vmem:[#allocation4 + $0x8] sm:$0xf]
    %2823 = vrot.lane.b32.xlu0 %v2819, 114
    %v2824 = vpop.permute.xlu0 %2823
    %2825 = vrot.lane.b32.xlu0 %v2820, 114
    %v2826 = vpop.permute.xlu0 %2825
    %v2829 = vsel %vm2725, %v2824, 0.0
    %v2830 = vsel %vm2725, %v2826, 0.0
    %2831 = vst.msk [vmem:[#allocation5 + $0x1f8] sm:$0xff] %vm2728, %v2829
    %2832 = vst.msk [vmem:[#allocation5 + $0x230] sm:$0xf] %vm2730, %v2830
    %v2833 = vld [vmem:[#allocation4] sm:$0xff]
    %v2834 = vld [vmem:[#allocation4 + $0x8] sm:$0xf]
    %v2837 = vrot.slane %v2833, 4
    %v2838 = vrot.slane %v2834, 4
    %v2839 = vsel %vm2736, %v2837, %v2838
    %2840 = vrot.lane.b32.xlu0 %v2837, 113
    %v2841 = vpop.permute.xlu0 %2840
    %2842 = vrot.lane.b32.xlu0 %v2839, 113
    %v2843 = vpop.permute.xlu0 %2842
    %2846 = vst.msk [vmem:[#allocation5 + $0x230] sm:$0xf0] %vm2746, %v2841
    %2847 = vst.msk [vmem:[#allocation5 + $0x268] sm:$0xff] %vm2728, %v2843
    %v2848 = vld [vmem:[#allocation4] sm:$0xff]
    %v2849 = vld [vmem:[#allocation4 + $0x8] sm:$0xf]
    %2852 = vrot.lane.b32.xlu0 %v2848, 112
    %v2853 = vpop.permute.xlu0 %2852
    %2854 = vrot.lane.b32.xlu0 %v2849, 112
    %v2855 = vpop.permute.xlu0 %2854
    %v2858 = vsel %vm2752, %v2853, 0.0
    %v2859 = vsel %vm2752, %v2855, 0.0
    %2860 = vst.msk [vmem:[#allocation5 + $0x2a0] sm:$0xff] %vm2728, %v2858
    %2861 = vst.msk [vmem:[#allocation5 + $0x2d8] sm:$0xf] %vm2730, %v2859
    %v2862 = vld [vmem:[#allocation5] sm:$0xff]
    %v2863 = vld [vmem:[#allocation5 + $0x38] sm:$0xff]
    %v2864 = vld [vmem:[#allocation5 + $0x70] sm:$0xff]
    %v2865 = vld [vmem:[#allocation5 + $0xa8] sm:$0xff]
    %v2866 = vld [vmem:[#allocation5 + $0xe0] sm:$0xff]
    %v2867 = vld [vmem:[#allocation5 + $0x118] sm:$0xff]
    %v2868 = vld [vmem:[#allocation5 + $0x150] sm:$0xff]
    %v2869 = vld [vmem:[#allocation5 + $0x188] sm:$0xff]
    %v2870 = vld [vmem:[#allocation5 + $0x1c0] sm:$0xff]
    %v2871 = vld [vmem:[#allocation5 + $0x1f8] sm:$0xff]
    %v2872 = vld [vmem:[#allocation5 + $0x230] sm:$0xff]
    %v2873 = vld [vmem:[#allocation5 + $0x268] sm:$0xff]
    %v2874 = vld [vmem:[#allocation5 + $0x2a0] sm:$0xff]
    %v2875 = vld [vmem:[#allocation5 + $0x2d8] sm:$0xf]
    %v2876 = vld [vmem:[%s4] sm:$0xff]
    %v2877 = vld [vmem:[%s4 + $0x8] sm:$0xff]
    %v2878 = vld [vmem:[%s3] sm:$0xff]
    %v2879 = vld [vmem:[%s3 + $0x8] sm:$0xff]
    %2881 = vset.pattern.permute.xlu0 6
    %2882 = vperm.xlu0 %2881, %v2876
    %v2883 = vpop.permute.xlu0 %2882
    %2886 = vset.pattern.permute.xlu0 6
    %2887 = vperm.xlu0 %2886, %v2877
    %v2888 = vpop.permute.xlu0 %2887
    %vm2890 = vcmask 883712
    %v2892 = vsel %vm2890, %v2878, 0
    %v2895 = vsel %vm2890, %v2879, 0
    %v2898 = vsel %vm2736, %v2875, 0
    %2900 = vmatprep.subr.mxu0 0.0
    %2901 = vmatpush1.msra.mxu0 0.0
    %2902 = vmatprep.subr.mxu0 0.0
    %2903 = vmatpush1.msra.mxu0 0.0
    %2904 = vmatprep.subr.mxu0 0.0
    %2905 = vmatpush1.msra.mxu0 %v2898
    %2906 = vmatprep.subr.mxu0 0.0
    %2907 = vmatpush1.msra.mxu0 %v2874
    %2908 = vmatprep.subr.mxu0 0.0
    %2909 = vmatpush1.msra.mxu0 %v2873
    %2910 = vmatprep.subr.mxu0 0.0
    %2911 = vmatpush1.msra.mxu0 %v2872
    %2912 = vmatprep.subr.mxu0 0.0
    %2913 = vmatpush1.msra.mxu0 %v2871
    %2914 = vmatprep.subr.mxu0 0.0
    %2915 = vmatpush1.msra.mxu0 %v2870
    %2916 = vmatprep.subr.mxu0 0.0
    %2917 = vmatpush1.msra.mxu0 %v2869
    %2918 = vmatprep.subr.mxu0 0.0
    %2919 = vmatpush1.msra.mxu0 %v2868
    %2920 = vmatprep.subr.mxu0 0.0
    %2921 = vmatpush1.msra.mxu0 %v2867
    %2922 = vmatprep.subr.mxu0 0.0
    %2923 = vmatpush1.msra.mxu0 %v2866
    %2924 = vmatprep.subr.mxu0 0.0
    %2925 = vmatpush1.msra.mxu0 %v2865
    %2926 = vmatprep.subr.mxu0 0.0
    %2927 = vmatpush1.msra.mxu0 %v2864
    %2928 = vmatprep.subr.mxu0 0.0
    %2929 = vmatpush1.msra.mxu0 %v2863
    %2930 = vmatprep.subr.mxu0 0.0
    %2931 = vmatpush1.msra.mxu0 %v2862
    %2932 = vmatprep.subr.mxu0 0.0
    %2933 = vmatpush2.msra.mxu0 0.0
    %2934 = vmatprep.subr.mxu0 0.0
    %2935 = vmatpush2.msra.mxu0 0.0
    %2936 = vmatprep.subr.mxu0 0.0
    %2937 = vmatpush2.msra.mxu0 0.0
    %2938 = vmatprep.subr.mxu0 0.0
    %2939 = vmatpush2.msra.mxu0 0.0
    %2940 = vmatprep.subr.mxu0 0.0
    %2941 = vmatpush2.msra.mxu0 0.0
    %2942 = vmatprep.subr.mxu0 0.0
    %2943 = vmatpush2.msra.mxu0 0.0
    %2944 = vmatprep.subr.mxu0 0.0
    %2945 = vmatpush2.msra.mxu0 0.0
    %2946 = vmatprep.subr.mxu0 0.0
    %2947 = vmatpush2.msra.mxu0 0.0
    %2948 = vmatprep.subr.mxu0 0.0
    %2949 = vmatpush2.msra.mxu0 0.0
    %2950 = vmatprep.subr.mxu0 0.0
    %2951 = vmatpush2.msra.mxu0 0.0
    %2952 = vmatprep.subr.mxu0 0.0
    %2953 = vmatpush2.msra.mxu0 0.0
    %2954 = vmatprep.subr.mxu0 0.0
    %2955 = vmatpush2.msra.mxu0 0.0
    %2956 = vmatprep.subr.mxu0 0.0
    %2957 = vmatpush2.msra.mxu0 0.0
    %2958 = vmatprep.subr.mxu0 0.0
    %2959 = vmatpush2.msra.mxu0 0.0
    %2960 = vmatprep.subr.mxu0 0.0
    %2961 = vmatpush2.msra.mxu0 0.0
    %2962 = vmatprep.subr.mxu0 0.0
    %2963 = vmatpush2.msra.mxu0 0.0
    %2964 = vmatprep.mubr.f32.mxu0 0.0
    %2965 = vmatmul.mubr.f32.gmra.mxu0 %v2892
    %v2966 = vpop.f32.mrf.mxu0
    %v2967 = vadd.f32 %v2883, %v2966
    %v2968 = vpop.f32.mrf.mxu0
    %2969 = vmatprep.mubr.f32.mxu0 0.0
    %2970 = vmatmul.mubr.f32.gmra.mxu0 %v2895
    %v2971 = vpop.f32.mrf.mxu0
    %v2972 = vadd.f32 %v2888, %v2971
    %v2973 = vpop.f32.mrf.mxu0
    %2974 = vdwg.mxu0
    %2975 = vst.msk [vmem:[%s16] sm:$0xff] %vm2728, %v2967
    %2976 = vst.msk [vmem:[%s16 + $0x8] sm:$0xff] %vm2728, %v2972
    %2977 = vset.pattern.permute.xlu0 7
    %2978 = vperm.xlu0 %2977, %v2876
    %v2979 = vpop.permute.xlu0 %2978
    %2981 = vset.pattern.permute.xlu0 7
    %2982 = vperm.xlu0 %2981, %v2877
    %v2983 = vpop.permute.xlu0 %2982
    %v2985 = vmul.f32 %v2967, %v2979
    %v2986 = vmul.f32 %v2972, %v2983
    %2987 = vset.pattern.permute.xlu0 8
    %2988 = vperm.xlu0 %2987, %v2876
    %v2989 = vpop.permute.xlu0 %2988
    %2991 = vset.pattern.permute.xlu0 8
    %2992 = vperm.xlu0 %2991, %v2877
    %v2993 = vpop.permute.xlu0 %2992
    %v2995 = vadd.f32 %v2985, %v2989
    %v2996 = vadd.f32 %v2986, %v2993
    %vm2997 = vcmp.gt.f32.partialorder %v2995, 0.0
    %vm2998 = vcmp.gt.f32.partialorder %v2996, 0.0
    %v2999 = vmul.f32 %v2995, 0.01
    %v3000 = vmul.f32 %v2996, 0.01
    %v3001 = vsel %vm2997, %v2995, %v2999
    %v3002 = vsel %vm2998, %v2996, %v3000
    %3003 = vst.msk [vmem:[%s17] sm:$0xff] %vm2728, %v3001
    %3004 = vst.msk [vmem:[%s17 + $0x8] sm:$0xff] %vm2728, %v3002
    %vm3005 = vcmask 1047944
    %3006 = vrot.lane.b32.xlu0 %v3001, 49
    %v3007 = vpop.permute.xlu0 %3006
    %v3008 = vsel %vm3005, %v3007, %v3001
    %3009 = vrot.lane.b32.xlu0 %v3002, 49
    %v3010 = vpop.permute.xlu0 %3009
    %v3011 = vsel %vm3005, %v3010, %v3002
    %3012 = vrot.lane.b32.xlu0 %v3008, 49
    %v3013 = vpop.permute.xlu0 %3012
    %3014 = vrot.lane.b32.xlu0 %v3011, 49
    %v3015 = vpop.permute.xlu0 %3014
    %v3016 = vsel %vm3005, %v3013, %v3001
    %v3017 = vsel %vm3005, %v3015, %v3002
    %3020 = vrot.lane.b32.xlu0 %v3016, 127
    %v3021 = vpop.permute.xlu0 %3020
    %3022 = vrot.lane.b32.xlu0 %v3017, 127
    %v3023 = vpop.permute.xlu0 %3022
    %v3026 = vmax.f32 %v3001, %v3021
    %v3027 = vmax.f32 %v3002, %v3023
    %v3028 = vmax.f32 %v3016, %v3021
    %v3029 = vmax.f32 %v3017, %v3023
    %3032 = vrot.lane.b32.xlu0 %v3028, 121
    %v3033 = vpop.permute.xlu0 %3032
    %3034 = vrot.lane.b32.xlu0 %v3029, 121
    %v3035 = vpop.permute.xlu0 %3034
    %v3038 = vmax.f32 %v3026, %v3033
    %v3039 = vmax.f32 %v3027, %v3035
    %vm3040 = vcmask 393216
    %3041 = vst.msk [vmem:[#allocation6] sm:$0x1] %vm3040, %v3038
    %v3044 = vunpack.c.l.s4 1983009808
    %v3045 = vunpack.c.0.s8 %v3044
    %v3046 = vlaneseq
    %v3047 = vshrl.u32 %v3046, 7
    %v3048 = vsub.s32 %v3045, %v3047
    %v3049 = vrot.slane %v3038, %v3048
    %v3050 = vrot.slane %v3049, 7
    %v3051 = vrot.slane %v3050, 2
    %3052 = vrot.lane.b32.xlu0 %v3051, 49
    %v3053 = vpop.permute.xlu0 %3052
    %vm3055 = vcmask 795016
    %3056 = vst.msk [vmem:[#allocation6] sm:$0x1] %vm3055, %v3053
    %v3057 = vcombine.high %v3049, %v3049
    %3058 = vrot.lane.b32.xlu0 %v3057, 98
    %v3059 = vpop.permute.xlu0 %3058
    %v3060 = vrot.slane %v3059, 6
    %v3061 = vsel %vm641, %v3060, %v3059
    %vm3063 = vcmask 1041168
    %vm3064 = vcmask 149506
    %vm3065 = vmor %vm3064, %vm3063
    %3066 = vst.msk [vmem:[#allocation6] sm:$0x5] %vm3065, %v3061
    %v3067 = vrot.slane %v3057, 7
    %v3068 = vrot.slane %v3067, 2
    %3069 = vrot.lane.b32.xlu0 %v3068, 19
    %v3070 = vpop.permute.xlu0 %3069
    %vm3072 = vcmask 549016
    %3073 = vst.msk [vmem:[#allocation6 + $0x2] sm:$0x1] %vm3072, %v3070
    %v3074 = vcombine.high %v3038, %v3038
    %v3076 = vunpack.c.l.s4 1983009808
    %v3077 = vunpack.c.0.s8 %v3076
    %v3078 = vlaneseq
    %v3079 = vshrl.u32 %v3078, 7
    %v3080 = vsub.s32 %v3077, %v3079
    %v3081 = vrot.slane %v3074, %v3080
    %3082 = vrot.lane.b32.xlu0 %v3081, 68
    %v3083 = vpop.permute.xlu0 %3082
    %vm3085 = vcmask 950816
    %3086 = vst.msk [vmem:[#allocation6 + $0x2] sm:$0x1] %vm3085, %v3083
    %v3087 = vrot.slane %v3081, 7
    %v3088 = vrot.slane %v3087, 2
    %3089 = vrot.lane.b32.xlu0 %v3088, 117
    %v3090 = vpop.permute.xlu0 %3089
    %v3091 = vrot.slane %v3090, 6
    %vm3092 = vcmask 957440
    %v3093 = vsel %vm3092, %v3091, %v3090
    %vm3095 = vcmask 1041320
    %vm3096 = vcmask 305154
    %vm3097 = vmor %vm3096, %vm3095
    %3098 = vst.msk [vmem:[#allocation6 + $0x2] sm:$0x5] %vm3097, %v3093
    %v3099 = vcombine.high %v3081, %v3081
    %3100 = vrot.lane.b32.xlu0 %v3099, 38
    %v3101 = vpop.permute.xlu0 %3100
    %vm3103 = vcmask 704816
    %3104 = vst.msk [vmem:[#allocation6 + $0x4] sm:$0x1] %vm3103, %v3101
    %v3105 = vrot.slane %v3099, 7
    %v3106 = vrot.slane %v3105, 2
    %3107 = vrot.lane.b32.xlu0 %v3106, 87
    %v3108 = vpop.permute.xlu0 %3107
    %v3109 = vrot.slane %v3108, 6
    %vm3110 = vcmask 711680
    %v3111 = vsel %vm3110, %v3109, %v3108
    %vm3113 = vcmask 1041080
    %vm3114 = vcmask 59394
    %vm3115 = vmor %vm3114, %vm3113
    %3116 = vst.msk [vmem:[#allocation6 + $0x4] sm:$0x5] %vm3115, %v3111
    %3117 = vst.msk [vmem:[#allocation6 + $0x1] sm:$0x1] %vm3040, %v3039
    %v3120 = vunpack.c.l.s4 1983009808
    %v3121 = vunpack.c.0.s8 %v3120
    %v3122 = vlaneseq
    %v3123 = vshrl.u32 %v3122, 7
    %v3124 = vsub.s32 %v3121, %v3123
    %v3125 = vrot.slane %v3039, %v3124
    %v3126 = vrot.slane %v3125, 7
    %v3127 = vrot.slane %v3126, 2
    %3128 = vrot.lane.b32.xlu0 %v3127, 49
    %v3129 = vpop.permute.xlu0 %3128
    %3131 = vst.msk [vmem:[#allocation6 + $0x1] sm:$0x1] %vm3055, %v3129
    %v3132 = vcombine.high %v3125, %v3125
    %3133 = vrot.lane.b32.xlu0 %v3132, 98
    %v3134 = vpop.permute.xlu0 %3133
    %v3135 = vrot.slane %v3134, 6
    %v3136 = vsel %vm641, %v3135, %v3134
    %3138 = vst.msk [vmem:[#allocation6 + $0x1] sm:$0x5] %vm3065, %v3136
    %v3139 = vrot.slane %v3132, 7
    %v3140 = vrot.slane %v3139, 2
    %3141 = vrot.lane.b32.xlu0 %v3140, 19
    %v3142 = vpop.permute.xlu0 %3141
    %3144 = vst.msk [vmem:[#allocation6 + $0x3] sm:$0x1] %vm3072, %v3142
    %v3145 = vcombine.high %v3039, %v3039
    %v3147 = vunpack.c.l.s4 1983009808
    %v3148 = vunpack.c.0.s8 %v3147
    %v3149 = vlaneseq
    %v3150 = vshrl.u32 %v3149, 7
    %v3151 = vsub.s32 %v3148, %v3150
    %v3152 = vrot.slane %v3145, %v3151
    %3153 = vrot.lane.b32.xlu0 %v3152, 68
    %v3154 = vpop.permute.xlu0 %3153
    %3156 = vst.msk [vmem:[#allocation6 + $0x3] sm:$0x1] %vm3085, %v3154
    %v3157 = vrot.slane %v3152, 7
    %v3158 = vrot.slane %v3157, 2
    %3159 = vrot.lane.b32.xlu0 %v3158, 117
    %v3160 = vpop.permute.xlu0 %3159
    %v3161 = vrot.slane %v3160, 6
    %v3162 = vsel %vm3092, %v3161, %v3160
    %3164 = vst.msk [vmem:[#allocation6 + $0x3] sm:$0x5] %vm3097, %v3162
    %v3165 = vcombine.high %v3152, %v3152
    %3166 = vrot.lane.b32.xlu0 %v3165, 38
    %v3167 = vpop.permute.xlu0 %3166
    %3169 = vst.msk [vmem:[#allocation6 + $0x5] sm:$0x1] %vm3103, %v3167
    %v3170 = vrot.slane %v3165, 7
    %v3171 = vrot.slane %v3170, 2
    %3172 = vrot.lane.b32.xlu0 %v3171, 87
    %v3173 = vpop.permute.xlu0 %3172
    %v3174 = vrot.slane %v3173, 6
    %v3175 = vsel %vm3110, %v3174, %v3173
    %3177 = vst.msk [vmem:[#allocation6 + $0x5] sm:$0x5] %vm3115, %v3175
    %v3178 = vld [vmem:[#allocation6] sm:$0xff]
    %v3179 = vld [vmem:[%s7] sm:$0xff]
    %v3180 = vld [vmem:[%s7 + $0x8] sm:$0xff]
    %v3181 = vld [vmem:[%s7 + $0x10] sm:$0xff]
    %v3182 = vld [vmem:[%s7 + $0x18] sm:$0xff]
    %v3183 = vld [vmem:[%s7 + $0x20] sm:$0xff]
    %v3184 = vld [vmem:[%s7 + $0x28] sm:$0xff]
    %v3185 = vld [vmem:[%s7 + $0x30] sm:$0xff]
    %v3186 = vld [vmem:[%s7 + $0x38] sm:$0xff]
    %v3187 = vld [vmem:[%s7 + $0x40] sm:$0xff]
    %v3188 = vld [vmem:[%s7 + $0x48] sm:$0xff]
    %v3189 = vld [vmem:[%s7 + $0x50] sm:$0xff]
    %v3190 = vld [vmem:[%s7 + $0x58] sm:$0xff]
    %v3191 = vld [vmem:[%s7 + $0x60] sm:$0xff]
    %v3192 = vld [vmem:[%s7 + $0x68] sm:$0xff]
    %v3193 = vld [vmem:[%s7 + $0x70] sm:$0xff]
    %v3194 = vld [vmem:[%s7 + $0x78] sm:$0xff]
    %v3195 = vld [vmem:[%s7 + $0x80] sm:$0xff]
    %v3196 = vld [vmem:[%s7 + $0x88] sm:$0xff]
    %v3197 = vld [vmem:[%s7 + $0x90] sm:$0xff]
    %v3198 = vld [vmem:[%s7 + $0x98] sm:$0xff]
    %v3199 = vld [vmem:[%s7 + $0xa0] sm:$0xff]
    %v3200 = vld [vmem:[%s7 + $0xa8] sm:$0xff]
    %v3201 = vld [vmem:[%s7 + $0xb0] sm:$0xff]
    %v3202 = vld [vmem:[%s7 + $0xb8] sm:$0xff]
    %v3203 = vld [vmem:[%s7 + $0xc0] sm:$0xff]
    %v3204 = vld [vmem:[%s7 + $0xc8] sm:$0xff]
    %v3205 = vld [vmem:[%s7 + $0xd0] sm:$0xff]
    %v3206 = vld [vmem:[%s7 + $0xd8] sm:$0xff]
    %v3207 = vld [vmem:[%s7 + $0xe0] sm:$0xff]
    %v3208 = vld [vmem:[%s7 + $0xe8] sm:$0xff]
    %v3209 = vld [vmem:[%s7 + $0xf0] sm:$0xff]
    %v3210 = vld [vmem:[%s7 + $0xf8] sm:$0xff]
    %v3211 = vld [vmem:[%s7 + $0x100] sm:$0xff]
    %v3212 = vld [vmem:[%s7 + $0x108] sm:$0xff]
    %v3213 = vld [vmem:[%s7 + $0x110] sm:$0xff]
    %v3214 = vld [vmem:[%s7 + $0x118] sm:$0xff]
    %v3215 = vld [vmem:[%s7 + $0x120] sm:$0xff]
    %v3216 = vld [vmem:[%s7 + $0x128] sm:$0xff]
    %v3217 = vld [vmem:[%s7 + $0x130] sm:$0xff]
    %v3218 = vld [vmem:[%s7 + $0x138] sm:$0xff]
    %v3219 = vld [vmem:[%s7 + $0x140] sm:$0xff]
    %v3220 = vld [vmem:[%s7 + $0x148] sm:$0xff]
    %v3221 = vld [vmem:[%s7 + $0x150] sm:$0xff]
    %v3222 = vld [vmem:[%s7 + $0x158] sm:$0xff]
    %v3223 = vld [vmem:[%s7 + $0x160] sm:$0xff]
    %v3224 = vld [vmem:[%s7 + $0x168] sm:$0xff]
    %v3225 = vld [vmem:[%s7 + $0x170] sm:$0xff]
    %v3226 = vld [vmem:[%s7 + $0x178] sm:$0xff]
    %v3227 = vld [vmem:[%s7 + $0x180] sm:$0xff]
    %v3228 = vld [vmem:[%s8] sm:$0x1]
    %v3230 = vlaneseq
    %v3231 = vshrl.u32 %v3230, 7
    %v3232 = vsub.s32 0, %v3231
    %v3233 = vrot.slane %v3228, %v3232
    %v3236 = vcombine.high %v3178, %v3178
    %v3238 = vunpack.c.l.s4 1983009808
    %v3239 = vunpack.c.0.s8 %v3238
    %v3240 = vlaneseq
    %v3241 = vshrl.u32 %v3240, 7
    %v3242 = vsub.s32 %v3239, %v3241
    %v3243 = vrot.slane %v3178, %v3242
    %v3245 = vunpack.c.l.s4 1983009808
    %v3246 = vunpack.c.0.s8 %v3245
    %v3247 = vlaneseq
    %v3248 = vshrl.u32 %v3247, 7
    %v3249 = vsub.s32 %v3246, %v3248
    %v3250 = vrot.slane %v3236, %v3249
    %v3251 = vcombine.high %v3243, %v3243
    %v3252 = vcombine.high %v3250, %v3250
    %v3256 = vsel %vm55, %v3252, 0
    %3258 = vmatprep.subr.mxu0 0.0
    %3259 = vmatpush1.msra.mxu0 %v3194
    %3260 = vmatprep.subr.mxu0 0.0
    %3261 = vmatpush1.msra.mxu0 %v3193
    %3262 = vmatprep.subr.mxu0 0.0
    %3263 = vmatpush1.msra.mxu0 %v3192
    %3264 = vmatprep.subr.mxu0 0.0
    %3265 = vmatpush1.msra.mxu0 %v3191
    %3266 = vmatprep.subr.mxu0 0.0
    %3267 = vmatpush1.msra.mxu0 %v3190
    %3268 = vmatprep.subr.mxu0 0.0
    %3269 = vmatpush1.msra.mxu0 %v3189
    %3270 = vmatprep.subr.mxu0 0.0
    %3271 = vmatpush1.msra.mxu0 %v3188
    %3272 = vmatprep.subr.mxu0 0.0
    %3273 = vmatpush1.msra.mxu0 %v3187
    %3274 = vmatprep.subr.mxu0 0.0
    %3275 = vmatpush1.msra.mxu0 %v3186
    %3276 = vmatprep.subr.mxu0 0.0
    %3277 = vmatpush1.msra.mxu0 %v3185
    %3278 = vmatprep.subr.mxu0 0.0
    %3279 = vmatpush1.msra.mxu0 %v3184
    %3280 = vmatprep.subr.mxu0 0.0
    %3281 = vmatpush1.msra.mxu0 %v3183
    %3282 = vmatprep.subr.mxu0 0.0
    %3283 = vmatpush1.msra.mxu0 %v3182
    %3284 = vmatprep.subr.mxu0 0.0
    %3285 = vmatpush1.msra.mxu0 %v3181
    %3286 = vmatprep.subr.mxu0 0.0
    %3287 = vmatpush1.msra.mxu0 %v3180
    %3288 = vmatprep.subr.mxu0 0.0
    %3289 = vmatpush1.msra.mxu0 %v3179
    %3290 = vmatprep.subr.mxu0 0.0
    %3291 = vmatpush2.msra.mxu0 %v3210
    %3292 = vmatprep.subr.mxu0 0.0
    %3293 = vmatpush2.msra.mxu0 %v3209
    %3294 = vmatprep.subr.mxu0 0.0
    %3295 = vmatpush2.msra.mxu0 %v3208
    %3296 = vmatprep.subr.mxu0 0.0
    %3297 = vmatpush2.msra.mxu0 %v3207
    %3298 = vmatprep.subr.mxu0 0.0
    %3299 = vmatpush2.msra.mxu0 %v3206
    %3300 = vmatprep.subr.mxu0 0.0
    %3301 = vmatpush2.msra.mxu0 %v3205
    %3302 = vmatprep.subr.mxu0 0.0
    %3303 = vmatpush2.msra.mxu0 %v3204
    %3304 = vmatprep.subr.mxu0 0.0
    %3305 = vmatpush2.msra.mxu0 %v3203
    %3306 = vmatprep.subr.mxu0 0.0
    %3307 = vmatpush2.msra.mxu0 %v3202
    %3308 = vmatprep.subr.mxu0 0.0
    %3309 = vmatpush2.msra.mxu0 %v3201
    %3310 = vmatprep.subr.mxu0 0.0
    %3311 = vmatpush2.msra.mxu0 %v3200
    %3312 = vmatprep.subr.mxu0 0.0
    %3313 = vmatpush2.msra.mxu0 %v3199
    %3314 = vmatprep.subr.mxu0 0.0
    %3315 = vmatpush2.msra.mxu0 %v3198
    %3316 = vmatprep.subr.mxu0 0.0
    %3317 = vmatpush2.msra.mxu0 %v3197
    %3318 = vmatprep.subr.mxu0 0.0
    %3319 = vmatpush2.msra.mxu0 %v3196
    %3320 = vmatprep.subr.mxu0 0.0
    %3321 = vmatpush2.msra.mxu0 %v3195
    %3322 = vmatprep.mubr.f32.mxu0 %v3251
    %3323 = vmatmul.mubr.f32.gmra.mxu0 %v3243
    %v3324 = vpop.f32.mrf.mxu0
    %v3325 = vadd.f32 %v3233, %v3324
    %v3326 = vpop.f32.mrf.mxu0
    %3327 = vdwg.mxu0
    %3328 = vmatprep.subr.mxu0 0.0
    %3329 = vmatpush1.msra.mxu0 %v3226
    %3330 = vmatprep.subr.mxu0 0.0
    %3331 = vmatpush1.msra.mxu0 %v3225
    %3332 = vmatprep.subr.mxu0 0.0
    %3333 = vmatpush1.msra.mxu0 %v3224
    %3334 = vmatprep.subr.mxu0 0.0
    %3335 = vmatpush1.msra.mxu0 %v3223
    %3336 = vmatprep.subr.mxu0 0.0
    %3337 = vmatpush1.msra.mxu0 %v3222
    %3338 = vmatprep.subr.mxu0 0.0
    %3339 = vmatpush1.msra.mxu0 %v3221
    %3340 = vmatprep.subr.mxu0 0.0
    %3341 = vmatpush1.msra.mxu0 %v3220
    %3342 = vmatprep.subr.mxu0 0.0
    %3343 = vmatpush1.msra.mxu0 %v3219
    %3344 = vmatprep.subr.mxu0 0.0
    %3345 = vmatpush1.msra.mxu0 %v3218
    %3346 = vmatprep.subr.mxu0 0.0
    %3347 = vmatpush1.msra.mxu0 %v3217
    %3348 = vmatprep.subr.mxu0 0.0
    %3349 = vmatpush1.msra.mxu0 %v3216
    %3350 = vmatprep.subr.mxu0 0.0
    %3351 = vmatpush1.msra.mxu0 %v3215
    %3352 = vmatprep.subr.mxu0 0.0
    %3353 = vmatpush1.msra.mxu0 %v3214
    %3354 = vmatprep.subr.mxu0 0.0
    %3355 = vmatpush1.msra.mxu0 %v3213
    %3356 = vmatprep.subr.mxu0 0.0
    %3357 = vmatpush1.msra.mxu0 %v3212
    %3358 = vmatprep.subr.mxu0 0.0
    %3359 = vmatpush1.msra.mxu0 %v3211
    %3360 = vmatprep.subr.mxu0 0.0
    %3361 = vmatpush2.msra.mxu0 0.0
    %3362 = vmatprep.subr.mxu0 0.0
    %3363 = vmatpush2.msra.mxu0 0.0
    %3364 = vmatprep.subr.mxu0 0.0
    %3365 = vmatpush2.msra.mxu0 0.0
    %3366 = vmatprep.subr.mxu0 0.0
    %3367 = vmatpush2.msra.mxu0 0.0
    %3368 = vmatprep.subr.mxu0 0.0
    %3369 = vmatpush2.msra.mxu0 0.0
    %3370 = vmatprep.subr.mxu0 0.0
    %3371 = vmatpush2.msra.mxu0 0.0
    %3372 = vmatprep.subr.mxu0 0.0
    %3373 = vmatpush2.msra.mxu0 0.0
    %3374 = vmatprep.subr.mxu0 0.0
    %3375 = vmatpush2.msra.mxu0 0.0
    %3376 = vmatprep.subr.mxu0 0.0
    %3377 = vmatpush2.msra.mxu0 0.0
    %3378 = vmatprep.subr.mxu0 0.0
    %3379 = vmatpush2.msra.mxu0 0.0
    %3380 = vmatprep.subr.mxu0 0.0
    %3381 = vmatpush2.msra.mxu0 0.0
    %3382 = vmatprep.subr.mxu0 0.0
    %3383 = vmatpush2.msra.mxu0 0.0
    %3384 = vmatprep.subr.mxu0 0.0
    %3385 = vmatpush2.msra.mxu0 0.0
    %3386 = vmatprep.subr.mxu0 0.0
    %3387 = vmatpush2.msra.mxu0 0.0
    %3388 = vmatprep.subr.mxu0 0.0
    %3389 = vmatpush2.msra.mxu0 0.0
    %3390 = vmatprep.subr.mxu0 0.0
    %3391 = vmatpush2.msra.mxu0 %v3227
    %3392 = vmatprep.mubr.f32.mxu0 %v3256
    %3393 = vmatmul.mubr.f32.gmra.mxu0 %v3250
    %v3394 = vpop.f32.mrf.mxu0
    %v3395 = vadd.f32 %v3325, %v3394
    %v3396 = vpop.f32.mrf.mxu0
    %3397 = vdwg.mxu0
    %vm3398 = vcmp.gt.f32.partialorder %v3395, 0.0
    %v3399 = vmul.f32 %v3395, 0.01
    %v3400 = vsel %vm3398, %v3395, %v3399
    %v3401 = vld [vmem:[%s9] sm:$0xff]
    %v3402 = vld [vmem:[%s9 + $0x8] sm:$0xff]
    %v3403 = vld [vmem:[%s9 + $0x10] sm:$0xff]
    %v3404 = vld [vmem:[%s9 + $0x18] sm:$0xff]
    %v3405 = vld [vmem:[%s9 + $0x20] sm:$0xff]
    %v3406 = vld [vmem:[%s9 + $0x28] sm:$0xff]
    %v3407 = vld [vmem:[%s9 + $0x30] sm:$0xff]
    %v3408 = vld [vmem:[%s9 + $0x38] sm:$0xff]
    %v3409 = vld [vmem:[%s9 + $0x40] sm:$0xff]
    %v3410 = vld [vmem:[%s9 + $0x48] sm:$0xff]
    %v3411 = vld [vmem:[%s9 + $0x50] sm:$0xff]
    %v3412 = vld [vmem:[%s9 + $0x58] sm:$0xff]
    %v3413 = vld [vmem:[%s9 + $0x60] sm:$0xff]
    %v3414 = vld [vmem:[%s9 + $0x68] sm:$0xff]
    %v3415 = vld [vmem:[%s9 + $0x70] sm:$0xff]
    %v3416 = vld [vmem:[%s9 + $0x78] sm:$0xff]
    %v3417 = vld [vmem:[%s10] sm:$0x1]
    %v3419 = vlaneseq
    %v3420 = vshrl.u32 %v3419, 7
    %v3421 = vsub.s32 0, %v3420
    %v3422 = vrot.slane %v3417, %v3421
    %3424 = vmatprep.subr.mxu0 0.0
    %3425 = vmatpush1.msra.mxu0 %v3416
    %3426 = vmatprep.subr.mxu0 0.0
    %3427 = vmatpush1.msra.mxu0 %v3415
    %3428 = vmatprep.subr.mxu0 0.0
    %3429 = vmatpush1.msra.mxu0 %v3414
    %3430 = vmatprep.subr.mxu0 0.0
    %3431 = vmatpush1.msra.mxu0 %v3413
    %3432 = vmatprep.subr.mxu0 0.0
    %3433 = vmatpush1.msra.mxu0 %v3412
    %3434 = vmatprep.subr.mxu0 0.0
    %3435 = vmatpush1.msra.mxu0 %v3411
    %3436 = vmatprep.subr.mxu0 0.0
    %3437 = vmatpush1.msra.mxu0 %v3410
    %3438 = vmatprep.subr.mxu0 0.0
    %3439 = vmatpush1.msra.mxu0 %v3409
    %3440 = vmatprep.subr.mxu0 0.0
    %3441 = vmatpush1.msra.mxu0 %v3408
    %3442 = vmatprep.subr.mxu0 0.0
    %3443 = vmatpush1.msra.mxu0 %v3407
    %3444 = vmatprep.subr.mxu0 0.0
    %3445 = vmatpush1.msra.mxu0 %v3406
    %3446 = vmatprep.subr.mxu0 0.0
    %3447 = vmatpush1.msra.mxu0 %v3405
    %3448 = vmatprep.subr.mxu0 0.0
    %3449 = vmatpush1.msra.mxu0 %v3404
    %3450 = vmatprep.subr.mxu0 0.0
    %3451 = vmatpush1.msra.mxu0 %v3403
    %3452 = vmatprep.subr.mxu0 0.0
    %3453 = vmatpush1.msra.mxu0 %v3402
    %3454 = vmatprep.subr.mxu0 0.0
    %3455 = vmatpush1.msra.mxu0 %v3401
    %3456 = vmatprep.subr.mxu0 0.0
    %3457 = vmatpush2.msra.mxu0 0.0
    %3458 = vmatprep.subr.mxu0 0.0
    %3459 = vmatpush2.msra.mxu0 0.0
    %3460 = vmatprep.subr.mxu0 0.0
    %3461 = vmatpush2.msra.mxu0 0.0
    %3462 = vmatprep.subr.mxu0 0.0
    %3463 = vmatpush2.msra.mxu0 0.0
    %3464 = vmatprep.subr.mxu0 0.0
    %3465 = vmatpush2.msra.mxu0 0.0
    %3466 = vmatprep.subr.mxu0 0.0
    %3467 = vmatpush2.msra.mxu0 0.0
    %3468 = vmatprep.subr.mxu0 0.0
    %3469 = vmatpush2.msra.mxu0 0.0
    %3470 = vmatprep.subr.mxu0 0.0
    %3471 = vmatpush2.msra.mxu0 0.0
    %3472 = vmatprep.subr.mxu0 0.0
    %3473 = vmatpush2.msra.mxu0 0.0
    %3474 = vmatprep.subr.mxu0 0.0
    %3475 = vmatpush2.msra.mxu0 0.0
    %3476 = vmatprep.subr.mxu0 0.0
    %3477 = vmatpush2.msra.mxu0 0.0
    %3478 = vmatprep.subr.mxu0 0.0
    %3479 = vmatpush2.msra.mxu0 0.0
    %3480 = vmatprep.subr.mxu0 0.0
    %3481 = vmatpush2.msra.mxu0 0.0
    %3482 = vmatprep.subr.mxu0 0.0
    %3483 = vmatpush2.msra.mxu0 0.0
    %3484 = vmatprep.subr.mxu0 0.0
    %3485 = vmatpush2.msra.mxu0 0.0
    %3486 = vmatprep.subr.mxu0 0.0
    %3487 = vmatpush2.msra.mxu0 0.0
    %3488 = vmatprep.mubr.f32.mxu0 0.0
    %3489 = vmatmul.mubr.f32.gmra.mxu0 %v3400
    %v3490 = vpop.f32.mrf.mxu0
    %v3491 = vadd.f32 %v3422, %v3490
    %v3492 = vpop.f32.mrf.mxu0
    %3493 = vdwg.mxu0
    %vm3494 = vcmask 74752
    %3495 = vst.msk [vmem:[#allocation7] sm:$0x3] %vm3494, %v3491
    // Predicated region
    $region46: #{three_layers_cnn_forward.1} parent=1 // pred_check
      _
    $region47: #{three_layers_cnn_forward.1} parent=1 // pred_check_branch
      %3497 = sbr.rel (0) target = $region49
    $region48: #{three_layers_cnn_forward.1} parent=1 // pred_region
      %s3499 = ssub.s32 32, 32
      %3500 = vsyncadd [#allocation8], %s3499
      %s3502 = sshll.u32 [#allocation7], 4
      %s3503 = int_to_ptr.vmem [resolvable:$true] %s3502
      %3505 = dma.vmem_to_hbm [thread:$0]  %s3503, 32, %s11, [#allocation8]
    $region49: #{three_layers_cnn_forward.1} parent=1 // pred_fallthru
      _
    // Predicated region
    $region50: #{three_layers_cnn_forward.1} parent=1 // pred_check
      _
    $region51: #{three_layers_cnn_forward.1} parent=1 // pred_check_branch
      %3507 = sbr.rel (0) target = $region53
    $region52: #{three_layers_cnn_forward.1} parent=1 // pred_region
      _
    $region53: #{three_layers_cnn_forward.1} parent=1 // pred_fallthru
      _
    // Predicated region
    $region54: #{three_layers_cnn_forward.1} parent=1 // pred_check
      _
    $region55: #{three_layers_cnn_forward.1} parent=1 // pred_check_branch
      %3509 = sbr.rel (0) target = $region57
    $region56: #{three_layers_cnn_forward.1} parent=1 // pred_region
      _
    $region57: #{three_layers_cnn_forward.1} parent=1 // pred_fallthru
      _
    // Predicated region
    $region58: #{three_layers_cnn_forward.1} parent=1 // pred_check
      _
    $region59: #{three_layers_cnn_forward.1} parent=1 // pred_check_branch
      %3511 = sbr.rel (0) target = $region61
    $region60: #{three_layers_cnn_forward.1} parent=1 // pred_region
      _
    $region61: #{three_layers_cnn_forward.1} parent=1 // pred_fallthru
      _
    // Predicated region
    $region62: #{three_layers_cnn_forward.1} parent=1 // pred_check
      _
    $region63: #{three_layers_cnn_forward.1} parent=1 // pred_check_branch
      %3513 = sbr.rel (0) target = $region65
    $region64: #{three_layers_cnn_forward.1} parent=1 // pred_region
      _
    $region65: #{three_layers_cnn_forward.1} parent=1 // pred_fallthru
      _
    // Predicated region
    $region66: #{three_layers_cnn_forward.1} parent=1 // pred_check
      _
    $region67: #{three_layers_cnn_forward.1} parent=1 // pred_check_branch
      %3515 = sbr.rel (0) target = $region69
    $region68: #{three_layers_cnn_forward.1} parent=1 // pred_region
      _
    $region69: #{three_layers_cnn_forward.1} parent=1 // pred_fallthru
      _
    // Predicated region
    $region70: #{three_layers_cnn_forward.1} parent=1 // pred_check
      _
    $region71: #{three_layers_cnn_forward.1} parent=1 // pred_check_branch
      %3517 = sbr.rel (0) target = $region73
    $region72: #{three_layers_cnn_forward.1} parent=1 // pred_region
      _
    $region73: #{three_layers_cnn_forward.1} parent=1 // pred_fallthru
      _
    // Predicated region
    $region74: #{three_layers_cnn_forward.1} parent=1 // pred_check
      _
    $region75: #{three_layers_cnn_forward.1} parent=1 // pred_check_branch
      %3519 = sbr.rel (0) target = $region77
    $region76: #{three_layers_cnn_forward.1} parent=1 // pred_region
      %3520 = dma.done [#allocation8], 32
    $region77: #{three_layers_cnn_forward.1} parent=1 // pred_fallthru
      _
    // Predicated region
    $region78: #{three_layers_cnn_forward.1} parent=1 // pred_check
      _
    $region79: #{three_layers_cnn_forward.1} parent=1 // pred_check_branch
      %3522 = sbr.rel (0) target = $region81
    $region80: #{three_layers_cnn_forward.1} parent=1 // pred_region
      _
    $region81: #{three_layers_cnn_forward.1} parent=1 // pred_fallthru
      _
    // Predicated region
    $region82: #{three_layers_cnn_forward.1} parent=1 // pred_check
      _
    $region83: #{three_layers_cnn_forward.1} parent=1 // pred_check_branch
      %3524 = sbr.rel (0) target = $region85
    $region84: #{three_layers_cnn_forward.1} parent=1 // pred_region
      _
    $region85: #{three_layers_cnn_forward.1} parent=1 // pred_fallthru
      _
    // Predicated region
    $region86: #{three_layers_cnn_forward.1} parent=1 // pred_check
      _
    $region87: #{three_layers_cnn_forward.1} parent=1 // pred_check_branch
      %3526 = sbr.rel (0) target = $region89
    $region88: #{three_layers_cnn_forward.1} parent=1 // pred_region
      _
    $region89: #{three_layers_cnn_forward.1} parent=1 // pred_fallthru
      _
    // Predicated region
    $region90: #{three_layers_cnn_forward.1} parent=1 // pred_check
      _
    $region91: #{three_layers_cnn_forward.1} parent=1 // pred_check_branch
      %3528 = sbr.rel (0) target = $region93
    $region92: #{three_layers_cnn_forward.1} parent=1 // pred_region
      _
    $region93: #{three_layers_cnn_forward.1} parent=1 // pred_fallthru
      _
    // Predicated region
    $region94: #{three_layers_cnn_forward.1} parent=1 // pred_check
      _
    $region95: #{three_layers_cnn_forward.1} parent=1 // pred_check_branch
      %3530 = sbr.rel (0) target = $region97
    $region96: #{three_layers_cnn_forward.1} parent=1 // pred_region
      _
    $region97: #{three_layers_cnn_forward.1} parent=1 // pred_fallthru
      _
    // Predicated region
    $region98: #{three_layers_cnn_forward.1} parent=1 // pred_check
      _
    $region99: #{three_layers_cnn_forward.1} parent=1 // pred_check_branch
      %3532 = sbr.rel (0) target = $region101
    $region100: #{three_layers_cnn_forward.1} parent=1 // pred_region
      _
    $region101: #{three_layers_cnn_forward.1} parent=1 // pred_fallthru
      _
    %3533 = vsyncpa [#allocation8], 1

</llo_original>
